<compile_context>
chip_gen: v6e
topology: v6e:2x2x1
jax: 0.10.0
libtpu: 0.0.40
codegen_flags: <defaults>
</compile_context>

<pallas_src>
import functools

import jax
import jax.numpy as jnp
import numpy as np
from jax.experimental import pallas as pl
from jax.experimental.pallas import tpu as pltpu

NEG_SLOPE = 0.2
EPS = 1e-5

# MXU operand dtype for the conv matmuls (accumulation stays f32 via
# preferred_element_type).  bf16 is MXU-native on v5e/v6e/v7x.
CONV_DTYPE = jnp.bfloat16


def _round_up(v, m):
    return ((v + m - 1) // m) * m


def _leaky_relu(v):
    return jnp.where(v >= 0, v, NEG_SLOPE * v)


def _conv3x3_acc(tap_fn, w9_ref, b_ref):
    """3x3 'same' conv as 9 accumulated per-tap MXU matmuls.

    tap_fn(dy, dx) -> (Cin, L) lane-offset slice of the zero-bordered padded
    flat input (CONV_DTYPE).  w9_ref: (9, Cout, Cin) tap-major weights
    (CONV_DTYPE).  b_ref: (Cout, 1) f32 bias.  Returns (Cout, L) f32.

    No im2col buffer is materialized: each tap is sliced, fed to the MXU and
    discarded, keeping peak VMEM at ~1x (Cin, L) instead of 9x and removing
    the concatenate copy.
    """
    acc = None
    for t in range(9):
        dy, dx = t // 3, t % 3
        part = jnp.dot(w9_ref[t], tap_fn(dy, dx),
                       preferred_element_type=jnp.float32)
        acc = part if acc is None else acc + part
    return acc + b_ref[...]


def _multi_spade1_kernel(x_ref, seg_ref, mask_ref,
                         w_sh_ref, b_sh_ref,
                         w_gb_ref, b_gb_ref,
                         w_l_ref, b_l_ref,
                         inw_ref, inb_ref,
                         out_ref,
                         buf,
                         *, H, W, S, L, base, Lbuf):
    Cf = out_ref.shape[0]
    pad0 = base + S + 1            # lane-aligned interior origin in the frame

    mask = mask_ref[...]           # (1, L): 1.0 on valid columns (x < W)

    # ---- InstanceNorm2d(nfilt, affine=True): per-sample, per-channel -------
    # Two-pass variance: sum((x - mean)^2), not E[x^2] - mean^2 (avoids
    # catastrophic cancellation).  Junk columns of x are zero, so lane sums
    # divided by the true pixel count H*W give the exact mean; (x - mean) is
    # masked before the second pass so junk columns contribute nothing.
    x = x_ref[...]                                               # (Cf, L) f32
    inv_n = 1.0 / float(H * W)
    mean = jnp.sum(x, axis=1, keepdims=True) * inv_n             # (Cf, 1)
    xc = (x - mean) * mask
    var = jnp.sum(xc * xc, axis=1, keepdims=True) * inv_n
    normalized = xc * jax.lax.rsqrt(var + EPS) * inw_ref[...] + inb_ref[...]

    # ---- mlp_shared: Conv3x3(upsampled label) + LeakyReLU(0.2) --------------
    def seg_tap(dy, dx):
        o = base + dy * S + dx
        return seg_ref[:, o:o + L]

    actv = _leaky_relu(_conv3x3_acc(seg_tap, w_sh_ref, b_sh_ref))

    # Stage into the reusable padded bf16 scratch.  Only the border slabs are
    # zeroed -- and every grid step, which is required for correctness under
    # 'parallel' multi-core grid splitting.  The interior is fully overwritten
    # at a lane-aligned offset (pad0); per-row junk columns are zeroed by the
    # mask multiply.
    buf[:, :pad0] = jnp.zeros((Cf, pad0), buf.dtype)
    buf[:, pad0 + L:] = jnp.zeros((Cf, Lbuf - pad0 - L), buf.dtype)
    buf[:, pad0:pad0 + L] = (actv * mask).astype(buf.dtype)

    def buf_tap(dy, dx):
        o = base + dy * S + dx
        return buf[:, o:o + L]

    # ---- fused gamma/beta conv (single weight tensor, Cout = 2*Cf) ----------
    gb = _conv3x3_acc(buf_tap, w_gb_ref, b_gb_ref)               # (2*Cf, L)
    gamma = gb[:Cf]                                              # 8-aligned split
    beta = gb[Cf:]

    # ---- SPADE modulation + LeakyReLU(0.2) ----------------------------------
    act2 = _leaky_relu(normalized * (1.0 + gamma) + beta)

    # ---- last: Conv3x3 (reuse scratch; borders are still zero) --------------
    buf[:, pad0:pad0 + L] = (act2 * mask).astype(buf.dtype)
    out = _conv3x3_acc(buf_tap, w_l_ref, b_l_ref)

    out_ref[...] = out.astype(out_ref.dtype)


def multi_spade1_forward(x_nchw, label1_nchw, params):
    """Fused Multi_SPADE1 forward.  Inputs/outputs are NCHW (PyTorch layout)."""
    N, Cf, H, W = x_nchw.shape
    Cin = label1_nchw.shape[1]

    # Channel counts padded to sublane multiples (aligned gamma/beta split,
    # no relayout copies).
    Cf_p = _round_up(Cf, 8)
    Cin_p = _round_up(Cin, 8)

    # Lane geometry: 128-align the row stride and the interior store origin
    # for large W (full-width vst, lane-aligned dy*S tap offsets); for small W
    # the padding waste would dominate, so fall back to 8.
    lane_align = 128 if W >= 64 else 8
    S = _round_up(W + 2, lane_align)          # padded row stride (>= W+2)
    pad0 = _round_up(S + 1, lane_align)       # lane-aligned interior origin
    base = pad0 - (S + 1)                     # top-left of the (H+2, S) frame
    L = H * S                                 # flat output-frame length
    Lbuf = _round_up(pad0 + L + S + 1, lane_align)   # padded frame length

    # TODO(synk): for large H*W*C add an H-strip grid axis (1-row halo,
    # two-pass InstanceNorm across strips) and a second 'parallel' axis so a
    # single-sample call still uses both v7x TensorCores; also batch several
    # samples per grid step for tiny nfilt/H*W to amortize per-step overhead.
    # TODO(synk): move the nearest-neighbour upsample in-kernel (pass the
    # low-res label, expand in VMEM) to cut label-path HBM traffic.

    # ---- input feature map: NCHW -> (N, Cf_p, H*S), junk columns zero -------
    x = x_nchw.astype(jnp.float32)
    x_flat = jnp.pad(x, ((0, 0), (0, Cf_p - Cf), (0, 0), (0, S - W))
                     ).reshape(N, Cf_p, L)

    # ---- label: nearest upsample (torch semantics) + frame embedding, bf16 --
    lab = label1_nchw.astype(jnp.float32)
    hin, win = lab.shape[2], lab.shape[3]
    ridx = (jnp.arange(H) * hin) // H
    cidx = (jnp.arange(W) * win) // W
    seg = lab[:, :, ridx, :][:, :, :, cidx]                      # (N, Cin, H, W)
    seg = jnp.pad(seg, ((0, 0), (0, Cin_p - Cin), (0, 0), (0, 0)))
    segp = jnp.pad(seg, ((0, 0), (0, 0), (1, 1), (1, S - W - 1)))  # (N,Cin_p,H+2,S)
    frame_len = (H + 2) * S
    seg_flat = jnp.pad(segp.reshape(N, Cin_p, frame_len),
                       ((0, 0), (0, 0), (base, Lbuf - base - frame_len)))
    seg_flat = seg_flat.astype(CONV_DTYPE)                       # (N,Cin_p,Lbuf)

    # validity mask over the flattened output frame
    mask = (jnp.arange(L) % S < W).astype(jnp.float32).reshape(1, L)

    # ---- fold / reshape parameters once ------------------------------------
    def pad_hwio(w, cin_p, cout_p):
        return jnp.pad(w, ((0, 0), (0, 0),
                           (0, cin_p - w.shape[2]), (0, cout_p - w.shape[3])))

    def to_w9(w_hwio):                     # HWIO (3,3,Cin,Cout) -> (9,Cout,Cin)
        cout, cin = w_hwio.shape[3], w_hwio.shape[2]
        return (jnp.transpose(w_hwio, (0, 1, 3, 2))
                .reshape(9, cout, cin).astype(CONV_DTYPE))

    def pad_vec(v, n):
        return jnp.pad(v.astype(jnp.float32), (0, n - v.shape[0]))

    w_sh = to_w9(pad_hwio(params['w_shared'], Cin_p, Cf_p))
    w_gb = to_w9(jnp.concatenate(
        [pad_hwio(params['w_gamma'], Cf_p, Cf_p),
         pad_hwio(params['w_beta'], Cf_p, Cf_p)], axis=3))       # (9, 2Cf_p, Cf_p)
    w_l = to_w9(pad_hwio(params['w_last'], Cf_p, Cf_p))

    b_sh = pad_vec(params['b_shared'], Cf_p).reshape(-1, 1)
    b_gb = jnp.concatenate([pad_vec(params['b_gamma'], Cf_p),
                            pad_vec(params['b_beta'], Cf_p)]).reshape(-1, 1)
    b_l = pad_vec(params['b_last'], Cf_p).reshape(-1, 1)
    in_w = pad_vec(params['in_weight'], Cf_p).reshape(-1, 1)
    in_b = pad_vec(params['in_bias'], Cf_p).reshape(-1, 1)

    param_arrays = [w_sh, b_sh, w_gb, b_gb, w_l, b_l, in_w, in_b]

    in_specs = [
        pl.BlockSpec((None, Cf_p, L), lambda n: (n, 0, 0)),      # x (f32)
        pl.BlockSpec((None, Cin_p, Lbuf), lambda n: (n, 0, 0)),  # seg (bf16)
        pl.BlockSpec((1, L), lambda n: (0, 0)),                  # mask
    ]
    for p in param_arrays:
        in_specs.append(pl.BlockSpec(p.shape, lambda n, nd=p.ndim: (0,) * nd))

    # VMEM budget estimate -> only raise the scoped limit if the blocks need it.
    param_bytes = sum(int(np.prod(p.shape)) * p.dtype.itemsize
                      for p in param_arrays)
    est = (2 * (Cf_p * L * 4 + Cin_p * Lbuf * 2 + Cf_p * L * 4 + param_bytes)
           + Cf_p * Lbuf * 2           # bf16 scratch
           + 12 * Cf_p * L * 4)        # f32 temporaries (gb, normalized, ...)
    vmem_limit = (int(min(est * 1.25, 100 * 1024 * 1024))
                  if est > 28 * 1024 * 1024 else None)

    kernel = functools.partial(_multi_spade1_kernel,
                               H=H, W=W, S=S, L=L, base=base, Lbuf=Lbuf)

    out_flat = pl.pallas_call(
        kernel,
        out_shape=jax.ShapeDtypeStruct((N, Cf_p, L), jnp.float32),
        grid_spec=pltpu.PrefetchScalarGridSpec(
            num_scalar_prefetch=0,
            grid=(N,),
            in_specs=in_specs,
            out_specs=pl.BlockSpec((None, Cf_p, L), lambda n: (n, 0, 0)),
            scratch_shapes=[pltpu.VMEM((Cf_p, Lbuf), CONV_DTYPE)],
        ),
        compiler_params=pltpu.CompilerParams(
            dimension_semantics=("parallel",),
            vmem_limit_bytes=vmem_limit),
    )(x_flat, seg_flat, mask, *param_arrays)

    # strip channel / row-stride padding -> NCHW (no transpose needed)
    return out_flat.reshape(N, Cf_p, H, S)[:, :Cf, :, :W]


def init_params(key, ch1, nfilt):
    """Deterministic synthetic parameters. Conv weights HWIO (3,3,Cin,Cout)."""
    ks = jax.random.split(key, 8)

    def conv_w(k, cin, cout):
        return jax.random.normal(k, (3, 3, cin, cout), jnp.float32) * 0.1

    def bias(k, c):
        return jax.random.normal(k, (c,), jnp.float32) * 0.05

    return {
        'w_shared': conv_w(ks[0], ch1, nfilt),
        'b_shared': bias(ks[1], nfilt),
        'w_gamma': conv_w(ks[2], nfilt, nfilt),
        'b_gamma': bias(ks[3], nfilt),
        'w_beta': conv_w(ks[4], nfilt, nfilt),
        'b_beta': bias(ks[5], nfilt),
        'w_last': conv_w(ks[6], nfilt, nfilt),
        'b_last': bias(ks[7], nfilt),
        # torch InstanceNorm2d(affine=True) init: weight=1, bias=0
        'in_weight': jnp.ones((nfilt,), jnp.float32),
        'in_bias': jnp.zeros((nfilt,), jnp.float32),
    }


def reference_forward(x_nchw, label1_nchw, params):
    """Pure-JAX f32 reference with PyTorch semantics (for validation)."""
    x = jnp.transpose(x_nchw, (0, 2, 3, 1)).astype(jnp.float32)
    lab = jnp.transpose(label1_nchw, (0, 2, 3, 1)).astype(jnp.float32)
    N, H, W, Cf = x.shape
    hin, win = lab.shape[1], lab.shape[2]
    ridx = (jnp.arange(H) * hin) // H
    cidx = (jnp.arange(W) * win) // W
    seg = lab[:, ridx, :, :][:, :, cidx, :]

    def conv(v, w, b):
        y = jax.lax.conv_general_dilated(
            v, w, (1, 1), 'SAME',
            dimension_numbers=('NHWC', 'HWIO', 'NHWC'))
        return y + b.reshape(1, 1, 1, -1)

    def lrelu(v):
        return jnp.where(v >= 0, v, NEG_SLOPE * v)

    mean = jnp.mean(x, axis=(1, 2), keepdims=True)
    var = jnp.mean((x - mean) ** 2, axis=(1, 2), keepdims=True)
    normalized = (x - mean) / jnp.sqrt(var + EPS)
    normalized = (normalized * params['in_weight'].reshape(1, 1, 1, -1)
                  + params['in_bias'].reshape(1, 1, 1, -1))

    actv = lrelu(conv(seg, params['w_shared'], params['b_shared']))
    gamma = conv(actv, params['w_gamma'], params['b_gamma'])
    beta = conv(actv, params['w_beta'], params['b_beta'])
    spade = normalized * (1.0 + gamma) + beta
    out = conv(lrelu(spade), params['w_last'], params['b_last'])
    return jnp.transpose(out, (0, 3, 1, 2))


if __name__ == "__main__":
    key = jax.random.PRNGKey(0)
    kx, kl, kp = jax.random.split(key, 3)

    N, ch1, nfilt = 2, 4, 8
    H = W = 16
    x = jax.random.normal(kx, (N, nfilt, H, W), jnp.float32)        # NCHW
    label1 = jax.random.normal(kl, (N, ch1, 8, 8), jnp.float32)     # low-res label map
    params = init_params(kp, ch1, nfilt)

    out = multi_spade1_forward(x, label1, params)
    out = jax.block_until_ready(out)

    ref = reference_forward(x, label1, params)
    # bf16 MXU operands (f32 accumulation) -> tolerance relaxed vs pure-f32.
    np.testing.assert_allclose(np.asarray(out), np.asarray(ref),
                               rtol=5e-2, atol=5e-2)
    print("KERNEL_OK")
</pallas_src>

<mosaic_0001>
module attributes {stable_mosaic.version = 11 : i64} {
  func.func @_multi_spade1_kernel(%arg0: i32, %arg1: memref<1x8x384xf32, #tpu.memory_space<vmem>>, %arg2: memref<1x8x448xbf16, #tpu.memory_space<vmem>>, %arg3: memref<1x384xf32, #tpu.memory_space<vmem>>, %arg4: memref<9x8x8xbf16, #tpu.memory_space<vmem>>, %arg5: memref<8x1xf32, #tpu.memory_space<vmem>>, %arg6: memref<9x16x8xbf16, #tpu.memory_space<vmem>>, %arg7: memref<16x1xf32, #tpu.memory_space<vmem>>, %arg8: memref<9x8x8xbf16, #tpu.memory_space<vmem>>, %arg9: memref<8x1xf32, #tpu.memory_space<vmem>>, %arg10: memref<8x1xf32, #tpu.memory_space<vmem>>, %arg11: memref<8x1xf32, #tpu.memory_space<vmem>>, %arg12: memref<1x8x384xf32, #tpu.memory_space<vmem>>, %arg13: memref<8x448xbf16, #tpu.memory_space<vmem>>) attributes {dimension_semantics = [#tpu.dimension_semantics<parallel>], iteration_bounds = array<i64: 2>, scalar_prefetch = 0 : i64, scratch_operands = 1 : i64, tpu.core_type = #tpu.core_type<tc>, window_params = [{transform_indices = @transform_0, window_bounds = array<i64: 1, 8, 384>}, {transform_indices = @transform_1, window_bounds = array<i64: 1, 8, 448>}, {pipeline_mode = #tpu.pipeline_mode<synchronous>, transform_indices = @transform_2, window_bounds = array<i64: 1, 384>}, {pipeline_mode = #tpu.pipeline_mode<synchronous>, transform_indices = @transform_3, window_bounds = array<i64: 9, 8, 8>}, {pipeline_mode = #tpu.pipeline_mode<synchronous>, transform_indices = @transform_4, window_bounds = array<i64: 8, 1>}, {pipeline_mode = #tpu.pipeline_mode<synchronous>, transform_indices = @transform_5, window_bounds = array<i64: 9, 16, 8>}, {pipeline_mode = #tpu.pipeline_mode<synchronous>, transform_indices = @transform_6, window_bounds = array<i64: 16, 1>}, {pipeline_mode = #tpu.pipeline_mode<synchronous>, transform_indices = @transform_7, window_bounds = array<i64: 9, 8, 8>}, {pipeline_mode = #tpu.pipeline_mode<synchronous>, transform_indices = @transform_8, window_bounds = array<i64: 8, 1>}, {pipeline_mode = #tpu.pipeline_mode<synchronous>, transform_indices = @transform_9, window_bounds = array<i64: 8, 1>}, {pipeline_mode = #tpu.pipeline_mode<synchronous>, transform_indices = @transform_10, window_bounds = array<i64: 8, 1>}, {transform_indices = @transform_11, window_bounds = array<i64: 1, 8, 384>}]} {
    %c0 = arith.constant 0 : index
    %c0_0 = arith.constant 0 : index
    %0 = vector.load %arg3[%c0, %c0_0] : memref<1x384xf32, #tpu.memory_space<vmem>>, vector<1x384xf32>
    %c0_1 = arith.constant 0 : index
    %c0_2 = arith.constant 0 : index
    %c0_3 = arith.constant 0 : index
    %1 = vector.load %arg1[%c0_1, %c0_2, %c0_3] : memref<1x8x384xf32, #tpu.memory_space<vmem>>, vector<1x8x384xf32>
    %2 = vector.shape_cast %1 : vector<1x8x384xf32> to vector<8x384xf32>
    %cst = arith.constant dense<0.000000e+00> : vector<8xf32>
    %3 = vector.multi_reduction <add>, %2, %cst [1] : vector<8x384xf32> to vector<8xf32>
    %4 = vector.shape_cast %3 : vector<8xf32> to vector<8x1xf32>
    %cst_4 = arith.constant 3.906250e-03 : f32
    %5 = vector.broadcast %cst_4 : f32 to vector<8x1xf32>
    %6 = arith.mulf %4, %5 : vector<8x1xf32>
    %7 = vector.broadcast %6 : vector<8x1xf32> to vector<8x384xf32>
    %8 = arith.subf %2, %7 : vector<8x384xf32>
    %9 = vector.broadcast %0 : vector<1x384xf32> to vector<8x384xf32>
    %10 = arith.mulf %8, %9 : vector<8x384xf32>
    %11 = arith.mulf %10, %10 : vector<8x384xf32>
    %cst_5 = arith.constant dense<0.000000e+00> : vector<8xf32>
    %12 = vector.multi_reduction <add>, %11, %cst_5 [1] : vector<8x384xf32> to vector<8xf32>
    %13 = vector.shape_cast %12 : vector<8xf32> to vector<8x1xf32>
    %cst_6 = arith.constant 3.906250e-03 : f32
    %14 = vector.broadcast %cst_6 : f32 to vector<8x1xf32>
    %15 = arith.mulf %13, %14 : vector<8x1xf32>
    %cst_7 = arith.constant 9.99999974E-6 : f32
    %16 = vector.broadcast %cst_7 : f32 to vector<8x1xf32>
    %17 = arith.addf %15, %16 : vector<8x1xf32>
    %18 = math.rsqrt %17 : vector<8x1xf32>
    %19 = vector.broadcast %18 : vector<8x1xf32> to vector<8x384xf32>
    %20 = arith.mulf %10, %19 : vector<8x384xf32>
    %c0_8 = arith.constant 0 : index
    %c0_9 = arith.constant 0 : index
    %21 = vector.load %arg10[%c0_8, %c0_9] : memref<8x1xf32, #tpu.memory_space<vmem>>, vector<8x1xf32>
    %22 = vector.broadcast %21 : vector<8x1xf32> to vector<8x384xf32>
    %23 = arith.mulf %20, %22 : vector<8x384xf32>
    %c0_10 = arith.constant 0 : index
    %c0_11 = arith.constant 0 : index
    %24 = vector.load %arg11[%c0_10, %c0_11] : memref<8x1xf32, #tpu.memory_space<vmem>>, vector<8x1xf32>
    %25 = vector.broadcast %24 : vector<8x1xf32> to vector<8x384xf32>
    %26 = arith.addf %23, %25 : vector<8x384xf32>
    %c0_12 = arith.constant 0 : index
    %c0_13 = arith.constant 0 : index
    %c0_14 = arith.constant 0 : index
    %27 = vector.load %arg4[%c0_12, %c0_13, %c0_14] : memref<9x8x8xbf16, #tpu.memory_space<vmem>>, vector<1x8x8xbf16>
    %28 = vector.shape_cast %27 : vector<1x8x8xbf16> to vector<8x8xbf16>
    %c0_15 = arith.constant 0 : index
    %c0_16 = arith.constant 0 : index
    %c7 = arith.constant 7 : index
    %29 = vector.load %arg2[%c0_15, %c0_16, %c7] : memref<1x8x448xbf16, #tpu.memory_space<vmem>>, vector<1x8x384xbf16>
    %30 = vector.shape_cast %29 : vector<1x8x384xbf16> to vector<8x384xbf16>
    %cst_17 = arith.constant dense<0.000000e+00> : vector<8x384xf32>
    %31 = tpu.matmul %28, %30, %cst_17 {dimension_numbers = #tpu.dot_dimension_numbers<[1], [0], [0], [1], [0, 0, 1, 1], [], []>} : vector<8x8xbf16>, vector<8x384xbf16>, vector<8x384xf32> -> vector<8x384xf32>
    %c1 = arith.constant 1 : index
    %c0_18 = arith.constant 0 : index
    %c0_19 = arith.constant 0 : index
    %32 = vector.load %arg4[%c1, %c0_18, %c0_19] : memref<9x8x8xbf16, #tpu.memory_space<vmem>>, vector<1x8x8xbf16>
    %33 = vector.shape_cast %32 : vector<1x8x8xbf16> to vector<8x8xbf16>
    %c0_20 = arith.constant 0 : index
    %c0_21 = arith.constant 0 : index
    %c8 = arith.constant 8 : index
    %34 = vector.load %arg2[%c0_20, %c0_21, %c8] : memref<1x8x448xbf16, #tpu.memory_space<vmem>>, vector<1x8x384xbf16>
    %35 = vector.shape_cast %34 : vector<1x8x384xbf16> to vector<8x384xbf16>
    %cst_22 = arith.constant dense<0.000000e+00> : vector<8x384xf32>
    %36 = tpu.matmul %33, %35, %cst_22 {dimension_numbers = #tpu.dot_dimension_numbers<[1], [0], [0], [1], [0, 0, 1, 1], [], []>} : vector<8x8xbf16>, vector<8x384xbf16>, vector<8x384xf32> -> vector<8x384xf32>
    %37 = arith.addf %31, %36 : vector<8x384xf32>
    %c2 = arith.constant 2 : index
    %c0_23 = arith.constant 0 : index
    %c0_24 = arith.constant 0 : index
    %38 = vector.load %arg4[%c2, %c0_23, %c0_24] : memref<9x8x8xbf16, #tpu.memory_space<vmem>>, vector<1x8x8xbf16>
    %39 = vector.shape_cast %38 : vector<1x8x8xbf16> to vector<8x8xbf16>
    %c0_25 = arith.constant 0 : index
    %c0_26 = arith.constant 0 : index
    %c9 = arith.constant 9 : index
    %40 = vector.load %arg2[%c0_25, %c0_26, %c9] : memref<1x8x448xbf16, #tpu.memory_space<vmem>>, vector<1x8x384xbf16>
    %41 = vector.shape_cast %40 : vector<1x8x384xbf16> to vector<8x384xbf16>
    %cst_27 = arith.constant dense<0.000000e+00> : vector<8x384xf32>
    %42 = tpu.matmul %39, %41, %cst_27 {dimension_numbers = #tpu.dot_dimension_numbers<[1], [0], [0], [1], [0, 0, 1, 1], [], []>} : vector<8x8xbf16>, vector<8x384xbf16>, vector<8x384xf32> -> vector<8x384xf32>
    %43 = arith.addf %37, %42 : vector<8x384xf32>
    %c3 = arith.constant 3 : index
    %c0_28 = arith.constant 0 : index
    %c0_29 = arith.constant 0 : index
    %44 = vector.load %arg4[%c3, %c0_28, %c0_29] : memref<9x8x8xbf16, #tpu.memory_space<vmem>>, vector<1x8x8xbf16>
    %45 = vector.shape_cast %44 : vector<1x8x8xbf16> to vector<8x8xbf16>
    %c0_30 = arith.constant 0 : index
    %c0_31 = arith.constant 0 : index
    %c31 = arith.constant 31 : index
    %46 = vector.load %arg2[%c0_30, %c0_31, %c31] : memref<1x8x448xbf16, #tpu.memory_space<vmem>>, vector<1x8x384xbf16>
    %47 = vector.shape_cast %46 : vector<1x8x384xbf16> to vector<8x384xbf16>
    %cst_32 = arith.constant dense<0.000000e+00> : vector<8x384xf32>
    %48 = tpu.matmul %45, %47, %cst_32 {dimension_numbers = #tpu.dot_dimension_numbers<[1], [0], [0], [1], [0, 0, 1, 1], [], []>} : vector<8x8xbf16>, vector<8x384xbf16>, vector<8x384xf32> -> vector<8x384xf32>
    %49 = arith.addf %43, %48 : vector<8x384xf32>
    %c4 = arith.constant 4 : index
    %c0_33 = arith.constant 0 : index
    %c0_34 = arith.constant 0 : index
    %50 = vector.load %arg4[%c4, %c0_33, %c0_34] : memref<9x8x8xbf16, #tpu.memory_space<vmem>>, vector<1x8x8xbf16>
    %51 = vector.shape_cast %50 : vector<1x8x8xbf16> to vector<8x8xbf16>
    %c0_35 = arith.constant 0 : index
    %c0_36 = arith.constant 0 : index
    %c32 = arith.constant 32 : index
    %52 = vector.load %arg2[%c0_35, %c0_36, %c32] : memref<1x8x448xbf16, #tpu.memory_space<vmem>>, vector<1x8x384xbf16>
    %53 = vector.shape_cast %52 : vector<1x8x384xbf16> to vector<8x384xbf16>
    %cst_37 = arith.constant dense<0.000000e+00> : vector<8x384xf32>
    %54 = tpu.matmul %51, %53, %cst_37 {dimension_numbers = #tpu.dot_dimension_numbers<[1], [0], [0], [1], [0, 0, 1, 1], [], []>} : vector<8x8xbf16>, vector<8x384xbf16>, vector<8x384xf32> -> vector<8x384xf32>
    %55 = arith.addf %49, %54 : vector<8x384xf32>
    %c5 = arith.constant 5 : index
    %c0_38 = arith.constant 0 : index
    %c0_39 = arith.constant 0 : index
    %56 = vector.load %arg4[%c5, %c0_38, %c0_39] : memref<9x8x8xbf16, #tpu.memory_space<vmem>>, vector<1x8x8xbf16>
    %57 = vector.shape_cast %56 : vector<1x8x8xbf16> to vector<8x8xbf16>
    %c0_40 = arith.constant 0 : index
    %c0_41 = arith.constant 0 : index
    %c33 = arith.constant 33 : index
    %58 = vector.load %arg2[%c0_40, %c0_41, %c33] : memref<1x8x448xbf16, #tpu.memory_space<vmem>>, vector<1x8x384xbf16>
    %59 = vector.shape_cast %58 : vector<1x8x384xbf16> to vector<8x384xbf16>
    %cst_42 = arith.constant dense<0.000000e+00> : vector<8x384xf32>
    %60 = tpu.matmul %57, %59, %cst_42 {dimension_numbers = #tpu.dot_dimension_numbers<[1], [0], [0], [1], [0, 0, 1, 1], [], []>} : vector<8x8xbf16>, vector<8x384xbf16>, vector<8x384xf32> -> vector<8x384xf32>
    %61 = arith.addf %55, %60 : vector<8x384xf32>
    %c6 = arith.constant 6 : index
    %c0_43 = arith.constant 0 : index
    %c0_44 = arith.constant 0 : index
    %62 = vector.load %arg4[%c6, %c0_43, %c0_44] : memref<9x8x8xbf16, #tpu.memory_space<vmem>>, vector<1x8x8xbf16>
    %63 = vector.shape_cast %62 : vector<1x8x8xbf16> to vector<8x8xbf16>
    %c0_45 = arith.constant 0 : index
    %c0_46 = arith.constant 0 : index
    %c55 = arith.constant 55 : index
    %64 = vector.load %arg2[%c0_45, %c0_46, %c55] : memref<1x8x448xbf16, #tpu.memory_space<vmem>>, vector<1x8x384xbf16>
    %65 = vector.shape_cast %64 : vector<1x8x384xbf16> to vector<8x384xbf16>
    %cst_47 = arith.constant dense<0.000000e+00> : vector<8x384xf32>
    %66 = tpu.matmul %63, %65, %cst_47 {dimension_numbers = #tpu.dot_dimension_numbers<[1], [0], [0], [1], [0, 0, 1, 1], [], []>} : vector<8x8xbf16>, vector<8x384xbf16>, vector<8x384xf32> -> vector<8x384xf32>
    %67 = arith.addf %61, %66 : vector<8x384xf32>
    %c7_48 = arith.constant 7 : index
    %c0_49 = arith.constant 0 : index
    %c0_50 = arith.constant 0 : index
    %68 = vector.load %arg4[%c7_48, %c0_49, %c0_50] : memref<9x8x8xbf16, #tpu.memory_space<vmem>>, vector<1x8x8xbf16>
    %69 = vector.shape_cast %68 : vector<1x8x8xbf16> to vector<8x8xbf16>
    %c0_51 = arith.constant 0 : index
    %c0_52 = arith.constant 0 : index
    %c56 = arith.constant 56 : index
    %70 = vector.load %arg2[%c0_51, %c0_52, %c56] : memref<1x8x448xbf16, #tpu.memory_space<vmem>>, vector<1x8x384xbf16>
    %71 = vector.shape_cast %70 : vector<1x8x384xbf16> to vector<8x384xbf16>
    %cst_53 = arith.constant dense<0.000000e+00> : vector<8x384xf32>
    %72 = tpu.matmul %69, %71, %cst_53 {dimension_numbers = #tpu.dot_dimension_numbers<[1], [0], [0], [1], [0, 0, 1, 1], [], []>} : vector<8x8xbf16>, vector<8x384xbf16>, vector<8x384xf32> -> vector<8x384xf32>
    %73 = arith.addf %67, %72 : vector<8x384xf32>
    %c8_54 = arith.constant 8 : index
    %c0_55 = arith.constant 0 : index
    %c0_56 = arith.constant 0 : index
    %74 = vector.load %arg4[%c8_54, %c0_55, %c0_56] : memref<9x8x8xbf16, #tpu.memory_space<vmem>>, vector<1x8x8xbf16>
    %75 = vector.shape_cast %74 : vector<1x8x8xbf16> to vector<8x8xbf16>
    %c0_57 = arith.constant 0 : index
    %c0_58 = arith.constant 0 : index
    %c57 = arith.constant 57 : index
    %76 = vector.load %arg2[%c0_57, %c0_58, %c57] : memref<1x8x448xbf16, #tpu.memory_space<vmem>>, vector<1x8x384xbf16>
    %77 = vector.shape_cast %76 : vector<1x8x384xbf16> to vector<8x384xbf16>
    %cst_59 = arith.constant dense<0.000000e+00> : vector<8x384xf32>
    %78 = tpu.matmul %75, %77, %cst_59 {dimension_numbers = #tpu.dot_dimension_numbers<[1], [0], [0], [1], [0, 0, 1, 1], [], []>} : vector<8x8xbf16>, vector<8x384xbf16>, vector<8x384xf32> -> vector<8x384xf32>
    %79 = arith.addf %73, %78 : vector<8x384xf32>
    %c0_60 = arith.constant 0 : index
    %c0_61 = arith.constant 0 : index
    %80 = vector.load %arg5[%c0_60, %c0_61] : memref<8x1xf32, #tpu.memory_space<vmem>>, vector<8x1xf32>
    %81 = vector.broadcast %80 : vector<8x1xf32> to vector<8x384xf32>
    %82 = arith.addf %79, %81 : vector<8x384xf32>
    %cst_62 = arith.constant 0.000000e+00 : f32
    %83 = vector.broadcast %cst_62 : f32 to vector<8x384xf32>
    %84 = arith.cmpf oge, %82, %83 : vector<8x384xf32>
    %cst_63 = arith.constant 2.000000e-01 : f32
    %85 = vector.broadcast %cst_63 : f32 to vector<8x384xf32>
    %86 = arith.mulf %85, %82 : vector<8x384xf32>
    %87 = arith.select %84, %82, %86 : vector<8x384xi1>, vector<8x384xf32>
    %cst_64 = arith.constant 0.000000e+00 : bf16
    %88 = vector.broadcast %cst_64 : bf16 to vector<8x32xbf16>
    %c0_65 = arith.constant 0 : index
    %c0_66 = arith.constant 0 : index
    %89 = vector.load %arg13[%c0_65, %c0_66] : memref<8x448xbf16, #tpu.memory_space<vmem>>, vector<8x32xbf16>
    tpu.vector_store %arg13[%c0_65, %c0_66], %88 {strides = array<i32>} : memref<8x448xbf16, #tpu.memory_space<vmem>>, vector<8x32xbf16>,
    %cst_67 = arith.constant 0.000000e+00 : bf16
    %90 = vector.broadcast %cst_67 : bf16 to vector<8x32xbf16>
    %c0_68 = arith.constant 0 : index
    %c416 = arith.constant 416 : index
    %91 = vector.load %arg13[%c0_68, %c416] : memref<8x448xbf16, #tpu.memory_space<vmem>>, vector<8x32xbf16>
    tpu.vector_store %arg13[%c0_68, %c416], %90 {strides = array<i32>} : memref<8x448xbf16, #tpu.memory_space<vmem>>, vector<8x32xbf16>,
    %92 = vector.broadcast %0 : vector<1x384xf32> to vector<8x384xf32>
    %93 = arith.mulf %87, %92 : vector<8x384xf32>
    %94 = arith.truncf %93 : vector<8x384xf32> to vector<8x384xbf16>
    %c0_69 = arith.constant 0 : index
    %c32_70 = arith.constant 32 : index
    %95 = vector.load %arg13[%c0_69, %c32_70] : memref<8x448xbf16, #tpu.memory_space<vmem>>, vector<8x384xbf16>
    tpu.vector_store %arg13[%c0_69, %c32_70], %94 {strides = array<i32>} : memref<8x448xbf16, #tpu.memory_space<vmem>>, vector<8x384xbf16>,
    %c0_71 = arith.constant 0 : index
    %c0_72 = arith.constant 0 : index
    %c0_73 = arith.constant 0 : index
    %96 = vector.load %arg6[%c0_71, %c0_72, %c0_73] : memref<9x16x8xbf16, #tpu.memory_space<vmem>>, vector<1x16x8xbf16>
    %97 = vector.shape_cast %96 : vector<1x16x8xbf16> to vector<16x8xbf16>
    %c0_74 = arith.constant 0 : index
    %c7_75 = arith.constant 7 : index
    %98 = vector.load %arg13[%c0_74, %c7_75] : memref<8x448xbf16, #tpu.memory_space<vmem>>, vector<8x384xbf16>
    %cst_76 = arith.constant dense<0.000000e+00> : vector<16x384xf32>
    %99 = tpu.matmul %97, %98, %cst_76 {dimension_numbers = #tpu.dot_dimension_numbers<[1], [0], [0], [1], [0, 0, 1, 1], [], []>} : vector<16x8xbf16>, vector<8x384xbf16>, vector<16x384xf32> -> vector<16x384xf32>
    %c1_77 = arith.constant 1 : index
    %c0_78 = arith.constant 0 : index
    %c0_79 = arith.constant 0 : index
    %100 = vector.load %arg6[%c1_77, %c0_78, %c0_79] : memref<9x16x8xbf16, #tpu.memory_space<vmem>>, vector<1x16x8xbf16>
    %101 = vector.shape_cast %100 : vector<1x16x8xbf16> to vector<16x8xbf16>
    %c0_80 = arith.constant 0 : index
    %c8_81 = arith.constant 8 : index
    %102 = vector.load %arg13[%c0_80, %c8_81] : memref<8x448xbf16, #tpu.memory_space<vmem>>, vector<8x384xbf16>
    %cst_82 = arith.constant dense<0.000000e+00> : vector<16x384xf32>
    %103 = tpu.matmul %101, %102, %cst_82 {dimension_numbers = #tpu.dot_dimension_numbers<[1], [0], [0], [1], [0, 0, 1, 1], [], []>} : vector<16x8xbf16>, vector<8x384xbf16>, vector<16x384xf32> -> vector<16x384xf32>
    %104 = arith.addf %99, %103 : vector<16x384xf32>
    %c2_83 = arith.constant 2 : index
    %c0_84 = arith.constant 0 : index
    %c0_85 = arith.constant 0 : index
    %105 = vector.load %arg6[%c2_83, %c0_84, %c0_85] : memref<9x16x8xbf16, #tpu.memory_space<vmem>>, vector<1x16x8xbf16>
    %106 = vector.shape_cast %105 : vector<1x16x8xbf16> to vector<16x8xbf16>
    %c0_86 = arith.constant 0 : index
    %c9_87 = arith.constant 9 : index
    %107 = vector.load %arg13[%c0_86, %c9_87] : memref<8x448xbf16, #tpu.memory_space<vmem>>, vector<8x384xbf16>
    %cst_88 = arith.constant dense<0.000000e+00> : vector<16x384xf32>
    %108 = tpu.matmul %106, %107, %cst_88 {dimension_numbers = #tpu.dot_dimension_numbers<[1], [0], [0], [1], [0, 0, 1, 1], [], []>} : vector<16x8xbf16>, vector<8x384xbf16>, vector<16x384xf32> -> vector<16x384xf32>
    %109 = arith.addf %104, %108 : vector<16x384xf32>
    %c3_89 = arith.constant 3 : index
    %c0_90 = arith.constant 0 : index
    %c0_91 = arith.constant 0 : index
    %110 = vector.load %arg6[%c3_89, %c0_90, %c0_91] : memref<9x16x8xbf16, #tpu.memory_space<vmem>>, vector<1x16x8xbf16>
    %111 = vector.shape_cast %110 : vector<1x16x8xbf16> to vector<16x8xbf16>
    %c0_92 = arith.constant 0 : index
    %c31_93 = arith.constant 31 : index
    %112 = vector.load %arg13[%c0_92, %c31_93] : memref<8x448xbf16, #tpu.memory_space<vmem>>, vector<8x384xbf16>
    %cst_94 = arith.constant dense<0.000000e+00> : vector<16x384xf32>
    %113 = tpu.matmul %111, %112, %cst_94 {dimension_numbers = #tpu.dot_dimension_numbers<[1], [0], [0], [1], [0, 0, 1, 1], [], []>} : vector<16x8xbf16>, vector<8x384xbf16>, vector<16x384xf32> -> vector<16x384xf32>
    %114 = arith.addf %109, %113 : vector<16x384xf32>
    %c4_95 = arith.constant 4 : index
    %c0_96 = arith.constant 0 : index
    %c0_97 = arith.constant 0 : index
    %115 = vector.load %arg6[%c4_95, %c0_96, %c0_97] : memref<9x16x8xbf16, #tpu.memory_space<vmem>>, vector<1x16x8xbf16>
    %116 = vector.shape_cast %115 : vector<1x16x8xbf16> to vector<16x8xbf16>
    %c0_98 = arith.constant 0 : index
    %c32_99 = arith.constant 32 : index
    %117 = vector.load %arg13[%c0_98, %c32_99] : memref<8x448xbf16, #tpu.memory_space<vmem>>, vector<8x384xbf16>
    %cst_100 = arith.constant dense<0.000000e+00> : vector<16x384xf32>
    %118 = tpu.matmul %116, %117, %cst_100 {dimension_numbers = #tpu.dot_dimension_numbers<[1], [0], [0], [1], [0, 0, 1, 1], [], []>} : vector<16x8xbf16>, vector<8x384xbf16>, vector<16x384xf32> -> vector<16x384xf32>
    %119 = arith.addf %114, %118 : vector<16x384xf32>
    %c5_101 = arith.constant 5 : index
    %c0_102 = arith.constant 0 : index
    %c0_103 = arith.constant 0 : index
    %120 = vector.load %arg6[%c5_101, %c0_102, %c0_103] : memref<9x16x8xbf16, #tpu.memory_space<vmem>>, vector<1x16x8xbf16>
    %121 = vector.shape_cast %120 : vector<1x16x8xbf16> to vector<16x8xbf16>
    %c0_104 = arith.constant 0 : index
    %c33_105 = arith.constant 33 : index
    %122 = vector.load %arg13[%c0_104, %c33_105] : memref<8x448xbf16, #tpu.memory_space<vmem>>, vector<8x384xbf16>
    %cst_106 = arith.constant dense<0.000000e+00> : vector<16x384xf32>
    %123 = tpu.matmul %121, %122, %cst_106 {dimension_numbers = #tpu.dot_dimension_numbers<[1], [0], [0], [1], [0, 0, 1, 1], [], []>} : vector<16x8xbf16>, vector<8x384xbf16>, vector<16x384xf32> -> vector<16x384xf32>
    %124 = arith.addf %119, %123 : vector<16x384xf32>
    %c6_107 = arith.constant 6 : index
    %c0_108 = arith.constant 0 : index
    %c0_109 = arith.constant 0 : index
    %125 = vector.load %arg6[%c6_107, %c0_108, %c0_109] : memref<9x16x8xbf16, #tpu.memory_space<vmem>>, vector<1x16x8xbf16>
    %126 = vector.shape_cast %125 : vector<1x16x8xbf16> to vector<16x8xbf16>
    %c0_110 = arith.constant 0 : index
    %c55_111 = arith.constant 55 : index
    %127 = vector.load %arg13[%c0_110, %c55_111] : memref<8x448xbf16, #tpu.memory_space<vmem>>, vector<8x384xbf16>
    %cst_112 = arith.constant dense<0.000000e+00> : vector<16x384xf32>
    %128 = tpu.matmul %126, %127, %cst_112 {dimension_numbers = #tpu.dot_dimension_numbers<[1], [0], [0], [1], [0, 0, 1, 1], [], []>} : vector<16x8xbf16>, vector<8x384xbf16>, vector<16x384xf32> -> vector<16x384xf32>
    %129 = arith.addf %124, %128 : vector<16x384xf32>
    %c7_113 = arith.constant 7 : index
    %c0_114 = arith.constant 0 : index
    %c0_115 = arith.constant 0 : index
    %130 = vector.load %arg6[%c7_113, %c0_114, %c0_115] : memref<9x16x8xbf16, #tpu.memory_space<vmem>>, vector<1x16x8xbf16>
    %131 = vector.shape_cast %130 : vector<1x16x8xbf16> to vector<16x8xbf16>
    %c0_116 = arith.constant 0 : index
    %c56_117 = arith.constant 56 : index
    %132 = vector.load %arg13[%c0_116, %c56_117] : memref<8x448xbf16, #tpu.memory_space<vmem>>, vector<8x384xbf16>
    %cst_118 = arith.constant dense<0.000000e+00> : vector<16x384xf32>
    %133 = tpu.matmul %131, %132, %cst_118 {dimension_numbers = #tpu.dot_dimension_numbers<[1], [0], [0], [1], [0, 0, 1, 1], [], []>} : vector<16x8xbf16>, vector<8x384xbf16>, vector<16x384xf32> -> vector<16x384xf32>
    %134 = arith.addf %129, %133 : vector<16x384xf32>
    %c8_119 = arith.constant 8 : index
    %c0_120 = arith.constant 0 : index
    %c0_121 = arith.constant 0 : index
    %135 = vector.load %arg6[%c8_119, %c0_120, %c0_121] : memref<9x16x8xbf16, #tpu.memory_space<vmem>>, vector<1x16x8xbf16>
    %136 = vector.shape_cast %135 : vector<1x16x8xbf16> to vector<16x8xbf16>
    %c0_122 = arith.constant 0 : index
    %c57_123 = arith.constant 57 : index
    %137 = vector.load %arg13[%c0_122, %c57_123] : memref<8x448xbf16, #tpu.memory_space<vmem>>, vector<8x384xbf16>
    %cst_124 = arith.constant dense<0.000000e+00> : vector<16x384xf32>
    %138 = tpu.matmul %136, %137, %cst_124 {dimension_numbers = #tpu.dot_dimension_numbers<[1], [0], [0], [1], [0, 0, 1, 1], [], []>} : vector<16x8xbf16>, vector<8x384xbf16>, vector<16x384xf32> -> vector<16x384xf32>
    %139 = arith.addf %134, %138 : vector<16x384xf32>
    %c0_125 = arith.constant 0 : index
    %c0_126 = arith.constant 0 : index
    %140 = vector.load %arg7[%c0_125, %c0_126] : memref<16x1xf32, #tpu.memory_space<vmem>>, vector<16x1xf32>
    %141 = vector.broadcast %140 : vector<16x1xf32> to vector<16x384xf32>
    %142 = arith.addf %139, %141 : vector<16x384xf32>
    %143 = vector.extract_strided_slice %142 {offsets = [0, 0], sizes = [8, 384], strides = [1, 1]} : vector<16x384xf32> to vector<8x384xf32>
    %144 = vector.extract_strided_slice %142 {offsets = [8, 0], sizes = [8, 384], strides = [1, 1]} : vector<16x384xf32> to vector<8x384xf32>
    %cst_127 = arith.constant 1.000000e+00 : f32
    %145 = vector.broadcast %cst_127 : f32 to vector<8x384xf32>
    %146 = arith.addf %145, %143 : vector<8x384xf32>
    %147 = arith.mulf %26, %146 : vector<8x384xf32>
    %148 = arith.addf %147, %144 : vector<8x384xf32>
    %cst_128 = arith.constant 0.000000e+00 : f32
    %149 = vector.broadcast %cst_128 : f32 to vector<8x384xf32>
    %150 = arith.cmpf oge, %148, %149 : vector<8x384xf32>
    %cst_129 = arith.constant 2.000000e-01 : f32
    %151 = vector.broadcast %cst_129 : f32 to vector<8x384xf32>
    %152 = arith.mulf %151, %148 : vector<8x384xf32>
    %153 = arith.select %150, %148, %152 : vector<8x384xi1>, vector<8x384xf32>
    %154 = vector.broadcast %0 : vector<1x384xf32> to vector<8x384xf32>
    %155 = arith.mulf %153, %154 : vector<8x384xf32>
    %156 = arith.truncf %155 : vector<8x384xf32> to vector<8x384xbf16>
    %c0_130 = arith.constant 0 : index
    %c32_131 = arith.constant 32 : index
    %157 = vector.load %arg13[%c0_130, %c32_131] : memref<8x448xbf16, #tpu.memory_space<vmem>>, vector<8x384xbf16>
    tpu.vector_store %arg13[%c0_130, %c32_131], %156 {strides = array<i32>} : memref<8x448xbf16, #tpu.memory_space<vmem>>, vector<8x384xbf16>,
    %c0_132 = arith.constant 0 : index
    %c0_133 = arith.constant 0 : index
    %c0_134 = arith.constant 0 : index
    %158 = vector.load %arg8[%c0_132, %c0_133, %c0_134] : memref<9x8x8xbf16, #tpu.memory_space<vmem>>, vector<1x8x8xbf16>
    %159 = vector.shape_cast %158 : vector<1x8x8xbf16> to vector<8x8xbf16>
    %c0_135 = arith.constant 0 : index
    %c7_136 = arith.constant 7 : index
    %160 = vector.load %arg13[%c0_135, %c7_136] : memref<8x448xbf16, #tpu.memory_space<vmem>>, vector<8x384xbf16>
    %cst_137 = arith.constant dense<0.000000e+00> : vector<8x384xf32>
    %161 = tpu.matmul %159, %160, %cst_137 {dimension_numbers = #tpu.dot_dimension_numbers<[1], [0], [0], [1], [0, 0, 1, 1], [], []>} : vector<8x8xbf16>, vector<8x384xbf16>, vector<8x384xf32> -> vector<8x384xf32>
    %c1_138 = arith.constant 1 : index
    %c0_139 = arith.constant 0 : index
    %c0_140 = arith.constant 0 : index
    %162 = vector.load %arg8[%c1_138, %c0_139, %c0_140] : memref<9x8x8xbf16, #tpu.memory_space<vmem>>, vector<1x8x8xbf16>
    %163 = vector.shape_cast %162 : vector<1x8x8xbf16> to vector<8x8xbf16>
    %c0_141 = arith.constant 0 : index
    %c8_142 = arith.constant 8 : index
    %164 = vector.load %arg13[%c0_141, %c8_142] : memref<8x448xbf16, #tpu.memory_space<vmem>>, vector<8x384xbf16>
    %cst_143 = arith.constant dense<0.000000e+00> : vector<8x384xf32>
    %165 = tpu.matmul %163, %164, %cst_143 {dimension_numbers = #tpu.dot_dimension_numbers<[1], [0], [0], [1], [0, 0, 1, 1], [], []>} : vector<8x8xbf16>, vector<8x384xbf16>, vector<8x384xf32> -> vector<8x384xf32>
    %166 = arith.addf %161, %165 : vector<8x384xf32>
    %c2_144 = arith.constant 2 : index
    %c0_145 = arith.constant 0 : index
    %c0_146 = arith.constant 0 : index
    %167 = vector.load %arg8[%c2_144, %c0_145, %c0_146] : memref<9x8x8xbf16, #tpu.memory_space<vmem>>, vector<1x8x8xbf16>
    %168 = vector.shape_cast %167 : vector<1x8x8xbf16> to vector<8x8xbf16>
    %c0_147 = arith.constant 0 : index
    %c9_148 = arith.constant 9 : index
    %169 = vector.load %arg13[%c0_147, %c9_148] : memref<8x448xbf16, #tpu.memory_space<vmem>>, vector<8x384xbf16>
    %cst_149 = arith.constant dense<0.000000e+00> : vector<8x384xf32>
    %170 = tpu.matmul %168, %169, %cst_149 {dimension_numbers = #tpu.dot_dimension_numbers<[1], [0], [0], [1], [0, 0, 1, 1], [], []>} : vector<8x8xbf16>, vector<8x384xbf16>, vector<8x384xf32> -> vector<8x384xf32>
    %171 = arith.addf %166, %170 : vector<8x384xf32>
    %c3_150 = arith.constant 3 : index
    %c0_151 = arith.constant 0 : index
    %c0_152 = arith.constant 0 : index
    %172 = vector.load %arg8[%c3_150, %c0_151, %c0_152] : memref<9x8x8xbf16, #tpu.memory_space<vmem>>, vector<1x8x8xbf16>
    %173 = vector.shape_cast %172 : vector<1x8x8xbf16> to vector<8x8xbf16>
    %c0_153 = arith.constant 0 : index
    %c31_154 = arith.constant 31 : index
    %174 = vector.load %arg13[%c0_153, %c31_154] : memref<8x448xbf16, #tpu.memory_space<vmem>>, vector<8x384xbf16>
    %cst_155 = arith.constant dense<0.000000e+00> : vector<8x384xf32>
    %175 = tpu.matmul %173, %174, %cst_155 {dimension_numbers = #tpu.dot_dimension_numbers<[1], [0], [0], [1], [0, 0, 1, 1], [], []>} : vector<8x8xbf16>, vector<8x384xbf16>, vector<8x384xf32> -> vector<8x384xf32>
    %176 = arith.addf %171, %175 : vector<8x384xf32>
    %c4_156 = arith.constant 4 : index
    %c0_157 = arith.constant 0 : index
    %c0_158 = arith.constant 0 : index
    %177 = vector.load %arg8[%c4_156, %c0_157, %c0_158] : memref<9x8x8xbf16, #tpu.memory_space<vmem>>, vector<1x8x8xbf16>
    %178 = vector.shape_cast %177 : vector<1x8x8xbf16> to vector<8x8xbf16>
    %c0_159 = arith.constant 0 : index
    %c32_160 = arith.constant 32 : index
    %179 = vector.load %arg13[%c0_159, %c32_160] : memref<8x448xbf16, #tpu.memory_space<vmem>>, vector<8x384xbf16>
    %cst_161 = arith.constant dense<0.000000e+00> : vector<8x384xf32>
    %180 = tpu.matmul %178, %179, %cst_161 {dimension_numbers = #tpu.dot_dimension_numbers<[1], [0], [0], [1], [0, 0, 1, 1], [], []>} : vector<8x8xbf16>, vector<8x384xbf16>, vector<8x384xf32> -> vector<8x384xf32>
    %181 = arith.addf %176, %180 : vector<8x384xf32>
    %c5_162 = arith.constant 5 : index
    %c0_163 = arith.constant 0 : index
    %c0_164 = arith.constant 0 : index
    %182 = vector.load %arg8[%c5_162, %c0_163, %c0_164] : memref<9x8x8xbf16, #tpu.memory_space<vmem>>, vector<1x8x8xbf16>
    %183 = vector.shape_cast %182 : vector<1x8x8xbf16> to vector<8x8xbf16>
    %c0_165 = arith.constant 0 : index
    %c33_166 = arith.constant 33 : index
    %184 = vector.load %arg13[%c0_165, %c33_166] : memref<8x448xbf16, #tpu.memory_space<vmem>>, vector<8x384xbf16>
    %cst_167 = arith.constant dense<0.000000e+00> : vector<8x384xf32>
    %185 = tpu.matmul %183, %184, %cst_167 {dimension_numbers = #tpu.dot_dimension_numbers<[1], [0], [0], [1], [0, 0, 1, 1], [], []>} : vector<8x8xbf16>, vector<8x384xbf16>, vector<8x384xf32> -> vector<8x384xf32>
    %186 = arith.addf %181, %185 : vector<8x384xf32>
    %c6_168 = arith.constant 6 : index
    %c0_169 = arith.constant 0 : index
    %c0_170 = arith.constant 0 : index
    %187 = vector.load %arg8[%c6_168, %c0_169, %c0_170] : memref<9x8x8xbf16, #tpu.memory_space<vmem>>, vector<1x8x8xbf16>
    %188 = vector.shape_cast %187 : vector<1x8x8xbf16> to vector<8x8xbf16>
    %c0_171 = arith.constant 0 : index
    %c55_172 = arith.constant 55 : index
    %189 = vector.load %arg13[%c0_171, %c55_172] : memref<8x448xbf16, #tpu.memory_space<vmem>>, vector<8x384xbf16>
    %cst_173 = arith.constant dense<0.000000e+00> : vector<8x384xf32>
    %190 = tpu.matmul %188, %189, %cst_173 {dimension_numbers = #tpu.dot_dimension_numbers<[1], [0], [0], [1], [0, 0, 1, 1], [], []>} : vector<8x8xbf16>, vector<8x384xbf16>, vector<8x384xf32> -> vector<8x384xf32>
    %191 = arith.addf %186, %190 : vector<8x384xf32>
    %c7_174 = arith.constant 7 : index
    %c0_175 = arith.constant 0 : index
    %c0_176 = arith.constant 0 : index
    %192 = vector.load %arg8[%c7_174, %c0_175, %c0_176] : memref<9x8x8xbf16, #tpu.memory_space<vmem>>, vector<1x8x8xbf16>
    %193 = vector.shape_cast %192 : vector<1x8x8xbf16> to vector<8x8xbf16>
    %c0_177 = arith.constant 0 : index
    %c56_178 = arith.constant 56 : index
    %194 = vector.load %arg13[%c0_177, %c56_178] : memref<8x448xbf16, #tpu.memory_space<vmem>>, vector<8x384xbf16>
    %cst_179 = arith.constant dense<0.000000e+00> : vector<8x384xf32>
    %195 = tpu.matmul %193, %194, %cst_179 {dimension_numbers = #tpu.dot_dimension_numbers<[1], [0], [0], [1], [0, 0, 1, 1], [], []>} : vector<8x8xbf16>, vector<8x384xbf16>, vector<8x384xf32> -> vector<8x384xf32>
    %196 = arith.addf %191, %195 : vector<8x384xf32>
    %c8_180 = arith.constant 8 : index
    %c0_181 = arith.constant 0 : index
    %c0_182 = arith.constant 0 : index
    %197 = vector.load %arg8[%c8_180, %c0_181, %c0_182] : memref<9x8x8xbf16, #tpu.memory_space<vmem>>, vector<1x8x8xbf16>
    %198 = vector.shape_cast %197 : vector<1x8x8xbf16> to vector<8x8xbf16>
    %c0_183 = arith.constant 0 : index
    %c57_184 = arith.constant 57 : index
    %199 = vector.load %arg13[%c0_183, %c57_184] : memref<8x448xbf16, #tpu.memory_space<vmem>>, vector<8x384xbf16>
    %cst_185 = arith.constant dense<0.000000e+00> : vector<8x384xf32>
    %200 = tpu.matmul %198, %199, %cst_185 {dimension_numbers = #tpu.dot_dimension_numbers<[1], [0], [0], [1], [0, 0, 1, 1], [], []>} : vector<8x8xbf16>, vector<8x384xbf16>, vector<8x384xf32> -> vector<8x384xf32>
    %201 = arith.addf %196, %200 : vector<8x384xf32>
    %c0_186 = arith.constant 0 : index
    %c0_187 = arith.constant 0 : index
    %202 = vector.load %arg9[%c0_186, %c0_187] : memref<8x1xf32, #tpu.memory_space<vmem>>, vector<8x1xf32>
    %203 = vector.broadcast %202 : vector<8x1xf32> to vector<8x384xf32>
    %204 = arith.addf %201, %203 : vector<8x384xf32>
    %c0_188 = arith.constant 0 : index
    %c0_189 = arith.constant 0 : index
    %c0_190 = arith.constant 0 : index
    %205 = vector.load %arg12[%c0_188, %c0_189, %c0_190] : memref<1x8x384xf32, #tpu.memory_space<vmem>>, vector<1x8x384xf32>
    %206 = vector.shape_cast %205 : vector<1x8x384xf32> to vector<8x384xf32>
    %207 = vector.shape_cast %204 : vector<8x384xf32> to vector<1x8x384xf32>
    tpu.vector_store %arg12[%c0_188, %c0_189, %c0_190], %207 {strides = array<i32>} : memref<1x8x384xf32, #tpu.memory_space<vmem>>, vector<1x8x384xf32>,
    return
  }
  func.func @transform_0(%arg0: i32) -> (i32, i32, i32) {
    %c0_i32 = arith.constant 0 : i32
    %c0_i32_0 = arith.constant 0 : i32
    %c0_i32_1 = arith.constant 0 : i32
    return %arg0, %c0_i32, %c0_i32_0 : i32, i32, i32
  }
  func.func @transform_1(%arg0: i32) -> (i32, i32, i32) {
    %c0_i32 = arith.constant 0 : i32
    %c0_i32_0 = arith.constant 0 : i32
    %c0_i32_1 = arith.constant 0 : i32
    return %arg0, %c0_i32, %c0_i32_0 : i32, i32, i32
  }
  func.func @transform_2(%arg0: i32) -> (i32, i32) {
    %c0_i32 = arith.constant 0 : i32
    %c0_i32_0 = arith.constant 0 : i32
    %c0_i32_1 = arith.constant 0 : i32
    return %c0_i32, %c0_i32_0 : i32, i32
  }
  func.func @transform_3(%arg0: i32) -> (i32, i32, i32) {
    %c0_i32 = arith.constant 0 : i32
    %c0_i32_0 = arith.constant 0 : i32
    %c0_i32_1 = arith.constant 0 : i32
    %c0_i32_2 = arith.constant 0 : i32
    return %c0_i32, %c0_i32_0, %c0_i32_1 : i32, i32, i32
  }
  func.func @transform_4(%arg0: i32) -> (i32, i32) {
    %c0_i32 = arith.constant 0 : i32
    %c0_i32_0 = arith.constant 0 : i32
    %c0_i32_1 = arith.constant 0 : i32
    return %c0_i32, %c0_i32_0 : i32, i32
  }
  func.func @transform_5(%arg0: i32) -> (i32, i32, i32) {
    %c0_i32 = arith.constant 0 : i32
    %c0_i32_0 = arith.constant 0 : i32
    %c0_i32_1 = arith.constant 0 : i32
    %c0_i32_2 = arith.constant 0 : i32
    return %c0_i32, %c0_i32_0, %c0_i32_1 : i32, i32, i32
  }
  func.func @transform_6(%arg0: i32) -> (i32, i32) {
    %c0_i32 = arith.constant 0 : i32
    %c0_i32_0 = arith.constant 0 : i32
    %c0_i32_1 = arith.constant 0 : i32
    return %c0_i32, %c0_i32_0 : i32, i32
  }
  func.func @transform_7(%arg0: i32) -> (i32, i32, i32) {
    %c0_i32 = arith.constant 0 : i32
    %c0_i32_0 = arith.constant 0 : i32
    %c0_i32_1 = arith.constant 0 : i32
    %c0_i32_2 = arith.constant 0 : i32
    return %c0_i32, %c0_i32_0, %c0_i32_1 : i32, i32, i32
  }
  func.func @transform_8(%arg0: i32) -> (i32, i32) {
    %c0_i32 = arith.constant 0 : i32
    %c0_i32_0 = arith.constant 0 : i32
    %c0_i32_1 = arith.constant 0 : i32
    return %c0_i32, %c0_i32_0 : i32, i32
  }
  func.func @transform_9(%arg0: i32) -> (i32, i32) {
    %c0_i32 = arith.constant 0 : i32
    %c0_i32_0 = arith.constant 0 : i32
    %c0_i32_1 = arith.constant 0 : i32
    return %c0_i32, %c0_i32_0 : i32, i32
  }
  func.func @transform_10(%arg0: i32) -> (i32, i32) {
    %c0_i32 = arith.constant 0 : i32
    %c0_i32_0 = arith.constant 0 : i32
    %c0_i32_1 = arith.constant 0 : i32
    return %c0_i32, %c0_i32_0 : i32, i32
  }
  func.func @transform_11(%arg0: i32) -> (i32, i32, i32) {
    %c0_i32 = arith.constant 0 : i32
    %c0_i32_0 = arith.constant 0 : i32
    %c0_i32_1 = arith.constant 0 : i32
    return %arg0, %c0_i32, %c0_i32_0 : i32, i32, i32
  }
}

</mosaic_0001>

<llo_original>
// kernel: tpu_custom_call.1
$region0: #{tpu_custom_call.1}
  #allocation0 [shape = 'u32[]', space=smem, size = 0x4, offset = 0x4, fixed_abs, tag = 'smem constant byte address 0x4 - core index']
  #allocation1 [shape = 'u32[144,128]{1,0:T(1,128)}', space=vmem, size = 0x12000, scoped, tag = 'internal scratch']
  #allocation2 [shape = 'bf16[8,448]{1,0:T(8,128)(2,1)}', space=vmem, size = 0x2000, scoped, tag = 'scratch operand']
  %s0 = inlined_call_operand.vmem [shape: f32[2,8,384], index: 0, kind: input, shape index: {}]
  %s1 = inlined_call_operand.vmem [shape: bf16[2,8,448], index: 1, kind: input, shape index: {}]
  %s2 = inlined_call_operand.vmem [shape: f32[1,384], index: 2, kind: input, shape index: {}]
  %s3 = inlined_call_operand.vmem [shape: bf16[9,8,8], index: 3, kind: input, shape index: {}]
  %s4 = inlined_call_operand.vmem [shape: f32[8,1], index: 4, kind: input, shape index: {}]
  %s5 = inlined_call_operand.vmem [shape: bf16[9,16,8], index: 5, kind: input, shape index: {}]
  %s6 = inlined_call_operand.vmem [shape: f32[16,1], index: 6, kind: input, shape index: {}]
  %s7 = inlined_call_operand.vmem [shape: bf16[9,8,8], index: 7, kind: input, shape index: {}]
  %s8 = inlined_call_operand.vmem [shape: f32[8,1], index: 8, kind: input, shape index: {}]
  %s9 = inlined_call_operand.vmem [shape: f32[8,1], index: 9, kind: input, shape index: {}]
  %s10 = inlined_call_operand.vmem [shape: f32[8,1], index: 10, kind: input, shape index: {}]
  %s11 = inlined_call_operand.hbm [shape: f32[2,8,384], index: 11, kind: output, shape index: {}]
  %s12 = sld [smem:[#allocation0]]
  $region77: #{tpu_custom_call.1} parent=0
    _
  %s14 = ssub.s32 1, %s12
  %s15 = scalar_select 0, %s14, %s12
  $region1: #{tpu_custom_call.1} parent=0
    #allocation3 [shape = 'u8[24576]{0}', space=vmem, size = 0x6000, scoped, tag = 'output window, operand 0']
    #allocation4 [shape = 's32[2]{0}', space=sflag, size = 0x8, scoped, tag = 'scoped memory for tpu_custom_call.1']
    %16 = vsyncpa [#allocation4], 0
    %s17 = scalar_lea.sflag [#allocation4], 1
    %18 = vsyncpa %s17, 0
    loop: start=0, step=1, limit=4
    $region2: #{tpu_custom_call.1} parent=1 // loop_pre_header
      _
    $region3: #{tpu_custom_call.1} parent=1 // loop_header
      %s20 = sphi 0, %s24
      %p21 = scmp.ge.s32.totalorder %s20, 4
      %s30 = sphi 0, %s32
      %s33 = sphi 0, %s30
      %s34 = sphi 0, %s33
      %s50 = sphi 0, %s34
      %s56 = sphi 0, %s58
      %s59 = sphi 0, %s56
      %s60 = sphi 0, %s59
      %s76 = sphi 0, %s60
      %s80 = sphi 0, %s80
      %s82 = sphi 0, %s80
      %s83 = sphi 0, %s82
      %s97 = sphi 0, %s83
      %s101 = sphi 0, %s101
      %s103 = sphi 0, %s101
      %s104 = sphi 0, %s103
      %s118 = sphi 0, %s104
      %s122 = sphi 0, %s122
      %s124 = sphi 0, %s122
      %s125 = sphi 0, %s124
      %s139 = sphi 0, %s125
      %s143 = sphi 0, %s143
      %s145 = sphi 0, %s143
      %s146 = sphi 0, %s145
      %s160 = sphi 0, %s146
      %s164 = sphi 0, %s164
      %s166 = sphi 0, %s164
      %s167 = sphi 0, %s166
      %s181 = sphi 0, %s167
      %s185 = sphi 0, %s185
      %s187 = sphi 0, %s185
      %s188 = sphi 0, %s187
      %s202 = sphi 0, %s188
      %s206 = sphi 0, %s206
      %s208 = sphi 0, %s206
      %s209 = sphi 0, %s208
      %s223 = sphi 0, %s209
      %s227 = sphi 0, %s227
      %s229 = sphi 0, %s227
      %s230 = sphi 0, %s229
      %s244 = sphi 0, %s230
      %s248 = sphi 0, %s248
      %s250 = sphi 0, %s248
      %s251 = sphi 0, %s250
      %s265 = sphi 0, %s251
      %s271 = sphi 0, %s273
      %s274 = sphi 0, %s271
      %s275 = sphi 0, %s274
      %s291 = sphi 0, %s275
    $region4: #{tpu_custom_call.1} parent=1 // loop_header_branch
      %23 = sbr.rel (%p21) target = $region8
    $region5: #{tpu_custom_call.1} parent=1 // loop_body
      %s25 = ssub.s32 %s20, 1
      %s26 = ssub.s32 %s20, 2
      %s27 = sadd.s32 %s20, 1
      %s28 = ssub.s32 %s20, %s27
      %p29 = scmp.eq.s32.totalorder %s28, 0
      %s31 = sadd.s32 %s30, 1
      %s32 = scalar_select %p29, %s30, %s31
      %p35 = pneg %p29
      %p36 = scmp.eq.s32.totalorder %s20, 1
      %p37 = por %p35, %p36
      %p38 = scmp.ne.s32.totalorder %s30, %s33
      %p39 = scmp.eq.s32.totalorder %s20, 0
      %p40 = por %p38, %p39
      %p41 = scmp.ne.s32.totalorder %s30, %s33
      %p42 = scmp.eq.s32.totalorder %s25, 1
      %p43 = por %p41, %p42
      %p44 = scmp.ne.s32.totalorder %s33, %s34
      %p45 = scmp.eq.s32.totalorder %s25, 0
      %p46 = por %p44, %p45
      %p47 = scmp.ne.s32.totalorder %s33, %s34
      %p48 = scmp.eq.s32.totalorder %s26, 1
      %p49 = por %p47, %p48
      %p51 = scmp.ne.s32.totalorder %s34, %s50
      %p52 = scmp.eq.s32.totalorder %s26, 0
      %p53 = por %p51, %p52
      %s54 = ssub.s32 %s20, %s27
      %p55 = scmp.eq.s32.totalorder %s54, 0
      %s57 = sadd.s32 %s56, 1
      %s58 = scalar_select %p55, %s56, %s57
      %p61 = pneg %p55
      %p62 = scmp.eq.s32.totalorder %s20, 1
      %p63 = por %p61, %p62
      %p64 = scmp.ne.s32.totalorder %s56, %s59
      %p65 = scmp.eq.s32.totalorder %s20, 0
      %p66 = por %p64, %p65
      %p67 = scmp.ne.s32.totalorder %s56, %s59
      %p68 = scmp.eq.s32.totalorder %s25, 1
      %p69 = por %p67, %p68
      %p70 = scmp.ne.s32.totalorder %s59, %s60
      %p71 = scmp.eq.s32.totalorder %s25, 0
      %p72 = por %p70, %p71
      %p73 = scmp.ne.s32.totalorder %s59, %s60
      %p74 = scmp.eq.s32.totalorder %s26, 1
      %p75 = por %p73, %p74
      %p77 = scmp.ne.s32.totalorder %s60, %s76
      %p78 = scmp.eq.s32.totalorder %s26, 0
      %p79 = por %p77, %p78
      %s81 = sadd.s32 %s80, 1
      %p84 = scmp.eq.s32.totalorder %s20, 1
      %p85 = scmp.ne.s32.totalorder %s80, %s82
      %p86 = scmp.eq.s32.totalorder %s20, 0
      %p87 = por %p85, %p86
      %p88 = scmp.ne.s32.totalorder %s80, %s82
      %p89 = scmp.eq.s32.totalorder %s25, 1
      %p90 = por %p88, %p89
      %p91 = scmp.ne.s32.totalorder %s82, %s83
      %p92 = scmp.eq.s32.totalorder %s25, 0
      %p93 = por %p91, %p92
      %p94 = scmp.ne.s32.totalorder %s82, %s83
      %p95 = scmp.eq.s32.totalorder %s26, 1
      %p96 = por %p94, %p95
      %p98 = scmp.ne.s32.totalorder %s83, %s97
      %p99 = scmp.eq.s32.totalorder %s26, 0
      %p100 = por %p98, %p99
      %s102 = sadd.s32 %s101, 1
      %p105 = scmp.eq.s32.totalorder %s20, 1
      %p106 = scmp.ne.s32.totalorder %s101, %s103
      %p107 = scmp.eq.s32.totalorder %s20, 0
      %p108 = por %p106, %p107
      %p109 = scmp.ne.s32.totalorder %s101, %s103
      %p110 = scmp.eq.s32.totalorder %s25, 1
      %p111 = por %p109, %p110
      %p112 = scmp.ne.s32.totalorder %s103, %s104
      %p113 = scmp.eq.s32.totalorder %s25, 0
      %p114 = por %p112, %p113
      %p115 = scmp.ne.s32.totalorder %s103, %s104
      %p116 = scmp.eq.s32.totalorder %s26, 1
      %p117 = por %p115, %p116
      %p119 = scmp.ne.s32.totalorder %s104, %s118
      %p120 = scmp.eq.s32.totalorder %s26, 0
      %p121 = por %p119, %p120
      %s123 = sadd.s32 %s122, 1
      %p126 = scmp.eq.s32.totalorder %s20, 1
      %p127 = scmp.ne.s32.totalorder %s122, %s124
      %p128 = scmp.eq.s32.totalorder %s20, 0
      %p129 = por %p127, %p128
      %p130 = scmp.ne.s32.totalorder %s122, %s124
      %p131 = scmp.eq.s32.totalorder %s25, 1
      %p132 = por %p130, %p131
      %p133 = scmp.ne.s32.totalorder %s124, %s125
      %p134 = scmp.eq.s32.totalorder %s25, 0
      %p135 = por %p133, %p134
      %p136 = scmp.ne.s32.totalorder %s124, %s125
      %p137 = scmp.eq.s32.totalorder %s26, 1
      %p138 = por %p136, %p137
      %p140 = scmp.ne.s32.totalorder %s125, %s139
      %p141 = scmp.eq.s32.totalorder %s26, 0
      %p142 = por %p140, %p141
      %s144 = sadd.s32 %s143, 1
      %p147 = scmp.eq.s32.totalorder %s20, 1
      %p148 = scmp.ne.s32.totalorder %s143, %s145
      %p149 = scmp.eq.s32.totalorder %s20, 0
      %p150 = por %p148, %p149
      %p151 = scmp.ne.s32.totalorder %s143, %s145
      %p152 = scmp.eq.s32.totalorder %s25, 1
      %p153 = por %p151, %p152
      %p154 = scmp.ne.s32.totalorder %s145, %s146
      %p155 = scmp.eq.s32.totalorder %s25, 0
      %p156 = por %p154, %p155
      %p157 = scmp.ne.s32.totalorder %s145, %s146
      %p158 = scmp.eq.s32.totalorder %s26, 1
      %p159 = por %p157, %p158
      %p161 = scmp.ne.s32.totalorder %s146, %s160
      %p162 = scmp.eq.s32.totalorder %s26, 0
      %p163 = por %p161, %p162
      %s165 = sadd.s32 %s164, 1
      %p168 = scmp.eq.s32.totalorder %s20, 1
      %p169 = scmp.ne.s32.totalorder %s164, %s166
      %p170 = scmp.eq.s32.totalorder %s20, 0
      %p171 = por %p169, %p170
      %p172 = scmp.ne.s32.totalorder %s164, %s166
      %p173 = scmp.eq.s32.totalorder %s25, 1
      %p174 = por %p172, %p173
      %p175 = scmp.ne.s32.totalorder %s166, %s167
      %p176 = scmp.eq.s32.totalorder %s25, 0
      %p177 = por %p175, %p176
      %p178 = scmp.ne.s32.totalorder %s166, %s167
      %p179 = scmp.eq.s32.totalorder %s26, 1
      %p180 = por %p178, %p179
      %p182 = scmp.ne.s32.totalorder %s167, %s181
      %p183 = scmp.eq.s32.totalorder %s26, 0
      %p184 = por %p182, %p183
      %s186 = sadd.s32 %s185, 1
      %p189 = scmp.eq.s32.totalorder %s20, 1
      %p190 = scmp.ne.s32.totalorder %s185, %s187
      %p191 = scmp.eq.s32.totalorder %s20, 0
      %p192 = por %p190, %p191
      %p193 = scmp.ne.s32.totalorder %s185, %s187
      %p194 = scmp.eq.s32.totalorder %s25, 1
      %p195 = por %p193, %p194
      %p196 = scmp.ne.s32.totalorder %s187, %s188
      %p197 = scmp.eq.s32.totalorder %s25, 0
      %p198 = por %p196, %p197
      %p199 = scmp.ne.s32.totalorder %s187, %s188
      %p200 = scmp.eq.s32.totalorder %s26, 1
      %p201 = por %p199, %p200
      %p203 = scmp.ne.s32.totalorder %s188, %s202
      %p204 = scmp.eq.s32.totalorder %s26, 0
      %p205 = por %p203, %p204
      %s207 = sadd.s32 %s206, 1
      %p210 = scmp.eq.s32.totalorder %s20, 1
      %p211 = scmp.ne.s32.totalorder %s206, %s208
      %p212 = scmp.eq.s32.totalorder %s20, 0
      %p213 = por %p211, %p212
      %p214 = scmp.ne.s32.totalorder %s206, %s208
      %p215 = scmp.eq.s32.totalorder %s25, 1
      %p216 = por %p214, %p215
      %p217 = scmp.ne.s32.totalorder %s208, %s209
      %p218 = scmp.eq.s32.totalorder %s25, 0
      %p219 = por %p217, %p218
      %p220 = scmp.ne.s32.totalorder %s208, %s209
      %p221 = scmp.eq.s32.totalorder %s26, 1
      %p222 = por %p220, %p221
      %p224 = scmp.ne.s32.totalorder %s209, %s223
      %p225 = scmp.eq.s32.totalorder %s26, 0
      %p226 = por %p224, %p225
      %s228 = sadd.s32 %s227, 1
      %p231 = scmp.eq.s32.totalorder %s20, 1
      %p232 = scmp.ne.s32.totalorder %s227, %s229
      %p233 = scmp.eq.s32.totalorder %s20, 0
      %p234 = por %p232, %p233
      %p235 = scmp.ne.s32.totalorder %s227, %s229
      %p236 = scmp.eq.s32.totalorder %s25, 1
      %p237 = por %p235, %p236
      %p238 = scmp.ne.s32.totalorder %s229, %s230
      %p239 = scmp.eq.s32.totalorder %s25, 0
      %p240 = por %p238, %p239
      %p241 = scmp.ne.s32.totalorder %s229, %s230
      %p242 = scmp.eq.s32.totalorder %s26, 1
      %p243 = por %p241, %p242
      %p245 = scmp.ne.s32.totalorder %s230, %s244
      %p246 = scmp.eq.s32.totalorder %s26, 0
      %p247 = por %p245, %p246
      %s249 = sadd.s32 %s248, 1
      %p252 = scmp.eq.s32.totalorder %s20, 1
      %p253 = scmp.ne.s32.totalorder %s248, %s250
      %p254 = scmp.eq.s32.totalorder %s20, 0
      %p255 = por %p253, %p254
      %p256 = scmp.ne.s32.totalorder %s248, %s250
      %p257 = scmp.eq.s32.totalorder %s25, 1
      %p258 = por %p256, %p257
      %p259 = scmp.ne.s32.totalorder %s250, %s251
      %p260 = scmp.eq.s32.totalorder %s25, 0
      %p261 = por %p259, %p260
      %p262 = scmp.ne.s32.totalorder %s250, %s251
      %p263 = scmp.eq.s32.totalorder %s26, 1
      %p264 = por %p262, %p263
      %p266 = scmp.ne.s32.totalorder %s251, %s265
      %p267 = scmp.eq.s32.totalorder %s26, 0
      %p268 = por %p266, %p267
      %s269 = ssub.s32 %s20, %s27
      %p270 = scmp.eq.s32.totalorder %s269, 0
      %s272 = sadd.s32 %s271, 1
      %s273 = scalar_select %p270, %s271, %s272
      %p276 = pneg %p270
      %p277 = scmp.eq.s32.totalorder %s20, 1
      %p278 = por %p276, %p277
      %p279 = scmp.ne.s32.totalorder %s271, %s274
      %p280 = scmp.eq.s32.totalorder %s20, 0
      %p281 = por %p279, %p280
      %p282 = scmp.ne.s32.totalorder %s271, %s274
      %p283 = scmp.eq.s32.totalorder %s25, 1
      %p284 = por %p282, %p283
      %p285 = scmp.ne.s32.totalorder %s274, %s275
      %p286 = scmp.eq.s32.totalorder %s25, 0
      %p287 = por %p285, %p286
      %p288 = scmp.ne.s32.totalorder %s274, %s275
      %p289 = scmp.eq.s32.totalorder %s26, 1
      %p290 = por %p288, %p289
      %p292 = scmp.ne.s32.totalorder %s275, %s291
      %p293 = scmp.eq.s32.totalorder %s26, 0
      %p294 = por %p292, %p293
      %p295 = scmp.le.s32.totalorder 1, %s20
      %p296 = scmp.lt.s32.totalorder %s20, 3
      %p297 = pnand %p295, %p296
      %p298 = pneg %p297
      // Predicated region
      $region9: #{tpu_custom_call.1} parent=5 // pred_check
        _
      $region10: #{tpu_custom_call.1} parent=5 // pred_check_branch
        %300 = sbr.rel (%p297) target = $region12
      $region11: #{tpu_custom_call.1} parent=5 // pred_region
        %s301 = ssub.s32 %s20, 1
        // Predicated region
        $region13: #{tpu_custom_call.1} parent=11 // pred_check
          %p302 = pneg %p93
        $region14: #{tpu_custom_call.1} parent=11 // pred_check_branch
          %304 = sbr.rel (%p302) target = $region16
        $region15: #{tpu_custom_call.1} parent=11 // pred_region
          _
        $region16: #{tpu_custom_call.1} parent=11 // pred_fallthru
          _
        // Predicated region
        $region17: #{tpu_custom_call.1} parent=11 // pred_check
          %p305 = pneg %p114
        $region18: #{tpu_custom_call.1} parent=11 // pred_check_branch
          %307 = sbr.rel (%p305) target = $region20
        $region19: #{tpu_custom_call.1} parent=11 // pred_region
          _
        $region20: #{tpu_custom_call.1} parent=11 // pred_fallthru
          _
        // Predicated region
        $region21: #{tpu_custom_call.1} parent=11 // pred_check
          %p308 = pneg %p135
        $region22: #{tpu_custom_call.1} parent=11 // pred_check_branch
          %310 = sbr.rel (%p308) target = $region24
        $region23: #{tpu_custom_call.1} parent=11 // pred_region
          _
        $region24: #{tpu_custom_call.1} parent=11 // pred_fallthru
          _
        // Predicated region
        $region25: #{tpu_custom_call.1} parent=11 // pred_check
          %p311 = pneg %p156
        $region26: #{tpu_custom_call.1} parent=11 // pred_check_branch
          %313 = sbr.rel (%p311) target = $region28
        $region27: #{tpu_custom_call.1} parent=11 // pred_region
          _
        $region28: #{tpu_custom_call.1} parent=11 // pred_fallthru
          _
        // Predicated region
        $region29: #{tpu_custom_call.1} parent=11 // pred_check
          %p314 = pneg %p177
        $region30: #{tpu_custom_call.1} parent=11 // pred_check_branch
          %316 = sbr.rel (%p314) target = $region32
        $region31: #{tpu_custom_call.1} parent=11 // pred_region
          _
        $region32: #{tpu_custom_call.1} parent=11 // pred_fallthru
          _
        // Predicated region
        $region33: #{tpu_custom_call.1} parent=11 // pred_check
          %p317 = pneg %p198
        $region34: #{tpu_custom_call.1} parent=11 // pred_check_branch
          %319 = sbr.rel (%p317) target = $region36
        $region35: #{tpu_custom_call.1} parent=11 // pred_region
          _
        $region36: #{tpu_custom_call.1} parent=11 // pred_fallthru
          _
        // Predicated region
        $region37: #{tpu_custom_call.1} parent=11 // pred_check
          %p320 = pneg %p219
        $region38: #{tpu_custom_call.1} parent=11 // pred_check_branch
          %322 = sbr.rel (%p320) target = $region40
        $region39: #{tpu_custom_call.1} parent=11 // pred_region
          _
        $region40: #{tpu_custom_call.1} parent=11 // pred_fallthru
          _
        // Predicated region
        $region41: #{tpu_custom_call.1} parent=11 // pred_check
          %p323 = pneg %p240
        $region42: #{tpu_custom_call.1} parent=11 // pred_check_branch
          %325 = sbr.rel (%p323) target = $region44
        $region43: #{tpu_custom_call.1} parent=11 // pred_region
          _
        $region44: #{tpu_custom_call.1} parent=11 // pred_fallthru
          _
        // Predicated region
        $region45: #{tpu_custom_call.1} parent=11 // pred_check
          %p326 = pneg %p261
        $region46: #{tpu_custom_call.1} parent=11 // pred_check_branch
          %328 = sbr.rel (%p326) target = $region48
        $region47: #{tpu_custom_call.1} parent=11 // pred_region
          _
        $region48: #{tpu_custom_call.1} parent=11 // pred_fallthru
          _
      $region12: #{tpu_custom_call.1} parent=5 // pred_fallthru
        _
      %p329 = scmp.lt.s32.totalorder %s20, 2
      // Predicated region
      $region49: #{tpu_custom_call.1} parent=5 // pred_check
        %p330 = pneg %p329
      $region50: #{tpu_custom_call.1} parent=5 // pred_check_branch
        %332 = sbr.rel (%p330) target = $region52
      $region51: #{tpu_custom_call.1} parent=5 // pred_region
        // Predicated region
        $region53: #{tpu_custom_call.1} parent=51 // pred_check
          %p333 = pneg %p40
        $region54: #{tpu_custom_call.1} parent=51 // pred_check_branch
          %335 = sbr.rel (%p333) target = $region56
        $region55: #{tpu_custom_call.1} parent=51 // pred_region
          %p336 = scmp.lt.s32.totalorder %s20, 1
          %s337 = scalar_select %p336, %s20, 1
          %s338 = smul.addr %s337, 3
          %s339 = smul.addr %s338, 8
          %s340 = scalar_lea.vmem %s0, %s339
        $region56: #{tpu_custom_call.1} parent=51 // pred_fallthru
          _
        // Predicated region
        $region57: #{tpu_custom_call.1} parent=51 // pred_check
          %p341 = pneg %p66
        $region58: #{tpu_custom_call.1} parent=51 // pred_check_branch
          %343 = sbr.rel (%p341) target = $region60
        $region59: #{tpu_custom_call.1} parent=51 // pred_region
          %p344 = scmp.lt.s32.totalorder %s20, 1
          %s345 = scalar_select %p344, %s20, 1
          %s346 = smul.addr %s345, 4
          %s347 = smul.addr %s346, 4
          %s348 = scalar_lea.vmem %s1, %s347
        $region60: #{tpu_custom_call.1} parent=51 // pred_fallthru
          _
      $region52: #{tpu_custom_call.1} parent=5 // pred_fallthru
        _
      %p349 = scmp.le.s32.totalorder 1, %s20
      %p350 = scmp.lt.s32.totalorder %s20, 3
      %p351 = pnand %p349, %p350
      %p352 = pneg %p351
      // Predicated region
      $region61: #{tpu_custom_call.1} parent=5 // pred_check
        _
      $region62: #{tpu_custom_call.1} parent=5 // pred_check_branch
        %354 = sbr.rel (%p351) target = $region64
      $region63: #{tpu_custom_call.1} parent=5 // pred_region
        %s355 = ssub.s32 %s20, 1
        %p356 = scmp.lt.s32.totalorder %s25, 1
        %s357 = scalar_select %p356, %s25, 1
        %s358 = smul.addr %s357, 3
        %s359 = smul.addr %s358, 8
        %s360 = scalar_lea.vmem %s0, %s359
        %p361 = pneg %p46
        %p362 = pneg %p43
        %p363 = scmp.lt.s32.totalorder %s25, 1
        %s364 = scalar_select %p363, %s25, 1
        %s365 = smul.addr %s364, 4
        %s366 = smul.addr %s365, 4
        %s367 = scalar_lea.vmem %s1, %s366
        %p368 = pneg %p72
        %p369 = pneg %p69
        %p370 = pneg %p93
        %p371 = pneg %p90
        %p372 = pneg %p114
        %p373 = pneg %p111
        %p374 = pneg %p135
        %p375 = pneg %p132
        %p376 = pneg %p156
        %p377 = pneg %p153
        %p378 = pneg %p177
        %p379 = pneg %p174
        %p380 = pneg %p198
        %p381 = pneg %p195
        %p382 = pneg %p219
        %p383 = pneg %p216
        %p384 = pneg %p240
        %p385 = pneg %p237
        %p386 = pneg %p261
        %p387 = pneg %p258
        %p388 = pneg %p287
        %p389 = pneg %p284
        %s390 = sand.u32 %s274, 1
        %s391 = scalar_lea.sflag [#allocation4], %s390
        %s392 = sand.u32 %s274, 1
        %s393 = smul.addr %s392, 24
        %s394 = scalar_lea.vmem [#allocation3], %s393
        %p395 = scmp.lt.s32.totalorder %s25, 1
        %s396 = scalar_select %p395, %s25, 1
        %s397 = smul.addr %s396, 3
        %s398 = smul.addr %s397, 8
        %s399 = scalar_lea.vmem %s0, %s398
        %p400 = scmp.lt.s32.totalorder %s25, 1
        %s401 = scalar_select %p400, %s25, 1
        %s402 = smul.addr %s401, 4
        %s403 = smul.addr %s402, 4
        %s404 = scalar_lea.vmem %s1, %s403
        %v406 = vld [vmem:[%s2] sm:$0x7]
        %v407 = vld [vmem:[%s399] sm:$0xff]
        %v408 = vld [vmem:[%s399 + $0x8] sm:$0xff]
        %v409 = vld [vmem:[%s399 + $0x10] sm:$0xff]
        %v410 = vadd.f32 %v407, %v408
        %v411 = vadd.f32 %v410, %v409
        %412 = vadd.xlane.f32.xlu0 %v411
        %v413 = vpop.xlane.xlu0 %412
        %v414 = vmul.f32 %v413, 0.00390625
        %v415 = vsub.f32 %v407, %v414
        %v416 = vsub.f32 %v408, %v414
        %v417 = vsub.f32 %v409, %v414
        %v419 = vlaneseq
        %v420 = vshrl.u32 %v419, 7
        %v421 = vsub.s32 0, %v420
        %v422 = vrot.slane %v406, %v421
        %v423 = vlaneseq
        %v424 = vshrl.u32 %v423, 7
        %v425 = vsub.s32 1, %v424
        %v426 = vrot.slane %v406, %v425
        %v427 = vlaneseq
        %v428 = vshrl.u32 %v427, 7
        %v429 = vsub.s32 2, %v428
        %v430 = vrot.slane %v406, %v429
        %v434 = vmul.f32 %v415, %v422
        %v435 = vmul.f32 %v416, %v426
        %v436 = vmul.f32 %v417, %v430
        %v437 = vmul.f32 %v434, %v434
        %v438 = vmul.f32 %v435, %v435
        %v439 = vmul.f32 %v436, %v436
        %v440 = vadd.f32 %v437, %v438
        %v441 = vadd.f32 %v440, %v439
        %442 = vadd.xlane.f32.xlu0 %v441
        %v443 = vpop.xlane.xlu0 %442
        %v444 = vmul.f32 %v443, 0.00390625
        %v445 = vadd.f32 %v444, 1e-05
        %v446 = vrsqrt.pop %v445
        %v447 = vmul.f32 %v434, %v446
        %v448 = vmul.f32 %v435, %v446
        %v449 = vmul.f32 %v436, %v446
        %v450 = vld [vmem:[%s9] sm:$0xff]
        %452 = vset.pattern.permute.xlu0 0
        %453 = vperm.xlu0 %452, %v450
        %v454 = vpop.permute.xlu0 %453
        %v456 = vmul.f32 %v447, %v454
        %v457 = vmul.f32 %v448, %v454
        %v458 = vmul.f32 %v449, %v454
        %v459 = vld [vmem:[%s10] sm:$0xff]
        %461 = vset.pattern.permute.xlu0 0
        %462 = vperm.xlu0 %461, %v459
        %v463 = vpop.permute.xlu0 %462
        %v465 = vadd.f32 %v456, %v463
        %v466 = vadd.f32 %v457, %v463
        %v467 = vadd.f32 %v458, %v463
        %v468 = vld [vmem:[%s3] sm:$0xf]
        %v469 = vld [vmem:[%s404] sm:$0xff]
        %v470 = vld [vmem:[%s404 + $0x8] sm:$0xff]
        %s471 = scalar_lea.vmem %s3, 4
        %v472 = vld [vmem:[%s471] sm:$0xf]
        %v475 = vunpack.c.l.b16 %v469
        %v476 = vunpack.c.h.b16 %v469
        %v477 = vunpack.c.l.b16 %v470
        %v478 = vunpack.c.h.b16 %v470
        %v479 = vpack.c.b16 %v475, %v475
        %v480 = vpack.c.b16 %v476, %v476
        %v481 = vpack.c.b16 %v477, %v477
        %v482 = vpack.c.b16 %v478, %v478
        %483 = vrot.lane.b32.xlu0 %v479, 120
        %v484 = vpop.permute.xlu0 %483
        %485 = vrot.lane.b32.xlu0 %v480, 120
        %v486 = vpop.permute.xlu0 %485
        %487 = vrot.lane.b32.xlu0 %v481, 120
        %v488 = vpop.permute.xlu0 %487
        %489 = vrot.lane.b32.xlu0 %v482, 120
        %v490 = vpop.permute.xlu0 %489
        %vm491 = vcmask 982016
        %v492 = vsel %vm491, %v484, %v486
        %v493 = vsel %vm491, %v486, %v488
        %v494 = vsel %vm491, %v488, %v490
        %vm495 = vcmask 64512
        %v497 = vsel %vm495, %v472, 0
        %vm499 = vcmask 1043456
        %v501 = vsel %vm499, %v492, 0
        %v504 = vsel %vm499, %v493, 0
        %v507 = vsel %vm499, %v494, 0
        %509 = vmatprep.subr.bf16.mxu0 0
        %510 = vmatpush1.bf16.msra.mxu0 0
        %511 = vmatprep.subr.bf16.mxu0 0
        %512 = vmatpush1.bf16.msra.mxu0 0
        %513 = vmatprep.subr.bf16.mxu0 0
        %514 = vmatpush1.bf16.msra.mxu0 0
        %515 = vmatprep.subr.bf16.mxu0 0
        %516 = vmatpush1.bf16.msra.mxu0 0
        %517 = vmatprep.subr.bf16.mxu0 0
        %518 = vmatpush1.bf16.msra.mxu0 0
        %519 = vmatprep.subr.bf16.mxu0 0
        %520 = vmatpush1.bf16.msra.mxu0 0
        %521 = vmatprep.subr.bf16.mxu0 0
        %522 = vmatpush1.bf16.msra.mxu0 0
        %523 = vmatprep.subr.bf16.mxu0 %v504
        %524 = vmatpush1.bf16.msra.mxu0 %v501
        %525 = vmatprep.subr.bf16.mxu0 0
        %526 = vmatpush2.bf16.msra.mxu0 0
        %527 = vmatprep.subr.bf16.mxu0 0
        %528 = vmatpush2.bf16.msra.mxu0 0
        %529 = vmatprep.subr.bf16.mxu0 0
        %530 = vmatpush2.bf16.msra.mxu0 0
        %531 = vmatprep.subr.bf16.mxu0 0
        %532 = vmatpush2.bf16.msra.mxu0 0
        %533 = vmatprep.subr.bf16.mxu0 0
        %534 = vmatpush2.bf16.msra.mxu0 0
        %535 = vmatprep.subr.bf16.mxu0 0
        %536 = vmatpush2.bf16.msra.mxu0 0
        %537 = vmatprep.subr.bf16.mxu0 0
        %538 = vmatpush2.bf16.msra.mxu0 0
        %539 = vmatprep.subr.bf16.mxu0 0
        %540 = vmatpush2.bf16.msra.mxu0 0
        %541 = vmatprep.mubr.bf16.mxu0 0
        %542 = vmatmul.mubr.bf16.gmra.mxu0 %v497
        %v543 = vpop.f32.mrf.mxu0
        %v544 = vadd.f32 0.0, %v543
        %v545 = vpop.f32.mrf.mxu0
        %v546 = vadd.f32 0.0, %v545
        %v547 = vpop.f32.mrf.mxu0
        %v548 = vpop.f32.mrf.mxu0
        %549 = vdwg.mxu0
        %550 = vmatprep.subr.bf16.mxu0 0
        %551 = vmatpush1.bf16.msra.mxu0 0
        %552 = vmatprep.subr.bf16.mxu0 0
        %553 = vmatpush1.bf16.msra.mxu0 0
        %554 = vmatprep.subr.bf16.mxu0 0
        %555 = vmatpush1.bf16.msra.mxu0 0
        %556 = vmatprep.subr.bf16.mxu0 0
        %557 = vmatpush1.bf16.msra.mxu0 0
        %558 = vmatprep.subr.bf16.mxu0 0
        %559 = vmatpush1.bf16.msra.mxu0 0
        %560 = vmatprep.subr.bf16.mxu0 0
        %561 = vmatpush1.bf16.msra.mxu0 0
        %562 = vmatprep.subr.bf16.mxu0 0
        %563 = vmatpush1.bf16.msra.mxu0 0
        %564 = vmatprep.subr.bf16.mxu0 0
        %565 = vmatpush1.bf16.msra.mxu0 %v507
        %566 = vmatprep.subr.bf16.mxu0 0
        %567 = vmatpush2.bf16.msra.mxu0 0
        %568 = vmatprep.subr.bf16.mxu0 0
        %569 = vmatpush2.bf16.msra.mxu0 0
        %570 = vmatprep.subr.bf16.mxu0 0
        %571 = vmatpush2.bf16.msra.mxu0 0
        %572 = vmatprep.subr.bf16.mxu0 0
        %573 = vmatpush2.bf16.msra.mxu0 0
        %574 = vmatprep.subr.bf16.mxu0 0
        %575 = vmatpush2.bf16.msra.mxu0 0
        %576 = vmatprep.subr.bf16.mxu0 0
        %577 = vmatpush2.bf16.msra.mxu0 0
        %578 = vmatprep.subr.bf16.mxu0 0
        %579 = vmatpush2.bf16.msra.mxu0 0
        %580 = vmatprep.subr.bf16.mxu0 0
        %581 = vmatpush2.bf16.msra.mxu0 0
        %582 = vmatprep.mubr.bf16.mxu0 0
        %583 = vmatmul.mubr.bf16.gmra.mxu0 %v497
        %v584 = vpop.f32.mrf.mxu0
        %v585 = vadd.f32 0.0, %v584
        %v586 = vpop.f32.mrf.mxu0
        %v587 = vpop.f32.mrf.mxu0
        %v588 = vpop.f32.mrf.mxu0
        %589 = vdwg.mxu0
        %590 = vrot.lane.b32.xlu0 %v479, 121
        %v591 = vpop.permute.xlu0 %590
        %592 = vrot.lane.b32.xlu0 %v480, 121
        %v593 = vpop.permute.xlu0 %592
        %594 = vrot.lane.b32.xlu0 %v481, 121
        %v595 = vpop.permute.xlu0 %594
        %596 = vrot.lane.b32.xlu0 %v482, 121
        %v597 = vpop.permute.xlu0 %596
        %vm598 = vcmask 990208
        %v599 = vsel %vm598, %v591, %v593
        %v600 = vsel %vm598, %v593, %v595
        %v601 = vsel %vm598, %v595, %v597
        %v603 = vsel %vm495, %v468, 0
        %v606 = vsel %vm499, %v599, 0
        %v609 = vsel %vm499, %v600, 0
        %v612 = vsel %vm499, %v601, 0
        %614 = vmatprep.subr.bf16.mxu0 0
        %615 = vmatpush1.bf16.msra.mxu0 0
        %616 = vmatprep.subr.bf16.mxu0 0
        %617 = vmatpush1.bf16.msra.mxu0 0
        %618 = vmatprep.subr.bf16.mxu0 0
        %619 = vmatpush1.bf16.msra.mxu0 0
        %620 = vmatprep.subr.bf16.mxu0 0
        %621 = vmatpush1.bf16.msra.mxu0 0
        %622 = vmatprep.subr.bf16.mxu0 0
        %623 = vmatpush1.bf16.msra.mxu0 0
        %624 = vmatprep.subr.bf16.mxu0 0
        %625 = vmatpush1.bf16.msra.mxu0 0
        %626 = vmatprep.subr.bf16.mxu0 0
        %627 = vmatpush1.bf16.msra.mxu0 0
        %628 = vmatprep.subr.bf16.mxu0 %v609
        %629 = vmatpush1.bf16.msra.mxu0 %v606
        %630 = vmatprep.subr.bf16.mxu0 0
        %631 = vmatpush2.bf16.msra.mxu0 0
        %632 = vmatprep.subr.bf16.mxu0 0
        %633 = vmatpush2.bf16.msra.mxu0 0
        %634 = vmatprep.subr.bf16.mxu0 0
        %635 = vmatpush2.bf16.msra.mxu0 0
        %636 = vmatprep.subr.bf16.mxu0 0
        %637 = vmatpush2.bf16.msra.mxu0 0
        %638 = vmatprep.subr.bf16.mxu0 0
        %639 = vmatpush2.bf16.msra.mxu0 0
        %640 = vmatprep.subr.bf16.mxu0 0
        %641 = vmatpush2.bf16.msra.mxu0 0
        %642 = vmatprep.subr.bf16.mxu0 0
        %643 = vmatpush2.bf16.msra.mxu0 0
        %644 = vmatprep.subr.bf16.mxu0 0
        %645 = vmatpush2.bf16.msra.mxu0 0
        %646 = vmatprep.mubr.bf16.mxu0 0
        %647 = vmatmul.mubr.bf16.gmra.mxu0 %v603
        %v648 = vpop.f32.mrf.mxu0
        %v649 = vadd.f32 %v544, %v648
        %v650 = vpop.f32.mrf.mxu0
        %v651 = vadd.f32 %v546, %v650
        %v652 = vpop.f32.mrf.mxu0
        %v653 = vpop.f32.mrf.mxu0
        %654 = vdwg.mxu0
        %655 = vmatprep.subr.bf16.mxu0 0
        %656 = vmatpush1.bf16.msra.mxu0 0
        %657 = vmatprep.subr.bf16.mxu0 0
        %658 = vmatpush1.bf16.msra.mxu0 0
        %659 = vmatprep.subr.bf16.mxu0 0
        %660 = vmatpush1.bf16.msra.mxu0 0
        %661 = vmatprep.subr.bf16.mxu0 0
        %662 = vmatpush1.bf16.msra.mxu0 0
        %663 = vmatprep.subr.bf16.mxu0 0
        %664 = vmatpush1.bf16.msra.mxu0 0
        %665 = vmatprep.subr.bf16.mxu0 0
        %666 = vmatpush1.bf16.msra.mxu0 0
        %667 = vmatprep.subr.bf16.mxu0 0
        %668 = vmatpush1.bf16.msra.mxu0 0
        %669 = vmatprep.subr.bf16.mxu0 0
        %670 = vmatpush1.bf16.msra.mxu0 %v612
        %671 = vmatprep.subr.bf16.mxu0 0
        %672 = vmatpush2.bf16.msra.mxu0 0
        %673 = vmatprep.subr.bf16.mxu0 0
        %674 = vmatpush2.bf16.msra.mxu0 0
        %675 = vmatprep.subr.bf16.mxu0 0
        %676 = vmatpush2.bf16.msra.mxu0 0
        %677 = vmatprep.subr.bf16.mxu0 0
        %678 = vmatpush2.bf16.msra.mxu0 0
        %679 = vmatprep.subr.bf16.mxu0 0
        %680 = vmatpush2.bf16.msra.mxu0 0
        %681 = vmatprep.subr.bf16.mxu0 0
        %682 = vmatpush2.bf16.msra.mxu0 0
        %683 = vmatprep.subr.bf16.mxu0 0
        %684 = vmatpush2.bf16.msra.mxu0 0
        %685 = vmatprep.subr.bf16.mxu0 0
        %686 = vmatpush2.bf16.msra.mxu0 0
        %687 = vmatprep.mubr.bf16.mxu0 0
        %688 = vmatmul.mubr.bf16.gmra.mxu0 %v603
        %v689 = vpop.f32.mrf.mxu0
        %v690 = vadd.f32 %v585, %v689
        %v691 = vpop.f32.mrf.mxu0
        %v692 = vpop.f32.mrf.mxu0
        %v693 = vpop.f32.mrf.mxu0
        %694 = vdwg.mxu0
        %s695 = scalar_lea.vmem %s3, 8
        %v696 = vld [vmem:[%s695] sm:$0xf]
        %697 = vrot.lane.b32.xlu0 %v479, 119
        %v698 = vpop.permute.xlu0 %697
        %699 = vrot.lane.b32.xlu0 %v480, 119
        %v700 = vpop.permute.xlu0 %699
        %701 = vrot.lane.b32.xlu0 %v481, 119
        %v702 = vpop.permute.xlu0 %701
        %703 = vrot.lane.b32.xlu0 %v482, 119
        %v704 = vpop.permute.xlu0 %703
        %vm705 = vcmask 973824
        %v706 = vsel %vm705, %v698, %v700
        %v707 = vsel %vm705, %v700, %v702
        %v708 = vsel %vm705, %v702, %v704
        %v710 = vsel %vm495, %v696, 0
        %v713 = vsel %vm499, %v706, 0
        %v716 = vsel %vm499, %v707, 0
        %v719 = vsel %vm499, %v708, 0
        %721 = vmatprep.subr.bf16.mxu0 0
        %722 = vmatpush1.bf16.msra.mxu0 0
        %723 = vmatprep.subr.bf16.mxu0 0
        %724 = vmatpush1.bf16.msra.mxu0 0
        %725 = vmatprep.subr.bf16.mxu0 0
        %726 = vmatpush1.bf16.msra.mxu0 0
        %727 = vmatprep.subr.bf16.mxu0 0
        %728 = vmatpush1.bf16.msra.mxu0 0
        %729 = vmatprep.subr.bf16.mxu0 0
        %730 = vmatpush1.bf16.msra.mxu0 0
        %731 = vmatprep.subr.bf16.mxu0 0
        %732 = vmatpush1.bf16.msra.mxu0 0
        %733 = vmatprep.subr.bf16.mxu0 0
        %734 = vmatpush1.bf16.msra.mxu0 0
        %735 = vmatprep.subr.bf16.mxu0 %v716
        %736 = vmatpush1.bf16.msra.mxu0 %v713
        %737 = vmatprep.subr.bf16.mxu0 0
        %738 = vmatpush2.bf16.msra.mxu0 0
        %739 = vmatprep.subr.bf16.mxu0 0
        %740 = vmatpush2.bf16.msra.mxu0 0
        %741 = vmatprep.subr.bf16.mxu0 0
        %742 = vmatpush2.bf16.msra.mxu0 0
        %743 = vmatprep.subr.bf16.mxu0 0
        %744 = vmatpush2.bf16.msra.mxu0 0
        %745 = vmatprep.subr.bf16.mxu0 0
        %746 = vmatpush2.bf16.msra.mxu0 0
        %747 = vmatprep.subr.bf16.mxu0 0
        %748 = vmatpush2.bf16.msra.mxu0 0
        %749 = vmatprep.subr.bf16.mxu0 0
        %750 = vmatpush2.bf16.msra.mxu0 0
        %751 = vmatprep.subr.bf16.mxu0 0
        %752 = vmatpush2.bf16.msra.mxu0 0
        %753 = vmatprep.mubr.bf16.mxu0 0
        %754 = vmatmul.mubr.bf16.gmra.mxu0 %v710
        %v755 = vpop.f32.mrf.mxu0
        %v756 = vadd.f32 0.0, %v755
        %v757 = vpop.f32.mrf.mxu0
        %v758 = vadd.f32 0.0, %v757
        %v759 = vpop.f32.mrf.mxu0
        %v760 = vpop.f32.mrf.mxu0
        %761 = vdwg.mxu0
        %762 = vmatprep.subr.bf16.mxu0 0
        %763 = vmatpush1.bf16.msra.mxu0 0
        %764 = vmatprep.subr.bf16.mxu0 0
        %765 = vmatpush1.bf16.msra.mxu0 0
        %766 = vmatprep.subr.bf16.mxu0 0
        %767 = vmatpush1.bf16.msra.mxu0 0
        %768 = vmatprep.subr.bf16.mxu0 0
        %769 = vmatpush1.bf16.msra.mxu0 0
        %770 = vmatprep.subr.bf16.mxu0 0
        %771 = vmatpush1.bf16.msra.mxu0 0
        %772 = vmatprep.subr.bf16.mxu0 0
        %773 = vmatpush1.bf16.msra.mxu0 0
        %774 = vmatprep.subr.bf16.mxu0 0
        %775 = vmatpush1.bf16.msra.mxu0 0
        %776 = vmatprep.subr.bf16.mxu0 0
        %777 = vmatpush1.bf16.msra.mxu0 %v719
        %778 = vmatprep.subr.bf16.mxu0 0
        %779 = vmatpush2.bf16.msra.mxu0 0
        %780 = vmatprep.subr.bf16.mxu0 0
        %781 = vmatpush2.bf16.msra.mxu0 0
        %782 = vmatprep.subr.bf16.mxu0 0
        %783 = vmatpush2.bf16.msra.mxu0 0
        %784 = vmatprep.subr.bf16.mxu0 0
        %785 = vmatpush2.bf16.msra.mxu0 0
        %786 = vmatprep.subr.bf16.mxu0 0
        %787 = vmatpush2.bf16.msra.mxu0 0
        %788 = vmatprep.subr.bf16.mxu0 0
        %789 = vmatpush2.bf16.msra.mxu0 0
        %790 = vmatprep.subr.bf16.mxu0 0
        %791 = vmatpush2.bf16.msra.mxu0 0
        %792 = vmatprep.subr.bf16.mxu0 0
        %793 = vmatpush2.bf16.msra.mxu0 0
        %794 = vmatprep.mubr.bf16.mxu0 0
        %795 = vmatmul.mubr.bf16.gmra.mxu0 %v710
        %v796 = vpop.f32.mrf.mxu0
        %v797 = vadd.f32 0.0, %v796
        %v798 = vpop.f32.mrf.mxu0
        %v799 = vpop.f32.mrf.mxu0
        %v800 = vpop.f32.mrf.mxu0
        %801 = vdwg.mxu0
        %v802 = vadd.f32 %v649, %v756
        %v803 = vadd.f32 %v651, %v758
        %v804 = vadd.f32 %v690, %v797
        %s805 = scalar_lea.vmem %s3, 12
        %v806 = vld [vmem:[%s805] sm:$0xf]
        %807 = vrot.lane.b32.xlu0 %v479, 97
        %v808 = vpop.permute.xlu0 %807
        %809 = vrot.lane.b32.xlu0 %v480, 97
        %v810 = vpop.permute.xlu0 %809
        %811 = vrot.lane.b32.xlu0 %v481, 97
        %v812 = vpop.permute.xlu0 %811
        %813 = vrot.lane.b32.xlu0 %v482, 97
        %v814 = vpop.permute.xlu0 %813
        %vm815 = vcmask 793600
        %v816 = vsel %vm815, %v808, %v810
        %v817 = vsel %vm815, %v810, %v812
        %v818 = vsel %vm815, %v812, %v814
        %v820 = vsel %vm495, %v806, 0
        %v823 = vsel %vm499, %v816, 0
        %v826 = vsel %vm499, %v817, 0
        %v829 = vsel %vm499, %v818, 0
        %831 = vmatprep.subr.bf16.mxu0 0
        %832 = vmatpush1.bf16.msra.mxu0 0
        %833 = vmatprep.subr.bf16.mxu0 0
        %834 = vmatpush1.bf16.msra.mxu0 0
        %835 = vmatprep.subr.bf16.mxu0 0
        %836 = vmatpush1.bf16.msra.mxu0 0
        %837 = vmatprep.subr.bf16.mxu0 0
        %838 = vmatpush1.bf16.msra.mxu0 0
        %839 = vmatprep.subr.bf16.mxu0 0
        %840 = vmatpush1.bf16.msra.mxu0 0
        %841 = vmatprep.subr.bf16.mxu0 0
        %842 = vmatpush1.bf16.msra.mxu0 0
        %843 = vmatprep.subr.bf16.mxu0 0
        %844 = vmatpush1.bf16.msra.mxu0 0
        %845 = vmatprep.subr.bf16.mxu0 %v826
        %846 = vmatpush1.bf16.msra.mxu0 %v823
        %847 = vmatprep.subr.bf16.mxu0 0
        %848 = vmatpush2.bf16.msra.mxu0 0
        %849 = vmatprep.subr.bf16.mxu0 0
        %850 = vmatpush2.bf16.msra.mxu0 0
        %851 = vmatprep.subr.bf16.mxu0 0
        %852 = vmatpush2.bf16.msra.mxu0 0
        %853 = vmatprep.subr.bf16.mxu0 0
        %854 = vmatpush2.bf16.msra.mxu0 0
        %855 = vmatprep.subr.bf16.mxu0 0
        %856 = vmatpush2.bf16.msra.mxu0 0
        %857 = vmatprep.subr.bf16.mxu0 0
        %858 = vmatpush2.bf16.msra.mxu0 0
        %859 = vmatprep.subr.bf16.mxu0 0
        %860 = vmatpush2.bf16.msra.mxu0 0
        %861 = vmatprep.subr.bf16.mxu0 0
        %862 = vmatpush2.bf16.msra.mxu0 0
        %863 = vmatprep.mubr.bf16.mxu0 0
        %864 = vmatmul.mubr.bf16.gmra.mxu0 %v820
        %v865 = vpop.f32.mrf.mxu0
        %v866 = vadd.f32 0.0, %v865
        %v867 = vpop.f32.mrf.mxu0
        %v868 = vadd.f32 0.0, %v867
        %v869 = vpop.f32.mrf.mxu0
        %v870 = vpop.f32.mrf.mxu0
        %871 = vdwg.mxu0
        %872 = vmatprep.subr.bf16.mxu0 0
        %873 = vmatpush1.bf16.msra.mxu0 0
        %874 = vmatprep.subr.bf16.mxu0 0
        %875 = vmatpush1.bf16.msra.mxu0 0
        %876 = vmatprep.subr.bf16.mxu0 0
        %877 = vmatpush1.bf16.msra.mxu0 0
        %878 = vmatprep.subr.bf16.mxu0 0
        %879 = vmatpush1.bf16.msra.mxu0 0
        %880 = vmatprep.subr.bf16.mxu0 0
        %881 = vmatpush1.bf16.msra.mxu0 0
        %882 = vmatprep.subr.bf16.mxu0 0
        %883 = vmatpush1.bf16.msra.mxu0 0
        %884 = vmatprep.subr.bf16.mxu0 0
        %885 = vmatpush1.bf16.msra.mxu0 0
        %886 = vmatprep.subr.bf16.mxu0 0
        %887 = vmatpush1.bf16.msra.mxu0 %v829
        %888 = vmatprep.subr.bf16.mxu0 0
        %889 = vmatpush2.bf16.msra.mxu0 0
        %890 = vmatprep.subr.bf16.mxu0 0
        %891 = vmatpush2.bf16.msra.mxu0 0
        %892 = vmatprep.subr.bf16.mxu0 0
        %893 = vmatpush2.bf16.msra.mxu0 0
        %894 = vmatprep.subr.bf16.mxu0 0
        %895 = vmatpush2.bf16.msra.mxu0 0
        %896 = vmatprep.subr.bf16.mxu0 0
        %897 = vmatpush2.bf16.msra.mxu0 0
        %898 = vmatprep.subr.bf16.mxu0 0
        %899 = vmatpush2.bf16.msra.mxu0 0
        %900 = vmatprep.subr.bf16.mxu0 0
        %901 = vmatpush2.bf16.msra.mxu0 0
        %902 = vmatprep.subr.bf16.mxu0 0
        %903 = vmatpush2.bf16.msra.mxu0 0
        %904 = vmatprep.mubr.bf16.mxu0 0
        %905 = vmatmul.mubr.bf16.gmra.mxu0 %v820
        %v906 = vpop.f32.mrf.mxu0
        %v907 = vadd.f32 0.0, %v906
        %v908 = vpop.f32.mrf.mxu0
        %v909 = vpop.f32.mrf.mxu0
        %v910 = vpop.f32.mrf.mxu0
        %911 = vdwg.mxu0
        %v912 = vadd.f32 %v802, %v866
        %v913 = vadd.f32 %v803, %v868
        %v914 = vadd.f32 %v804, %v907
        %s915 = scalar_lea.vmem %s3, 16
        %v916 = vld [vmem:[%s915] sm:$0xf]
        %917 = vrot.lane.b32.xlu0 %v479, 96
        %v918 = vpop.permute.xlu0 %917
        %919 = vrot.lane.b32.xlu0 %v480, 96
        %v920 = vpop.permute.xlu0 %919
        %921 = vrot.lane.b32.xlu0 %v481, 96
        %v922 = vpop.permute.xlu0 %921
        %923 = vrot.lane.b32.xlu0 %v482, 96
        %v924 = vpop.permute.xlu0 %923
        %vm925 = vcmask 785408
        %v926 = vsel %vm925, %v918, %v920
        %v927 = vsel %vm925, %v920, %v922
        %v928 = vsel %vm925, %v922, %v924
        %v930 = vsel %vm495, %v916, 0
        %v933 = vsel %vm499, %v926, 0
        %v936 = vsel %vm499, %v927, 0
        %v939 = vsel %vm499, %v928, 0
        %941 = vmatprep.subr.bf16.mxu0 0
        %942 = vmatpush1.bf16.msra.mxu0 0
        %943 = vmatprep.subr.bf16.mxu0 0
        %944 = vmatpush1.bf16.msra.mxu0 0
        %945 = vmatprep.subr.bf16.mxu0 0
        %946 = vmatpush1.bf16.msra.mxu0 0
        %947 = vmatprep.subr.bf16.mxu0 0
        %948 = vmatpush1.bf16.msra.mxu0 0
        %949 = vmatprep.subr.bf16.mxu0 0
        %950 = vmatpush1.bf16.msra.mxu0 0
        %951 = vmatprep.subr.bf16.mxu0 0
        %952 = vmatpush1.bf16.msra.mxu0 0
        %953 = vmatprep.subr.bf16.mxu0 0
        %954 = vmatpush1.bf16.msra.mxu0 0
        %955 = vmatprep.subr.bf16.mxu0 %v936
        %956 = vmatpush1.bf16.msra.mxu0 %v933
        %957 = vmatprep.subr.bf16.mxu0 0
        %958 = vmatpush2.bf16.msra.mxu0 0
        %959 = vmatprep.subr.bf16.mxu0 0
        %960 = vmatpush2.bf16.msra.mxu0 0
        %961 = vmatprep.subr.bf16.mxu0 0
        %962 = vmatpush2.bf16.msra.mxu0 0
        %963 = vmatprep.subr.bf16.mxu0 0
        %964 = vmatpush2.bf16.msra.mxu0 0
        %965 = vmatprep.subr.bf16.mxu0 0
        %966 = vmatpush2.bf16.msra.mxu0 0
        %967 = vmatprep.subr.bf16.mxu0 0
        %968 = vmatpush2.bf16.msra.mxu0 0
        %969 = vmatprep.subr.bf16.mxu0 0
        %970 = vmatpush2.bf16.msra.mxu0 0
        %971 = vmatprep.subr.bf16.mxu0 0
        %972 = vmatpush2.bf16.msra.mxu0 0
        %973 = vmatprep.mubr.bf16.mxu0 0
        %974 = vmatmul.mubr.bf16.gmra.mxu0 %v930
        %v975 = vpop.f32.mrf.mxu0
        %v976 = vadd.f32 0.0, %v975
        %v977 = vpop.f32.mrf.mxu0
        %v978 = vadd.f32 0.0, %v977
        %v979 = vpop.f32.mrf.mxu0
        %v980 = vpop.f32.mrf.mxu0
        %981 = vdwg.mxu0
        %982 = vmatprep.subr.bf16.mxu0 0
        %983 = vmatpush1.bf16.msra.mxu0 0
        %984 = vmatprep.subr.bf16.mxu0 0
        %985 = vmatpush1.bf16.msra.mxu0 0
        %986 = vmatprep.subr.bf16.mxu0 0
        %987 = vmatpush1.bf16.msra.mxu0 0
        %988 = vmatprep.subr.bf16.mxu0 0
        %989 = vmatpush1.bf16.msra.mxu0 0
        %990 = vmatprep.subr.bf16.mxu0 0
        %991 = vmatpush1.bf16.msra.mxu0 0
        %992 = vmatprep.subr.bf16.mxu0 0
        %993 = vmatpush1.bf16.msra.mxu0 0
        %994 = vmatprep.subr.bf16.mxu0 0
        %995 = vmatpush1.bf16.msra.mxu0 0
        %996 = vmatprep.subr.bf16.mxu0 0
        %997 = vmatpush1.bf16.msra.mxu0 %v939
        %998 = vmatprep.subr.bf16.mxu0 0
        %999 = vmatpush2.bf16.msra.mxu0 0
        %1000 = vmatprep.subr.bf16.mxu0 0
        %1001 = vmatpush2.bf16.msra.mxu0 0
        %1002 = vmatprep.subr.bf16.mxu0 0
        %1003 = vmatpush2.bf16.msra.mxu0 0
        %1004 = vmatprep.subr.bf16.mxu0 0
        %1005 = vmatpush2.bf16.msra.mxu0 0
        %1006 = vmatprep.subr.bf16.mxu0 0
        %1007 = vmatpush2.bf16.msra.mxu0 0
        %1008 = vmatprep.subr.bf16.mxu0 0
        %1009 = vmatpush2.bf16.msra.mxu0 0
        %1010 = vmatprep.subr.bf16.mxu0 0
        %1011 = vmatpush2.bf16.msra.mxu0 0
        %1012 = vmatprep.subr.bf16.mxu0 0
        %1013 = vmatpush2.bf16.msra.mxu0 0
        %1014 = vmatprep.mubr.bf16.mxu0 0
        %1015 = vmatmul.mubr.bf16.gmra.mxu0 %v930
        %v1016 = vpop.f32.mrf.mxu0
        %v1017 = vadd.f32 0.0, %v1016
        %v1018 = vpop.f32.mrf.mxu0
        %v1019 = vpop.f32.mrf.mxu0
        %v1020 = vpop.f32.mrf.mxu0
        %1021 = vdwg.mxu0
        %v1022 = vadd.f32 %v912, %v976
        %v1023 = vadd.f32 %v913, %v978
        %v1024 = vadd.f32 %v914, %v1017
        %s1025 = scalar_lea.vmem %s3, 20
        %v1026 = vld [vmem:[%s1025] sm:$0xf]
        %1027 = vrot.lane.b32.xlu0 %v479, 95
        %v1028 = vpop.permute.xlu0 %1027
        %1029 = vrot.lane.b32.xlu0 %v480, 95
        %v1030 = vpop.permute.xlu0 %1029
        %1031 = vrot.lane.b32.xlu0 %v481, 95
        %v1032 = vpop.permute.xlu0 %1031
        %1033 = vrot.lane.b32.xlu0 %v482, 95
        %v1034 = vpop.permute.xlu0 %1033
        %vm1035 = vcmask 777216
        %v1036 = vsel %vm1035, %v1028, %v1030
        %v1037 = vsel %vm1035, %v1030, %v1032
        %v1038 = vsel %vm1035, %v1032, %v1034
        %v1040 = vsel %vm495, %v1026, 0
        %v1043 = vsel %vm499, %v1036, 0
        %v1046 = vsel %vm499, %v1037, 0
        %v1049 = vsel %vm499, %v1038, 0
        %1051 = vmatprep.subr.bf16.mxu0 0
        %1052 = vmatpush1.bf16.msra.mxu0 0
        %1053 = vmatprep.subr.bf16.mxu0 0
        %1054 = vmatpush1.bf16.msra.mxu0 0
        %1055 = vmatprep.subr.bf16.mxu0 0
        %1056 = vmatpush1.bf16.msra.mxu0 0
        %1057 = vmatprep.subr.bf16.mxu0 0
        %1058 = vmatpush1.bf16.msra.mxu0 0
        %1059 = vmatprep.subr.bf16.mxu0 0
        %1060 = vmatpush1.bf16.msra.mxu0 0
        %1061 = vmatprep.subr.bf16.mxu0 0
        %1062 = vmatpush1.bf16.msra.mxu0 0
        %1063 = vmatprep.subr.bf16.mxu0 0
        %1064 = vmatpush1.bf16.msra.mxu0 0
        %1065 = vmatprep.subr.bf16.mxu0 %v1046
        %1066 = vmatpush1.bf16.msra.mxu0 %v1043
        %1067 = vmatprep.subr.bf16.mxu0 0
        %1068 = vmatpush2.bf16.msra.mxu0 0
        %1069 = vmatprep.subr.bf16.mxu0 0
        %1070 = vmatpush2.bf16.msra.mxu0 0
        %1071 = vmatprep.subr.bf16.mxu0 0
        %1072 = vmatpush2.bf16.msra.mxu0 0
        %1073 = vmatprep.subr.bf16.mxu0 0
        %1074 = vmatpush2.bf16.msra.mxu0 0
        %1075 = vmatprep.subr.bf16.mxu0 0
        %1076 = vmatpush2.bf16.msra.mxu0 0
        %1077 = vmatprep.subr.bf16.mxu0 0
        %1078 = vmatpush2.bf16.msra.mxu0 0
        %1079 = vmatprep.subr.bf16.mxu0 0
        %1080 = vmatpush2.bf16.msra.mxu0 0
        %1081 = vmatprep.subr.bf16.mxu0 0
        %1082 = vmatpush2.bf16.msra.mxu0 0
        %1083 = vmatprep.mubr.bf16.mxu0 0
        %1084 = vmatmul.mubr.bf16.gmra.mxu0 %v1040
        %v1085 = vpop.f32.mrf.mxu0
        %v1086 = vadd.f32 0.0, %v1085
        %v1087 = vpop.f32.mrf.mxu0
        %v1088 = vadd.f32 0.0, %v1087
        %v1089 = vpop.f32.mrf.mxu0
        %v1090 = vpop.f32.mrf.mxu0
        %1091 = vdwg.mxu0
        %1092 = vmatprep.subr.bf16.mxu0 0
        %1093 = vmatpush1.bf16.msra.mxu0 0
        %1094 = vmatprep.subr.bf16.mxu0 0
        %1095 = vmatpush1.bf16.msra.mxu0 0
        %1096 = vmatprep.subr.bf16.mxu0 0
        %1097 = vmatpush1.bf16.msra.mxu0 0
        %1098 = vmatprep.subr.bf16.mxu0 0
        %1099 = vmatpush1.bf16.msra.mxu0 0
        %1100 = vmatprep.subr.bf16.mxu0 0
        %1101 = vmatpush1.bf16.msra.mxu0 0
        %1102 = vmatprep.subr.bf16.mxu0 0
        %1103 = vmatpush1.bf16.msra.mxu0 0
        %1104 = vmatprep.subr.bf16.mxu0 0
        %1105 = vmatpush1.bf16.msra.mxu0 0
        %1106 = vmatprep.subr.bf16.mxu0 0
        %1107 = vmatpush1.bf16.msra.mxu0 %v1049
        %1108 = vmatprep.subr.bf16.mxu0 0
        %1109 = vmatpush2.bf16.msra.mxu0 0
        %1110 = vmatprep.subr.bf16.mxu0 0
        %1111 = vmatpush2.bf16.msra.mxu0 0
        %1112 = vmatprep.subr.bf16.mxu0 0
        %1113 = vmatpush2.bf16.msra.mxu0 0
        %1114 = vmatprep.subr.bf16.mxu0 0
        %1115 = vmatpush2.bf16.msra.mxu0 0
        %1116 = vmatprep.subr.bf16.mxu0 0
        %1117 = vmatpush2.bf16.msra.mxu0 0
        %1118 = vmatprep.subr.bf16.mxu0 0
        %1119 = vmatpush2.bf16.msra.mxu0 0
        %1120 = vmatprep.subr.bf16.mxu0 0
        %1121 = vmatpush2.bf16.msra.mxu0 0
        %1122 = vmatprep.subr.bf16.mxu0 0
        %1123 = vmatpush2.bf16.msra.mxu0 0
        %1124 = vmatprep.mubr.bf16.mxu0 0
        %1125 = vmatmul.mubr.bf16.gmra.mxu0 %v1040
        %v1126 = vpop.f32.mrf.mxu0
        %v1127 = vadd.f32 0.0, %v1126
        %v1128 = vpop.f32.mrf.mxu0
        %v1129 = vpop.f32.mrf.mxu0
        %v1130 = vpop.f32.mrf.mxu0
        %1131 = vdwg.mxu0
        %v1132 = vadd.f32 %v1022, %v1086
        %v1133 = vadd.f32 %v1023, %v1088
        %v1134 = vadd.f32 %v1024, %v1127
        %s1135 = scalar_lea.vmem %s3, 24
        %v1136 = vld [vmem:[%s1135] sm:$0xf]
        %1137 = vrot.lane.b32.xlu0 %v479, 73
        %v1138 = vpop.permute.xlu0 %1137
        %1139 = vrot.lane.b32.xlu0 %v480, 73
        %v1140 = vpop.permute.xlu0 %1139
        %1141 = vrot.lane.b32.xlu0 %v481, 73
        %v1142 = vpop.permute.xlu0 %1141
        %1143 = vrot.lane.b32.xlu0 %v482, 73
        %v1144 = vpop.permute.xlu0 %1143
        %vm1145 = vcmask 596992
        %v1146 = vsel %vm1145, %v1138, %v1140
        %v1147 = vsel %vm1145, %v1140, %v1142
        %v1148 = vsel %vm1145, %v1142, %v1144
        %v1150 = vsel %vm495, %v1136, 0
        %v1153 = vsel %vm499, %v1146, 0
        %v1156 = vsel %vm499, %v1147, 0
        %v1159 = vsel %vm499, %v1148, 0
        %1161 = vmatprep.subr.bf16.mxu0 0
        %1162 = vmatpush1.bf16.msra.mxu0 0
        %1163 = vmatprep.subr.bf16.mxu0 0
        %1164 = vmatpush1.bf16.msra.mxu0 0
        %1165 = vmatprep.subr.bf16.mxu0 0
        %1166 = vmatpush1.bf16.msra.mxu0 0
        %1167 = vmatprep.subr.bf16.mxu0 0
        %1168 = vmatpush1.bf16.msra.mxu0 0
        %1169 = vmatprep.subr.bf16.mxu0 0
        %1170 = vmatpush1.bf16.msra.mxu0 0
        %1171 = vmatprep.subr.bf16.mxu0 0
        %1172 = vmatpush1.bf16.msra.mxu0 0
        %1173 = vmatprep.subr.bf16.mxu0 0
        %1174 = vmatpush1.bf16.msra.mxu0 0
        %1175 = vmatprep.subr.bf16.mxu0 %v1156
        %1176 = vmatpush1.bf16.msra.mxu0 %v1153
        %1177 = vmatprep.subr.bf16.mxu0 0
        %1178 = vmatpush2.bf16.msra.mxu0 0
        %1179 = vmatprep.subr.bf16.mxu0 0
        %1180 = vmatpush2.bf16.msra.mxu0 0
        %1181 = vmatprep.subr.bf16.mxu0 0
        %1182 = vmatpush2.bf16.msra.mxu0 0
        %1183 = vmatprep.subr.bf16.mxu0 0
        %1184 = vmatpush2.bf16.msra.mxu0 0
        %1185 = vmatprep.subr.bf16.mxu0 0
        %1186 = vmatpush2.bf16.msra.mxu0 0
        %1187 = vmatprep.subr.bf16.mxu0 0
        %1188 = vmatpush2.bf16.msra.mxu0 0
        %1189 = vmatprep.subr.bf16.mxu0 0
        %1190 = vmatpush2.bf16.msra.mxu0 0
        %1191 = vmatprep.subr.bf16.mxu0 0
        %1192 = vmatpush2.bf16.msra.mxu0 0
        %1193 = vmatprep.mubr.bf16.mxu0 0
        %1194 = vmatmul.mubr.bf16.gmra.mxu0 %v1150
        %v1195 = vpop.f32.mrf.mxu0
        %v1196 = vadd.f32 0.0, %v1195
        %v1197 = vpop.f32.mrf.mxu0
        %v1198 = vadd.f32 0.0, %v1197
        %v1199 = vpop.f32.mrf.mxu0
        %v1200 = vpop.f32.mrf.mxu0
        %1201 = vdwg.mxu0
        %1202 = vmatprep.subr.bf16.mxu0 0
        %1203 = vmatpush1.bf16.msra.mxu0 0
        %1204 = vmatprep.subr.bf16.mxu0 0
        %1205 = vmatpush1.bf16.msra.mxu0 0
        %1206 = vmatprep.subr.bf16.mxu0 0
        %1207 = vmatpush1.bf16.msra.mxu0 0
        %1208 = vmatprep.subr.bf16.mxu0 0
        %1209 = vmatpush1.bf16.msra.mxu0 0
        %1210 = vmatprep.subr.bf16.mxu0 0
        %1211 = vmatpush1.bf16.msra.mxu0 0
        %1212 = vmatprep.subr.bf16.mxu0 0
        %1213 = vmatpush1.bf16.msra.mxu0 0
        %1214 = vmatprep.subr.bf16.mxu0 0
        %1215 = vmatpush1.bf16.msra.mxu0 0
        %1216 = vmatprep.subr.bf16.mxu0 0
        %1217 = vmatpush1.bf16.msra.mxu0 %v1159
        %1218 = vmatprep.subr.bf16.mxu0 0
        %1219 = vmatpush2.bf16.msra.mxu0 0
        %1220 = vmatprep.subr.bf16.mxu0 0
        %1221 = vmatpush2.bf16.msra.mxu0 0
        %1222 = vmatprep.subr.bf16.mxu0 0
        %1223 = vmatpush2.bf16.msra.mxu0 0
        %1224 = vmatprep.subr.bf16.mxu0 0
        %1225 = vmatpush2.bf16.msra.mxu0 0
        %1226 = vmatprep.subr.bf16.mxu0 0
        %1227 = vmatpush2.bf16.msra.mxu0 0
        %1228 = vmatprep.subr.bf16.mxu0 0
        %1229 = vmatpush2.bf16.msra.mxu0 0
        %1230 = vmatprep.subr.bf16.mxu0 0
        %1231 = vmatpush2.bf16.msra.mxu0 0
        %1232 = vmatprep.subr.bf16.mxu0 0
        %1233 = vmatpush2.bf16.msra.mxu0 0
        %1234 = vmatprep.mubr.bf16.mxu0 0
        %1235 = vmatmul.mubr.bf16.gmra.mxu0 %v1150
        %v1236 = vpop.f32.mrf.mxu0
        %v1237 = vadd.f32 0.0, %v1236
        %v1238 = vpop.f32.mrf.mxu0
        %v1239 = vpop.f32.mrf.mxu0
        %v1240 = vpop.f32.mrf.mxu0
        %1241 = vdwg.mxu0
        %v1242 = vadd.f32 %v1132, %v1196
        %v1243 = vadd.f32 %v1133, %v1198
        %v1244 = vadd.f32 %v1134, %v1237
        %s1245 = scalar_lea.vmem %s3, 28
        %v1246 = vld [vmem:[%s1245] sm:$0xf]
        %1247 = vrot.lane.b32.xlu0 %v479, 72
        %v1248 = vpop.permute.xlu0 %1247
        %1249 = vrot.lane.b32.xlu0 %v480, 72
        %v1250 = vpop.permute.xlu0 %1249
        %1251 = vrot.lane.b32.xlu0 %v481, 72
        %v1252 = vpop.permute.xlu0 %1251
        %1253 = vrot.lane.b32.xlu0 %v482, 72
        %v1254 = vpop.permute.xlu0 %1253
        %vm1255 = vcmask 588800
        %v1256 = vsel %vm1255, %v1248, %v1250
        %v1257 = vsel %vm1255, %v1250, %v1252
        %v1258 = vsel %vm1255, %v1252, %v1254
        %v1260 = vsel %vm495, %v1246, 0
        %v1263 = vsel %vm499, %v1256, 0
        %v1266 = vsel %vm499, %v1257, 0
        %v1269 = vsel %vm499, %v1258, 0
        %1271 = vmatprep.subr.bf16.mxu0 0
        %1272 = vmatpush1.bf16.msra.mxu0 0
        %1273 = vmatprep.subr.bf16.mxu0 0
        %1274 = vmatpush1.bf16.msra.mxu0 0
        %1275 = vmatprep.subr.bf16.mxu0 0
        %1276 = vmatpush1.bf16.msra.mxu0 0
        %1277 = vmatprep.subr.bf16.mxu0 0
        %1278 = vmatpush1.bf16.msra.mxu0 0
        %1279 = vmatprep.subr.bf16.mxu0 0
        %1280 = vmatpush1.bf16.msra.mxu0 0
        %1281 = vmatprep.subr.bf16.mxu0 0
        %1282 = vmatpush1.bf16.msra.mxu0 0
        %1283 = vmatprep.subr.bf16.mxu0 0
        %1284 = vmatpush1.bf16.msra.mxu0 0
        %1285 = vmatprep.subr.bf16.mxu0 %v1266
        %1286 = vmatpush1.bf16.msra.mxu0 %v1263
        %1287 = vmatprep.subr.bf16.mxu0 0
        %1288 = vmatpush2.bf16.msra.mxu0 0
        %1289 = vmatprep.subr.bf16.mxu0 0
        %1290 = vmatpush2.bf16.msra.mxu0 0
        %1291 = vmatprep.subr.bf16.mxu0 0
        %1292 = vmatpush2.bf16.msra.mxu0 0
        %1293 = vmatprep.subr.bf16.mxu0 0
        %1294 = vmatpush2.bf16.msra.mxu0 0
        %1295 = vmatprep.subr.bf16.mxu0 0
        %1296 = vmatpush2.bf16.msra.mxu0 0
        %1297 = vmatprep.subr.bf16.mxu0 0
        %1298 = vmatpush2.bf16.msra.mxu0 0
        %1299 = vmatprep.subr.bf16.mxu0 0
        %1300 = vmatpush2.bf16.msra.mxu0 0
        %1301 = vmatprep.subr.bf16.mxu0 0
        %1302 = vmatpush2.bf16.msra.mxu0 0
        %1303 = vmatprep.mubr.bf16.mxu0 0
        %1304 = vmatmul.mubr.bf16.gmra.mxu0 %v1260
        %v1305 = vpop.f32.mrf.mxu0
        %v1306 = vadd.f32 0.0, %v1305
        %v1307 = vpop.f32.mrf.mxu0
        %v1308 = vadd.f32 0.0, %v1307
        %v1309 = vpop.f32.mrf.mxu0
        %v1310 = vpop.f32.mrf.mxu0
        %1311 = vdwg.mxu0
        %1312 = vmatprep.subr.bf16.mxu0 0
        %1313 = vmatpush1.bf16.msra.mxu0 0
        %1314 = vmatprep.subr.bf16.mxu0 0
        %1315 = vmatpush1.bf16.msra.mxu0 0
        %1316 = vmatprep.subr.bf16.mxu0 0
        %1317 = vmatpush1.bf16.msra.mxu0 0
        %1318 = vmatprep.subr.bf16.mxu0 0
        %1319 = vmatpush1.bf16.msra.mxu0 0
        %1320 = vmatprep.subr.bf16.mxu0 0
        %1321 = vmatpush1.bf16.msra.mxu0 0
        %1322 = vmatprep.subr.bf16.mxu0 0
        %1323 = vmatpush1.bf16.msra.mxu0 0
        %1324 = vmatprep.subr.bf16.mxu0 0
        %1325 = vmatpush1.bf16.msra.mxu0 0
        %1326 = vmatprep.subr.bf16.mxu0 0
        %1327 = vmatpush1.bf16.msra.mxu0 %v1269
        %1328 = vmatprep.subr.bf16.mxu0 0
        %1329 = vmatpush2.bf16.msra.mxu0 0
        %1330 = vmatprep.subr.bf16.mxu0 0
        %1331 = vmatpush2.bf16.msra.mxu0 0
        %1332 = vmatprep.subr.bf16.mxu0 0
        %1333 = vmatpush2.bf16.msra.mxu0 0
        %1334 = vmatprep.subr.bf16.mxu0 0
        %1335 = vmatpush2.bf16.msra.mxu0 0
        %1336 = vmatprep.subr.bf16.mxu0 0
        %1337 = vmatpush2.bf16.msra.mxu0 0
        %1338 = vmatprep.subr.bf16.mxu0 0
        %1339 = vmatpush2.bf16.msra.mxu0 0
        %1340 = vmatprep.subr.bf16.mxu0 0
        %1341 = vmatpush2.bf16.msra.mxu0 0
        %1342 = vmatprep.subr.bf16.mxu0 0
        %1343 = vmatpush2.bf16.msra.mxu0 0
        %1344 = vmatprep.mubr.bf16.mxu0 0
        %1345 = vmatmul.mubr.bf16.gmra.mxu0 %v1260
        %v1346 = vpop.f32.mrf.mxu0
        %v1347 = vadd.f32 0.0, %v1346
        %v1348 = vpop.f32.mrf.mxu0
        %v1349 = vpop.f32.mrf.mxu0
        %v1350 = vpop.f32.mrf.mxu0
        %1351 = vdwg.mxu0
        %v1352 = vadd.f32 %v1242, %v1306
        %v1353 = vadd.f32 %v1243, %v1308
        %v1354 = vadd.f32 %v1244, %v1347
        %s1355 = scalar_lea.vmem %s3, 32
        %v1356 = vld [vmem:[%s1355] sm:$0xf]
        %1357 = vrot.lane.b32.xlu0 %v479, 71
        %v1358 = vpop.permute.xlu0 %1357
        %1359 = vrot.lane.b32.xlu0 %v480, 71
        %v1360 = vpop.permute.xlu0 %1359
        %1361 = vrot.lane.b32.xlu0 %v481, 71
        %v1362 = vpop.permute.xlu0 %1361
        %1363 = vrot.lane.b32.xlu0 %v482, 71
        %v1364 = vpop.permute.xlu0 %1363
        %vm1365 = vcmask 580608
        %v1366 = vsel %vm1365, %v1358, %v1360
        %v1367 = vsel %vm1365, %v1360, %v1362
        %v1368 = vsel %vm1365, %v1362, %v1364
        %v1370 = vsel %vm495, %v1356, 0
        %v1373 = vsel %vm499, %v1366, 0
        %v1376 = vsel %vm499, %v1367, 0
        %v1379 = vsel %vm499, %v1368, 0
        %1381 = vmatprep.subr.bf16.mxu0 0
        %1382 = vmatpush1.bf16.msra.mxu0 0
        %1383 = vmatprep.subr.bf16.mxu0 0
        %1384 = vmatpush1.bf16.msra.mxu0 0
        %1385 = vmatprep.subr.bf16.mxu0 0
        %1386 = vmatpush1.bf16.msra.mxu0 0
        %1387 = vmatprep.subr.bf16.mxu0 0
        %1388 = vmatpush1.bf16.msra.mxu0 0
        %1389 = vmatprep.subr.bf16.mxu0 0
        %1390 = vmatpush1.bf16.msra.mxu0 0
        %1391 = vmatprep.subr.bf16.mxu0 0
        %1392 = vmatpush1.bf16.msra.mxu0 0
        %1393 = vmatprep.subr.bf16.mxu0 0
        %1394 = vmatpush1.bf16.msra.mxu0 0
        %1395 = vmatprep.subr.bf16.mxu0 %v1376
        %1396 = vmatpush1.bf16.msra.mxu0 %v1373
        %1397 = vmatprep.subr.bf16.mxu0 0
        %1398 = vmatpush2.bf16.msra.mxu0 0
        %1399 = vmatprep.subr.bf16.mxu0 0
        %1400 = vmatpush2.bf16.msra.mxu0 0
        %1401 = vmatprep.subr.bf16.mxu0 0
        %1402 = vmatpush2.bf16.msra.mxu0 0
        %1403 = vmatprep.subr.bf16.mxu0 0
        %1404 = vmatpush2.bf16.msra.mxu0 0
        %1405 = vmatprep.subr.bf16.mxu0 0
        %1406 = vmatpush2.bf16.msra.mxu0 0
        %1407 = vmatprep.subr.bf16.mxu0 0
        %1408 = vmatpush2.bf16.msra.mxu0 0
        %1409 = vmatprep.subr.bf16.mxu0 0
        %1410 = vmatpush2.bf16.msra.mxu0 0
        %1411 = vmatprep.subr.bf16.mxu0 0
        %1412 = vmatpush2.bf16.msra.mxu0 0
        %1413 = vmatprep.mubr.bf16.mxu0 0
        %1414 = vmatmul.mubr.bf16.gmra.mxu0 %v1370
        %v1415 = vpop.f32.mrf.mxu0
        %v1416 = vadd.f32 0.0, %v1415
        %v1417 = vpop.f32.mrf.mxu0
        %v1418 = vadd.f32 0.0, %v1417
        %v1419 = vpop.f32.mrf.mxu0
        %v1420 = vpop.f32.mrf.mxu0
        %1421 = vdwg.mxu0
        %1422 = vmatprep.subr.bf16.mxu0 0
        %1423 = vmatpush1.bf16.msra.mxu0 0
        %1424 = vmatprep.subr.bf16.mxu0 0
        %1425 = vmatpush1.bf16.msra.mxu0 0
        %1426 = vmatprep.subr.bf16.mxu0 0
        %1427 = vmatpush1.bf16.msra.mxu0 0
        %1428 = vmatprep.subr.bf16.mxu0 0
        %1429 = vmatpush1.bf16.msra.mxu0 0
        %1430 = vmatprep.subr.bf16.mxu0 0
        %1431 = vmatpush1.bf16.msra.mxu0 0
        %1432 = vmatprep.subr.bf16.mxu0 0
        %1433 = vmatpush1.bf16.msra.mxu0 0
        %1434 = vmatprep.subr.bf16.mxu0 0
        %1435 = vmatpush1.bf16.msra.mxu0 0
        %1436 = vmatprep.subr.bf16.mxu0 0
        %1437 = vmatpush1.bf16.msra.mxu0 %v1379
        %1438 = vmatprep.subr.bf16.mxu0 0
        %1439 = vmatpush2.bf16.msra.mxu0 0
        %1440 = vmatprep.subr.bf16.mxu0 0
        %1441 = vmatpush2.bf16.msra.mxu0 0
        %1442 = vmatprep.subr.bf16.mxu0 0
        %1443 = vmatpush2.bf16.msra.mxu0 0
        %1444 = vmatprep.subr.bf16.mxu0 0
        %1445 = vmatpush2.bf16.msra.mxu0 0
        %1446 = vmatprep.subr.bf16.mxu0 0
        %1447 = vmatpush2.bf16.msra.mxu0 0
        %1448 = vmatprep.subr.bf16.mxu0 0
        %1449 = vmatpush2.bf16.msra.mxu0 0
        %1450 = vmatprep.subr.bf16.mxu0 0
        %1451 = vmatpush2.bf16.msra.mxu0 0
        %1452 = vmatprep.subr.bf16.mxu0 0
        %1453 = vmatpush2.bf16.msra.mxu0 0
        %1454 = vmatprep.mubr.bf16.mxu0 0
        %1455 = vmatmul.mubr.bf16.gmra.mxu0 %v1370
        %v1456 = vpop.f32.mrf.mxu0
        %v1457 = vadd.f32 0.0, %v1456
        %v1458 = vpop.f32.mrf.mxu0
        %v1459 = vpop.f32.mrf.mxu0
        %v1460 = vpop.f32.mrf.mxu0
        %1461 = vdwg.mxu0
        %v1462 = vadd.f32 %v1352, %v1416
        %v1463 = vadd.f32 %v1353, %v1418
        %v1464 = vadd.f32 %v1354, %v1457
        %v1465 = vld [vmem:[%s4] sm:$0xff]
        %1467 = vset.pattern.permute.xlu0 0
        %1468 = vperm.xlu0 %1467, %v1465
        %v1469 = vpop.permute.xlu0 %1468
        %v1471 = vadd.f32 %v1462, %v1469
        %v1472 = vadd.f32 %v1463, %v1469
        %v1473 = vadd.f32 %v1464, %v1469
        %vm1474 = vcmp.ge.f32.partialorder %v1471, 0.0
        %vm1475 = vcmp.ge.f32.partialorder %v1472, 0.0
        %vm1476 = vcmp.ge.f32.partialorder %v1473, 0.0
        %v1477 = vmul.f32 %v1471, 0.2
        %v1478 = vmul.f32 %v1472, 0.2
        %v1479 = vmul.f32 %v1473, 0.2
        %v1480 = vsel %vm1474, %v1471, %v1477
        %v1481 = vsel %vm1475, %v1472, %v1478
        %v1482 = vsel %vm1476, %v1473, %v1479
        %vm1483 = vcmask 257024
        %1484 = vst.msk [vmem:[#allocation2] sm:$0xf] %vm1483, 0
        %vm1485 = vcmask 519424
        %1486 = vst.msk [vmem:[#allocation2 + $0xc] sm:$0xf] %vm1485, 0
        %v1487 = vmul.f32 %v1480, %v422
        %v1488 = vmul.f32 %v1481, %v426
        %v1489 = vmul.f32 %v1482, %v430
        %v1490 = vpack.c.bf16 %v1487, %v1487
        %v1491 = vpack.c.bf16 %v1488, %v1488
        %v1492 = vpack.c.bf16 %v1489, %v1489
        %v1496 = vunpack.c.l.b16 %v1490
        %v1497 = vunpack.c.l.b16 %v1491
        %v1498 = vunpack.c.l.b16 %v1492
        %v1499 = vpack.c.b16 %v1497, %v1496
        %v1500 = vpack.c.b16 %v1498, %v1498
        %1501 = vrot.lane.b32.xlu0 %v1499, 32
        %v1502 = vpop.permute.xlu0 %1501
        %1503 = vrot.lane.b32.xlu0 %v1500, 32
        %v1504 = vpop.permute.xlu0 %1503
        %v1505 = vrot.slane %v1502, 4
        %v1506 = vrot.slane %v1504, 4
        %vm1507 = vcmask 261120
        %v1508 = vsel %vm1507, %v1505, %v1502
        %vm1509 = vcmask 1043456
        %v1510 = vsel %vm1509, %v1505, %v1506
        %v1511 = vsel %vm1507, %v1510, %v1504
        %vm1514 = vcmask 1043712
        %vm1515 = vcmask 1047556
        %vm1516 = vmor %vm1515, %vm1514
        %1517 = vst.msk [vmem:[#allocation2] sm:$0xff] %vm1516, %v1508
        %vm1518 = vcmask 261124
        %vm1519 = vmor %vm1518, %vm499
        %1520 = vst.msk [vmem:[#allocation2 + $0x8] sm:$0xff] %vm1519, %v1511
        %v1521 = vld [vmem:[%s5] sm:$0xf]
        %v1522 = vld [vmem:[%s5 + $0x4] sm:$0xf]
        %v1523 = vld [vmem:[#allocation2] sm:$0xff]
        %v1524 = vld [vmem:[#allocation2 + $0x8] sm:$0xff]
        %s1525 = scalar_lea.vmem %s5, 8
        %v1526 = vld [vmem:[%s1525] sm:$0xf]
        %v1527 = vld [vmem:[%s1525 + $0x4] sm:$0xf]
        %v1530 = vunpack.c.l.b16 %v1526
        %v1531 = vunpack.c.l.b16 %v1527
        %v1532 = vpack.c.b16 %v1531, %v1530
        %v1535 = vunpack.c.l.b16 %v1523
        %v1536 = vunpack.c.h.b16 %v1523
        %v1537 = vunpack.c.l.b16 %v1524
        %v1538 = vunpack.c.h.b16 %v1524
        %v1539 = vpack.c.b16 %v1535, %v1535
        %v1540 = vpack.c.b16 %v1536, %v1536
        %v1541 = vpack.c.b16 %v1537, %v1537
        %v1542 = vpack.c.b16 %v1538, %v1538
        %1543 = vrot.lane.b32.xlu0 %v1539, 120
        %v1544 = vpop.permute.xlu0 %1543
        %1545 = vrot.lane.b32.xlu0 %v1540, 120
        %v1546 = vpop.permute.xlu0 %1545
        %1547 = vrot.lane.b32.xlu0 %v1541, 120
        %v1548 = vpop.permute.xlu0 %1547
        %1549 = vrot.lane.b32.xlu0 %v1542, 120
        %v1550 = vpop.permute.xlu0 %1549
        %v1551 = vsel %vm491, %v1544, %v1546
        %v1552 = vsel %vm491, %v1546, %v1548
        %v1553 = vsel %vm491, %v1548, %v1550
        %v1555 = vsel %vm495, %v1532, 0
        %v1558 = vsel %vm499, %v1551, 0
        %v1561 = vsel %vm499, %v1552, 0
        %v1564 = vsel %vm499, %v1553, 0
        %1566 = vmatprep.subr.bf16.mxu0 0
        %1567 = vmatpush1.bf16.msra.mxu0 0
        %1568 = vmatprep.subr.bf16.mxu0 0
        %1569 = vmatpush1.bf16.msra.mxu0 0
        %1570 = vmatprep.subr.bf16.mxu0 0
        %1571 = vmatpush1.bf16.msra.mxu0 0
        %1572 = vmatprep.subr.bf16.mxu0 0
        %1573 = vmatpush1.bf16.msra.mxu0 0
        %1574 = vmatprep.subr.bf16.mxu0 0
        %1575 = vmatpush1.bf16.msra.mxu0 0
        %1576 = vmatprep.subr.bf16.mxu0 0
        %1577 = vmatpush1.bf16.msra.mxu0 0
        %1578 = vmatprep.subr.bf16.mxu0 0
        %1579 = vmatpush1.bf16.msra.mxu0 0
        %1580 = vmatprep.subr.bf16.mxu0 %v1561
        %1581 = vmatpush1.bf16.msra.mxu0 %v1558
        %1582 = vmatprep.subr.bf16.mxu0 0
        %1583 = vmatpush2.bf16.msra.mxu0 0
        %1584 = vmatprep.subr.bf16.mxu0 0
        %1585 = vmatpush2.bf16.msra.mxu0 0
        %1586 = vmatprep.subr.bf16.mxu0 0
        %1587 = vmatpush2.bf16.msra.mxu0 0
        %1588 = vmatprep.subr.bf16.mxu0 0
        %1589 = vmatpush2.bf16.msra.mxu0 0
        %1590 = vmatprep.subr.bf16.mxu0 0
        %1591 = vmatpush2.bf16.msra.mxu0 0
        %1592 = vmatprep.subr.bf16.mxu0 0
        %1593 = vmatpush2.bf16.msra.mxu0 0
        %1594 = vmatprep.subr.bf16.mxu0 0
        %1595 = vmatpush2.bf16.msra.mxu0 0
        %1596 = vmatprep.subr.bf16.mxu0 0
        %1597 = vmatpush2.bf16.msra.mxu0 0
        %1598 = vmatprep.mubr.bf16.mxu0 0
        %1599 = vmatmul.mubr.bf16.gmra.mxu0 %v1555
        %v1600 = vpop.f32.mrf.mxu0
        %v1601 = vadd.f32 0.0, %v1600
        %v1602 = vpop.f32.mrf.mxu0
        %v1603 = vadd.f32 0.0, %v1602
        %v1604 = vpop.f32.mrf.mxu0
        %v1605 = vadd.f32 0.0, %v1604
        %v1606 = vpop.f32.mrf.mxu0
        %v1607 = vadd.f32 0.0, %v1606
        %1608 = vdwg.mxu0
        %1609 = vmatprep.subr.bf16.mxu0 0
        %1610 = vmatpush1.bf16.msra.mxu0 0
        %1611 = vmatprep.subr.bf16.mxu0 0
        %1612 = vmatpush1.bf16.msra.mxu0 0
        %1613 = vmatprep.subr.bf16.mxu0 0
        %1614 = vmatpush1.bf16.msra.mxu0 0
        %1615 = vmatprep.subr.bf16.mxu0 0
        %1616 = vmatpush1.bf16.msra.mxu0 0
        %1617 = vmatprep.subr.bf16.mxu0 0
        %1618 = vmatpush1.bf16.msra.mxu0 0
        %1619 = vmatprep.subr.bf16.mxu0 0
        %1620 = vmatpush1.bf16.msra.mxu0 0
        %1621 = vmatprep.subr.bf16.mxu0 0
        %1622 = vmatpush1.bf16.msra.mxu0 0
        %1623 = vmatprep.subr.bf16.mxu0 0
        %1624 = vmatpush1.bf16.msra.mxu0 %v1564
        %1625 = vmatprep.subr.bf16.mxu0 0
        %1626 = vmatpush2.bf16.msra.mxu0 0
        %1627 = vmatprep.subr.bf16.mxu0 0
        %1628 = vmatpush2.bf16.msra.mxu0 0
        %1629 = vmatprep.subr.bf16.mxu0 0
        %1630 = vmatpush2.bf16.msra.mxu0 0
        %1631 = vmatprep.subr.bf16.mxu0 0
        %1632 = vmatpush2.bf16.msra.mxu0 0
        %1633 = vmatprep.subr.bf16.mxu0 0
        %1634 = vmatpush2.bf16.msra.mxu0 0
        %1635 = vmatprep.subr.bf16.mxu0 0
        %1636 = vmatpush2.bf16.msra.mxu0 0
        %1637 = vmatprep.subr.bf16.mxu0 0
        %1638 = vmatpush2.bf16.msra.mxu0 0
        %1639 = vmatprep.subr.bf16.mxu0 0
        %1640 = vmatpush2.bf16.msra.mxu0 0
        %1641 = vmatprep.mubr.bf16.mxu0 0
        %1642 = vmatmul.mubr.bf16.gmra.mxu0 %v1555
        %v1643 = vpop.f32.mrf.mxu0
        %v1644 = vadd.f32 0.0, %v1643
        %v1645 = vpop.f32.mrf.mxu0
        %v1646 = vpop.f32.mrf.mxu0
        %v1647 = vadd.f32 0.0, %v1646
        %v1648 = vpop.f32.mrf.mxu0
        %1649 = vdwg.mxu0
        %v1652 = vunpack.c.l.b16 %v1521
        %v1653 = vunpack.c.l.b16 %v1522
        %v1654 = vpack.c.b16 %v1653, %v1652
        %1655 = vrot.lane.b32.xlu0 %v1539, 121
        %v1656 = vpop.permute.xlu0 %1655
        %1657 = vrot.lane.b32.xlu0 %v1540, 121
        %v1658 = vpop.permute.xlu0 %1657
        %1659 = vrot.lane.b32.xlu0 %v1541, 121
        %v1660 = vpop.permute.xlu0 %1659
        %1661 = vrot.lane.b32.xlu0 %v1542, 121
        %v1662 = vpop.permute.xlu0 %1661
        %v1663 = vsel %vm598, %v1656, %v1658
        %v1664 = vsel %vm598, %v1658, %v1660
        %v1665 = vsel %vm598, %v1660, %v1662
        %v1667 = vsel %vm495, %v1654, 0
        %v1670 = vsel %vm499, %v1663, 0
        %v1673 = vsel %vm499, %v1664, 0
        %v1676 = vsel %vm499, %v1665, 0
        %1678 = vmatprep.subr.bf16.mxu0 0
        %1679 = vmatpush1.bf16.msra.mxu0 0
        %1680 = vmatprep.subr.bf16.mxu0 0
        %1681 = vmatpush1.bf16.msra.mxu0 0
        %1682 = vmatprep.subr.bf16.mxu0 0
        %1683 = vmatpush1.bf16.msra.mxu0 0
        %1684 = vmatprep.subr.bf16.mxu0 0
        %1685 = vmatpush1.bf16.msra.mxu0 0
        %1686 = vmatprep.subr.bf16.mxu0 0
        %1687 = vmatpush1.bf16.msra.mxu0 0
        %1688 = vmatprep.subr.bf16.mxu0 0
        %1689 = vmatpush1.bf16.msra.mxu0 0
        %1690 = vmatprep.subr.bf16.mxu0 0
        %1691 = vmatpush1.bf16.msra.mxu0 0
        %1692 = vmatprep.subr.bf16.mxu0 %v1673
        %1693 = vmatpush1.bf16.msra.mxu0 %v1670
        %1694 = vmatprep.subr.bf16.mxu0 0
        %1695 = vmatpush2.bf16.msra.mxu0 0
        %1696 = vmatprep.subr.bf16.mxu0 0
        %1697 = vmatpush2.bf16.msra.mxu0 0
        %1698 = vmatprep.subr.bf16.mxu0 0
        %1699 = vmatpush2.bf16.msra.mxu0 0
        %1700 = vmatprep.subr.bf16.mxu0 0
        %1701 = vmatpush2.bf16.msra.mxu0 0
        %1702 = vmatprep.subr.bf16.mxu0 0
        %1703 = vmatpush2.bf16.msra.mxu0 0
        %1704 = vmatprep.subr.bf16.mxu0 0
        %1705 = vmatpush2.bf16.msra.mxu0 0
        %1706 = vmatprep.subr.bf16.mxu0 0
        %1707 = vmatpush2.bf16.msra.mxu0 0
        %1708 = vmatprep.subr.bf16.mxu0 0
        %1709 = vmatpush2.bf16.msra.mxu0 0
        %1710 = vmatprep.mubr.bf16.mxu0 0
        %1711 = vmatmul.mubr.bf16.gmra.mxu0 %v1667
        %v1712 = vpop.f32.mrf.mxu0
        %v1713 = vadd.f32 %v1601, %v1712
        %v1714 = vpop.f32.mrf.mxu0
        %v1715 = vadd.f32 %v1603, %v1714
        %v1716 = vpop.f32.mrf.mxu0
        %v1717 = vadd.f32 %v1605, %v1716
        %v1718 = vpop.f32.mrf.mxu0
        %v1719 = vadd.f32 %v1607, %v1718
        %1720 = vdwg.mxu0
        %1721 = vmatprep.subr.bf16.mxu0 0
        %1722 = vmatpush1.bf16.msra.mxu0 0
        %1723 = vmatprep.subr.bf16.mxu0 0
        %1724 = vmatpush1.bf16.msra.mxu0 0
        %1725 = vmatprep.subr.bf16.mxu0 0
        %1726 = vmatpush1.bf16.msra.mxu0 0
        %1727 = vmatprep.subr.bf16.mxu0 0
        %1728 = vmatpush1.bf16.msra.mxu0 0
        %1729 = vmatprep.subr.bf16.mxu0 0
        %1730 = vmatpush1.bf16.msra.mxu0 0
        %1731 = vmatprep.subr.bf16.mxu0 0
        %1732 = vmatpush1.bf16.msra.mxu0 0
        %1733 = vmatprep.subr.bf16.mxu0 0
        %1734 = vmatpush1.bf16.msra.mxu0 0
        %1735 = vmatprep.subr.bf16.mxu0 0
        %1736 = vmatpush1.bf16.msra.mxu0 %v1676
        %1737 = vmatprep.subr.bf16.mxu0 0
        %1738 = vmatpush2.bf16.msra.mxu0 0
        %1739 = vmatprep.subr.bf16.mxu0 0
        %1740 = vmatpush2.bf16.msra.mxu0 0
        %1741 = vmatprep.subr.bf16.mxu0 0
        %1742 = vmatpush2.bf16.msra.mxu0 0
        %1743 = vmatprep.subr.bf16.mxu0 0
        %1744 = vmatpush2.bf16.msra.mxu0 0
        %1745 = vmatprep.subr.bf16.mxu0 0
        %1746 = vmatpush2.bf16.msra.mxu0 0
        %1747 = vmatprep.subr.bf16.mxu0 0
        %1748 = vmatpush2.bf16.msra.mxu0 0
        %1749 = vmatprep.subr.bf16.mxu0 0
        %1750 = vmatpush2.bf16.msra.mxu0 0
        %1751 = vmatprep.subr.bf16.mxu0 0
        %1752 = vmatpush2.bf16.msra.mxu0 0
        %1753 = vmatprep.mubr.bf16.mxu0 0
        %1754 = vmatmul.mubr.bf16.gmra.mxu0 %v1667
        %v1755 = vpop.f32.mrf.mxu0
        %v1756 = vadd.f32 %v1644, %v1755
        %v1757 = vpop.f32.mrf.mxu0
        %v1758 = vpop.f32.mrf.mxu0
        %v1759 = vadd.f32 %v1647, %v1758
        %v1760 = vpop.f32.mrf.mxu0
        %1761 = vdwg.mxu0
        %s1762 = scalar_lea.vmem %s5, 16
        %v1763 = vld [vmem:[%s1762] sm:$0xf]
        %v1764 = vld [vmem:[%s1762 + $0x4] sm:$0xf]
        %v1767 = vunpack.c.l.b16 %v1763
        %v1768 = vunpack.c.l.b16 %v1764
        %v1769 = vpack.c.b16 %v1768, %v1767
        %1770 = vrot.lane.b32.xlu0 %v1539, 119
        %v1771 = vpop.permute.xlu0 %1770
        %1772 = vrot.lane.b32.xlu0 %v1540, 119
        %v1773 = vpop.permute.xlu0 %1772
        %1774 = vrot.lane.b32.xlu0 %v1541, 119
        %v1775 = vpop.permute.xlu0 %1774
        %1776 = vrot.lane.b32.xlu0 %v1542, 119
        %v1777 = vpop.permute.xlu0 %1776
        %v1778 = vsel %vm705, %v1771, %v1773
        %v1779 = vsel %vm705, %v1773, %v1775
        %v1780 = vsel %vm705, %v1775, %v1777
        %v1782 = vsel %vm495, %v1769, 0
        %v1785 = vsel %vm499, %v1778, 0
        %v1788 = vsel %vm499, %v1779, 0
        %v1791 = vsel %vm499, %v1780, 0
        %1793 = vmatprep.subr.bf16.mxu0 0
        %1794 = vmatpush1.bf16.msra.mxu0 0
        %1795 = vmatprep.subr.bf16.mxu0 0
        %1796 = vmatpush1.bf16.msra.mxu0 0
        %1797 = vmatprep.subr.bf16.mxu0 0
        %1798 = vmatpush1.bf16.msra.mxu0 0
        %1799 = vmatprep.subr.bf16.mxu0 0
        %1800 = vmatpush1.bf16.msra.mxu0 0
        %1801 = vmatprep.subr.bf16.mxu0 0
        %1802 = vmatpush1.bf16.msra.mxu0 0
        %1803 = vmatprep.subr.bf16.mxu0 0
        %1804 = vmatpush1.bf16.msra.mxu0 0
        %1805 = vmatprep.subr.bf16.mxu0 0
        %1806 = vmatpush1.bf16.msra.mxu0 0
        %1807 = vmatprep.subr.bf16.mxu0 %v1788
        %1808 = vmatpush1.bf16.msra.mxu0 %v1785
        %1809 = vmatprep.subr.bf16.mxu0 0
        %1810 = vmatpush2.bf16.msra.mxu0 0
        %1811 = vmatprep.subr.bf16.mxu0 0
        %1812 = vmatpush2.bf16.msra.mxu0 0
        %1813 = vmatprep.subr.bf16.mxu0 0
        %1814 = vmatpush2.bf16.msra.mxu0 0
        %1815 = vmatprep.subr.bf16.mxu0 0
        %1816 = vmatpush2.bf16.msra.mxu0 0
        %1817 = vmatprep.subr.bf16.mxu0 0
        %1818 = vmatpush2.bf16.msra.mxu0 0
        %1819 = vmatprep.subr.bf16.mxu0 0
        %1820 = vmatpush2.bf16.msra.mxu0 0
        %1821 = vmatprep.subr.bf16.mxu0 0
        %1822 = vmatpush2.bf16.msra.mxu0 0
        %1823 = vmatprep.subr.bf16.mxu0 0
        %1824 = vmatpush2.bf16.msra.mxu0 0
        %1825 = vmatprep.mubr.bf16.mxu0 0
        %1826 = vmatmul.mubr.bf16.gmra.mxu0 %v1782
        %v1827 = vpop.f32.mrf.mxu0
        %v1828 = vadd.f32 0.0, %v1827
        %v1829 = vpop.f32.mrf.mxu0
        %v1830 = vadd.f32 0.0, %v1829
        %v1831 = vpop.f32.mrf.mxu0
        %v1832 = vadd.f32 0.0, %v1831
        %v1833 = vpop.f32.mrf.mxu0
        %v1834 = vadd.f32 0.0, %v1833
        %1835 = vdwg.mxu0
        %1836 = vmatprep.subr.bf16.mxu0 0
        %1837 = vmatpush1.bf16.msra.mxu0 0
        %1838 = vmatprep.subr.bf16.mxu0 0
        %1839 = vmatpush1.bf16.msra.mxu0 0
        %1840 = vmatprep.subr.bf16.mxu0 0
        %1841 = vmatpush1.bf16.msra.mxu0 0
        %1842 = vmatprep.subr.bf16.mxu0 0
        %1843 = vmatpush1.bf16.msra.mxu0 0
        %1844 = vmatprep.subr.bf16.mxu0 0
        %1845 = vmatpush1.bf16.msra.mxu0 0
        %1846 = vmatprep.subr.bf16.mxu0 0
        %1847 = vmatpush1.bf16.msra.mxu0 0
        %1848 = vmatprep.subr.bf16.mxu0 0
        %1849 = vmatpush1.bf16.msra.mxu0 0
        %1850 = vmatprep.subr.bf16.mxu0 0
        %1851 = vmatpush1.bf16.msra.mxu0 %v1791
        %1852 = vmatprep.subr.bf16.mxu0 0
        %1853 = vmatpush2.bf16.msra.mxu0 0
        %1854 = vmatprep.subr.bf16.mxu0 0
        %1855 = vmatpush2.bf16.msra.mxu0 0
        %1856 = vmatprep.subr.bf16.mxu0 0
        %1857 = vmatpush2.bf16.msra.mxu0 0
        %1858 = vmatprep.subr.bf16.mxu0 0
        %1859 = vmatpush2.bf16.msra.mxu0 0
        %1860 = vmatprep.subr.bf16.mxu0 0
        %1861 = vmatpush2.bf16.msra.mxu0 0
        %1862 = vmatprep.subr.bf16.mxu0 0
        %1863 = vmatpush2.bf16.msra.mxu0 0
        %1864 = vmatprep.subr.bf16.mxu0 0
        %1865 = vmatpush2.bf16.msra.mxu0 0
        %1866 = vmatprep.subr.bf16.mxu0 0
        %1867 = vmatpush2.bf16.msra.mxu0 0
        %1868 = vmatprep.mubr.bf16.mxu0 0
        %1869 = vmatmul.mubr.bf16.gmra.mxu0 %v1782
        %v1870 = vpop.f32.mrf.mxu0
        %v1871 = vadd.f32 0.0, %v1870
        %v1872 = vpop.f32.mrf.mxu0
        %v1873 = vpop.f32.mrf.mxu0
        %v1874 = vadd.f32 0.0, %v1873
        %v1875 = vpop.f32.mrf.mxu0
        %1876 = vdwg.mxu0
        %v1877 = vadd.f32 %v1713, %v1828
        %v1878 = vadd.f32 %v1715, %v1830
        %v1879 = vadd.f32 %v1756, %v1871
        %v1880 = vadd.f32 %v1717, %v1832
        %v1881 = vadd.f32 %v1719, %v1834
        %v1882 = vadd.f32 %v1759, %v1874
        %s1883 = scalar_lea.vmem %s5, 24
        %v1884 = vld [vmem:[%s1883] sm:$0xf]
        %v1885 = vld [vmem:[%s1883 + $0x4] sm:$0xf]
        %v1888 = vunpack.c.l.b16 %v1884
        %v1889 = vunpack.c.l.b16 %v1885
        %v1890 = vpack.c.b16 %v1889, %v1888
        %1891 = vrot.lane.b32.xlu0 %v1539, 97
        %v1892 = vpop.permute.xlu0 %1891
        %1893 = vrot.lane.b32.xlu0 %v1540, 97
        %v1894 = vpop.permute.xlu0 %1893
        %1895 = vrot.lane.b32.xlu0 %v1541, 97
        %v1896 = vpop.permute.xlu0 %1895
        %1897 = vrot.lane.b32.xlu0 %v1542, 97
        %v1898 = vpop.permute.xlu0 %1897
        %v1899 = vsel %vm815, %v1892, %v1894
        %v1900 = vsel %vm815, %v1894, %v1896
        %v1901 = vsel %vm815, %v1896, %v1898
        %v1903 = vsel %vm495, %v1890, 0
        %v1906 = vsel %vm499, %v1899, 0
        %v1909 = vsel %vm499, %v1900, 0
        %v1912 = vsel %vm499, %v1901, 0
        %1914 = vmatprep.subr.bf16.mxu0 0
        %1915 = vmatpush1.bf16.msra.mxu0 0
        %1916 = vmatprep.subr.bf16.mxu0 0
        %1917 = vmatpush1.bf16.msra.mxu0 0
        %1918 = vmatprep.subr.bf16.mxu0 0
        %1919 = vmatpush1.bf16.msra.mxu0 0
        %1920 = vmatprep.subr.bf16.mxu0 0
        %1921 = vmatpush1.bf16.msra.mxu0 0
        %1922 = vmatprep.subr.bf16.mxu0 0
        %1923 = vmatpush1.bf16.msra.mxu0 0
        %1924 = vmatprep.subr.bf16.mxu0 0
        %1925 = vmatpush1.bf16.msra.mxu0 0
        %1926 = vmatprep.subr.bf16.mxu0 0
        %1927 = vmatpush1.bf16.msra.mxu0 0
        %1928 = vmatprep.subr.bf16.mxu0 %v1909
        %1929 = vmatpush1.bf16.msra.mxu0 %v1906
        %1930 = vmatprep.subr.bf16.mxu0 0
        %1931 = vmatpush2.bf16.msra.mxu0 0
        %1932 = vmatprep.subr.bf16.mxu0 0
        %1933 = vmatpush2.bf16.msra.mxu0 0
        %1934 = vmatprep.subr.bf16.mxu0 0
        %1935 = vmatpush2.bf16.msra.mxu0 0
        %1936 = vmatprep.subr.bf16.mxu0 0
        %1937 = vmatpush2.bf16.msra.mxu0 0
        %1938 = vmatprep.subr.bf16.mxu0 0
        %1939 = vmatpush2.bf16.msra.mxu0 0
        %1940 = vmatprep.subr.bf16.mxu0 0
        %1941 = vmatpush2.bf16.msra.mxu0 0
        %1942 = vmatprep.subr.bf16.mxu0 0
        %1943 = vmatpush2.bf16.msra.mxu0 0
        %1944 = vmatprep.subr.bf16.mxu0 0
        %1945 = vmatpush2.bf16.msra.mxu0 0
        %1946 = vmatprep.mubr.bf16.mxu0 0
        %1947 = vmatmul.mubr.bf16.gmra.mxu0 %v1903
        %v1948 = vpop.f32.mrf.mxu0
        %v1949 = vadd.f32 0.0, %v1948
        %v1950 = vpop.f32.mrf.mxu0
        %v1951 = vadd.f32 0.0, %v1950
        %v1952 = vpop.f32.mrf.mxu0
        %v1953 = vadd.f32 0.0, %v1952
        %v1954 = vpop.f32.mrf.mxu0
        %v1955 = vadd.f32 0.0, %v1954
        %1956 = vdwg.mxu0
        %1957 = vmatprep.subr.bf16.mxu0 0
        %1958 = vmatpush1.bf16.msra.mxu0 0
        %1959 = vmatprep.subr.bf16.mxu0 0
        %1960 = vmatpush1.bf16.msra.mxu0 0
        %1961 = vmatprep.subr.bf16.mxu0 0
        %1962 = vmatpush1.bf16.msra.mxu0 0
        %1963 = vmatprep.subr.bf16.mxu0 0
        %1964 = vmatpush1.bf16.msra.mxu0 0
        %1965 = vmatprep.subr.bf16.mxu0 0
        %1966 = vmatpush1.bf16.msra.mxu0 0
        %1967 = vmatprep.subr.bf16.mxu0 0
        %1968 = vmatpush1.bf16.msra.mxu0 0
        %1969 = vmatprep.subr.bf16.mxu0 0
        %1970 = vmatpush1.bf16.msra.mxu0 0
        %1971 = vmatprep.subr.bf16.mxu0 0
        %1972 = vmatpush1.bf16.msra.mxu0 %v1912
        %1973 = vmatprep.subr.bf16.mxu0 0
        %1974 = vmatpush2.bf16.msra.mxu0 0
        %1975 = vmatprep.subr.bf16.mxu0 0
        %1976 = vmatpush2.bf16.msra.mxu0 0
        %1977 = vmatprep.subr.bf16.mxu0 0
        %1978 = vmatpush2.bf16.msra.mxu0 0
        %1979 = vmatprep.subr.bf16.mxu0 0
        %1980 = vmatpush2.bf16.msra.mxu0 0
        %1981 = vmatprep.subr.bf16.mxu0 0
        %1982 = vmatpush2.bf16.msra.mxu0 0
        %1983 = vmatprep.subr.bf16.mxu0 0
        %1984 = vmatpush2.bf16.msra.mxu0 0
        %1985 = vmatprep.subr.bf16.mxu0 0
        %1986 = vmatpush2.bf16.msra.mxu0 0
        %1987 = vmatprep.subr.bf16.mxu0 0
        %1988 = vmatpush2.bf16.msra.mxu0 0
        %1989 = vmatprep.mubr.bf16.mxu0 0
        %1990 = vmatmul.mubr.bf16.gmra.mxu0 %v1903
        %v1991 = vpop.f32.mrf.mxu0
        %v1992 = vadd.f32 0.0, %v1991
        %v1993 = vpop.f32.mrf.mxu0
        %v1994 = vpop.f32.mrf.mxu0
        %v1995 = vadd.f32 0.0, %v1994
        %v1996 = vpop.f32.mrf.mxu0
        %1997 = vdwg.mxu0
        %v1998 = vadd.f32 %v1877, %v1949
        %v1999 = vadd.f32 %v1878, %v1951
        %v2000 = vadd.f32 %v1879, %v1992
        %v2001 = vadd.f32 %v1880, %v1953
        %v2002 = vadd.f32 %v1881, %v1955
        %v2003 = vadd.f32 %v1882, %v1995
        %s2004 = scalar_lea.vmem %s5, 32
        %v2005 = vld [vmem:[%s2004] sm:$0xf]
        %v2006 = vld [vmem:[%s2004 + $0x4] sm:$0xf]
        %v2009 = vunpack.c.l.b16 %v2005
        %v2010 = vunpack.c.l.b16 %v2006
        %v2011 = vpack.c.b16 %v2010, %v2009
        %2012 = vrot.lane.b32.xlu0 %v1539, 96
        %v2013 = vpop.permute.xlu0 %2012
        %2014 = vrot.lane.b32.xlu0 %v1540, 96
        %v2015 = vpop.permute.xlu0 %2014
        %2016 = vrot.lane.b32.xlu0 %v1541, 96
        %v2017 = vpop.permute.xlu0 %2016
        %2018 = vrot.lane.b32.xlu0 %v1542, 96
        %v2019 = vpop.permute.xlu0 %2018
        %v2020 = vsel %vm925, %v2013, %v2015
        %v2021 = vsel %vm925, %v2015, %v2017
        %v2022 = vsel %vm925, %v2017, %v2019
        %v2024 = vsel %vm495, %v2011, 0
        %v2027 = vsel %vm499, %v2020, 0
        %v2030 = vsel %vm499, %v2021, 0
        %v2033 = vsel %vm499, %v2022, 0
        %2035 = vmatprep.subr.bf16.mxu0 0
        %2036 = vmatpush1.bf16.msra.mxu0 0
        %2037 = vmatprep.subr.bf16.mxu0 0
        %2038 = vmatpush1.bf16.msra.mxu0 0
        %2039 = vmatprep.subr.bf16.mxu0 0
        %2040 = vmatpush1.bf16.msra.mxu0 0
        %2041 = vmatprep.subr.bf16.mxu0 0
        %2042 = vmatpush1.bf16.msra.mxu0 0
        %2043 = vmatprep.subr.bf16.mxu0 0
        %2044 = vmatpush1.bf16.msra.mxu0 0
        %2045 = vmatprep.subr.bf16.mxu0 0
        %2046 = vmatpush1.bf16.msra.mxu0 0
        %2047 = vmatprep.subr.bf16.mxu0 0
        %2048 = vmatpush1.bf16.msra.mxu0 0
        %2049 = vmatprep.subr.bf16.mxu0 %v2030
        %2050 = vmatpush1.bf16.msra.mxu0 %v2027
        %2051 = vmatprep.subr.bf16.mxu0 0
        %2052 = vmatpush2.bf16.msra.mxu0 0
        %2053 = vmatprep.subr.bf16.mxu0 0
        %2054 = vmatpush2.bf16.msra.mxu0 0
        %2055 = vmatprep.subr.bf16.mxu0 0
        %2056 = vmatpush2.bf16.msra.mxu0 0
        %2057 = vmatprep.subr.bf16.mxu0 0
        %2058 = vmatpush2.bf16.msra.mxu0 0
        %2059 = vmatprep.subr.bf16.mxu0 0
        %2060 = vmatpush2.bf16.msra.mxu0 0
        %2061 = vmatprep.subr.bf16.mxu0 0
        %2062 = vmatpush2.bf16.msra.mxu0 0
        %2063 = vmatprep.subr.bf16.mxu0 0
        %2064 = vmatpush2.bf16.msra.mxu0 0
        %2065 = vmatprep.subr.bf16.mxu0 0
        %2066 = vmatpush2.bf16.msra.mxu0 0
        %2067 = vmatprep.mubr.bf16.mxu0 0
        %2068 = vmatmul.mubr.bf16.gmra.mxu0 %v2024
        %v2069 = vpop.f32.mrf.mxu0
        %v2070 = vadd.f32 0.0, %v2069
        %v2071 = vpop.f32.mrf.mxu0
        %v2072 = vadd.f32 0.0, %v2071
        %v2073 = vpop.f32.mrf.mxu0
        %v2074 = vadd.f32 0.0, %v2073
        %v2075 = vpop.f32.mrf.mxu0
        %v2076 = vadd.f32 0.0, %v2075
        %2077 = vdwg.mxu0
        %2078 = vmatprep.subr.bf16.mxu0 0
        %2079 = vmatpush1.bf16.msra.mxu0 0
        %2080 = vmatprep.subr.bf16.mxu0 0
        %2081 = vmatpush1.bf16.msra.mxu0 0
        %2082 = vmatprep.subr.bf16.mxu0 0
        %2083 = vmatpush1.bf16.msra.mxu0 0
        %2084 = vmatprep.subr.bf16.mxu0 0
        %2085 = vmatpush1.bf16.msra.mxu0 0
        %2086 = vmatprep.subr.bf16.mxu0 0
        %2087 = vmatpush1.bf16.msra.mxu0 0
        %2088 = vmatprep.subr.bf16.mxu0 0
        %2089 = vmatpush1.bf16.msra.mxu0 0
        %2090 = vmatprep.subr.bf16.mxu0 0
        %2091 = vmatpush1.bf16.msra.mxu0 0
        %2092 = vmatprep.subr.bf16.mxu0 0
        %2093 = vmatpush1.bf16.msra.mxu0 %v2033
        %2094 = vmatprep.subr.bf16.mxu0 0
        %2095 = vmatpush2.bf16.msra.mxu0 0
        %2096 = vmatprep.subr.bf16.mxu0 0
        %2097 = vmatpush2.bf16.msra.mxu0 0
        %2098 = vmatprep.subr.bf16.mxu0 0
        %2099 = vmatpush2.bf16.msra.mxu0 0
        %2100 = vmatprep.subr.bf16.mxu0 0
        %2101 = vmatpush2.bf16.msra.mxu0 0
        %2102 = vmatprep.subr.bf16.mxu0 0
        %2103 = vmatpush2.bf16.msra.mxu0 0
        %2104 = vmatprep.subr.bf16.mxu0 0
        %2105 = vmatpush2.bf16.msra.mxu0 0
        %2106 = vmatprep.subr.bf16.mxu0 0
        %2107 = vmatpush2.bf16.msra.mxu0 0
        %2108 = vmatprep.subr.bf16.mxu0 0
        %2109 = vmatpush2.bf16.msra.mxu0 0
        %2110 = vmatprep.mubr.bf16.mxu0 0
        %2111 = vmatmul.mubr.bf16.gmra.mxu0 %v2024
        %v2112 = vpop.f32.mrf.mxu0
        %v2113 = vadd.f32 0.0, %v2112
        %v2114 = vpop.f32.mrf.mxu0
        %v2115 = vpop.f32.mrf.mxu0
        %v2116 = vadd.f32 0.0, %v2115
        %v2117 = vpop.f32.mrf.mxu0
        %2118 = vdwg.mxu0
        %v2119 = vadd.f32 %v1998, %v2070
        %v2120 = vadd.f32 %v1999, %v2072
        %v2121 = vadd.f32 %v2000, %v2113
        %v2122 = vadd.f32 %v2001, %v2074
        %v2123 = vadd.f32 %v2002, %v2076
        %v2124 = vadd.f32 %v2003, %v2116
        %s2125 = scalar_lea.vmem %s5, 40
        %v2126 = vld [vmem:[%s2125] sm:$0xf]
        %v2127 = vld [vmem:[%s2125 + $0x4] sm:$0xf]
        %v2130 = vunpack.c.l.b16 %v2126
        %v2131 = vunpack.c.l.b16 %v2127
        %v2132 = vpack.c.b16 %v2131, %v2130
        %2133 = vrot.lane.b32.xlu0 %v1539, 95
        %v2134 = vpop.permute.xlu0 %2133
        %2135 = vrot.lane.b32.xlu0 %v1540, 95
        %v2136 = vpop.permute.xlu0 %2135
        %2137 = vrot.lane.b32.xlu0 %v1541, 95
        %v2138 = vpop.permute.xlu0 %2137
        %2139 = vrot.lane.b32.xlu0 %v1542, 95
        %v2140 = vpop.permute.xlu0 %2139
        %v2141 = vsel %vm1035, %v2134, %v2136
        %v2142 = vsel %vm1035, %v2136, %v2138
        %v2143 = vsel %vm1035, %v2138, %v2140
        %v2145 = vsel %vm495, %v2132, 0
        %v2148 = vsel %vm499, %v2141, 0
        %v2151 = vsel %vm499, %v2142, 0
        %v2154 = vsel %vm499, %v2143, 0
        %2156 = vmatprep.subr.bf16.mxu0 0
        %2157 = vmatpush1.bf16.msra.mxu0 0
        %2158 = vmatprep.subr.bf16.mxu0 0
        %2159 = vmatpush1.bf16.msra.mxu0 0
        %2160 = vmatprep.subr.bf16.mxu0 0
        %2161 = vmatpush1.bf16.msra.mxu0 0
        %2162 = vmatprep.subr.bf16.mxu0 0
        %2163 = vmatpush1.bf16.msra.mxu0 0
        %2164 = vmatprep.subr.bf16.mxu0 0
        %2165 = vmatpush1.bf16.msra.mxu0 0
        %2166 = vmatprep.subr.bf16.mxu0 0
        %2167 = vmatpush1.bf16.msra.mxu0 0
        %2168 = vmatprep.subr.bf16.mxu0 0
        %2169 = vmatpush1.bf16.msra.mxu0 0
        %2170 = vmatprep.subr.bf16.mxu0 %v2151
        %2171 = vmatpush1.bf16.msra.mxu0 %v2148
        %2172 = vmatprep.subr.bf16.mxu0 0
        %2173 = vmatpush2.bf16.msra.mxu0 0
        %2174 = vmatprep.subr.bf16.mxu0 0
        %2175 = vmatpush2.bf16.msra.mxu0 0
        %2176 = vmatprep.subr.bf16.mxu0 0
        %2177 = vmatpush2.bf16.msra.mxu0 0
        %2178 = vmatprep.subr.bf16.mxu0 0
        %2179 = vmatpush2.bf16.msra.mxu0 0
        %2180 = vmatprep.subr.bf16.mxu0 0
        %2181 = vmatpush2.bf16.msra.mxu0 0
        %2182 = vmatprep.subr.bf16.mxu0 0
        %2183 = vmatpush2.bf16.msra.mxu0 0
        %2184 = vmatprep.subr.bf16.mxu0 0
        %2185 = vmatpush2.bf16.msra.mxu0 0
        %2186 = vmatprep.subr.bf16.mxu0 0
        %2187 = vmatpush2.bf16.msra.mxu0 0
        %2188 = vmatprep.mubr.bf16.mxu0 0
        %2189 = vmatmul.mubr.bf16.gmra.mxu0 %v2145
        %v2190 = vpop.f32.mrf.mxu0
        %v2191 = vadd.f32 0.0, %v2190
        %v2192 = vpop.f32.mrf.mxu0
        %v2193 = vadd.f32 0.0, %v2192
        %v2194 = vpop.f32.mrf.mxu0
        %v2195 = vadd.f32 0.0, %v2194
        %v2196 = vpop.f32.mrf.mxu0
        %v2197 = vadd.f32 0.0, %v2196
        %2198 = vdwg.mxu0
        %2199 = vmatprep.subr.bf16.mxu0 0
        %2200 = vmatpush1.bf16.msra.mxu0 0
        %2201 = vmatprep.subr.bf16.mxu0 0
        %2202 = vmatpush1.bf16.msra.mxu0 0
        %2203 = vmatprep.subr.bf16.mxu0 0
        %2204 = vmatpush1.bf16.msra.mxu0 0
        %2205 = vmatprep.subr.bf16.mxu0 0
        %2206 = vmatpush1.bf16.msra.mxu0 0
        %2207 = vmatprep.subr.bf16.mxu0 0
        %2208 = vmatpush1.bf16.msra.mxu0 0
        %2209 = vmatprep.subr.bf16.mxu0 0
        %2210 = vmatpush1.bf16.msra.mxu0 0
        %2211 = vmatprep.subr.bf16.mxu0 0
        %2212 = vmatpush1.bf16.msra.mxu0 0
        %2213 = vmatprep.subr.bf16.mxu0 0
        %2214 = vmatpush1.bf16.msra.mxu0 %v2154
        %2215 = vmatprep.subr.bf16.mxu0 0
        %2216 = vmatpush2.bf16.msra.mxu0 0
        %2217 = vmatprep.subr.bf16.mxu0 0
        %2218 = vmatpush2.bf16.msra.mxu0 0
        %2219 = vmatprep.subr.bf16.mxu0 0
        %2220 = vmatpush2.bf16.msra.mxu0 0
        %2221 = vmatprep.subr.bf16.mxu0 0
        %2222 = vmatpush2.bf16.msra.mxu0 0
        %2223 = vmatprep.subr.bf16.mxu0 0
        %2224 = vmatpush2.bf16.msra.mxu0 0
        %2225 = vmatprep.subr.bf16.mxu0 0
        %2226 = vmatpush2.bf16.msra.mxu0 0
        %2227 = vmatprep.subr.bf16.mxu0 0
        %2228 = vmatpush2.bf16.msra.mxu0 0
        %2229 = vmatprep.subr.bf16.mxu0 0
        %2230 = vmatpush2.bf16.msra.mxu0 0
        %2231 = vmatprep.mubr.bf16.mxu0 0
        %2232 = vmatmul.mubr.bf16.gmra.mxu0 %v2145
        %v2233 = vpop.f32.mrf.mxu0
        %v2234 = vadd.f32 0.0, %v2233
        %v2235 = vpop.f32.mrf.mxu0
        %v2236 = vpop.f32.mrf.mxu0
        %v2237 = vadd.f32 0.0, %v2236
        %v2238 = vpop.f32.mrf.mxu0
        %2239 = vdwg.mxu0
        %v2240 = vadd.f32 %v2119, %v2191
        %v2241 = vadd.f32 %v2120, %v2193
        %v2242 = vadd.f32 %v2121, %v2234
        %v2243 = vadd.f32 %v2122, %v2195
        %v2244 = vadd.f32 %v2123, %v2197
        %v2245 = vadd.f32 %v2124, %v2237
        %s2246 = scalar_lea.vmem %s5, 48
        %v2247 = vld [vmem:[%s2246] sm:$0xf]
        %v2248 = vld [vmem:[%s2246 + $0x4] sm:$0xf]
        %v2251 = vunpack.c.l.b16 %v2247
        %v2252 = vunpack.c.l.b16 %v2248
        %v2253 = vpack.c.b16 %v2252, %v2251
        %2254 = vrot.lane.b32.xlu0 %v1539, 73
        %v2255 = vpop.permute.xlu0 %2254
        %2256 = vrot.lane.b32.xlu0 %v1540, 73
        %v2257 = vpop.permute.xlu0 %2256
        %2258 = vrot.lane.b32.xlu0 %v1541, 73
        %v2259 = vpop.permute.xlu0 %2258
        %2260 = vrot.lane.b32.xlu0 %v1542, 73
        %v2261 = vpop.permute.xlu0 %2260
        %v2262 = vsel %vm1145, %v2255, %v2257
        %v2263 = vsel %vm1145, %v2257, %v2259
        %v2264 = vsel %vm1145, %v2259, %v2261
        %v2266 = vsel %vm495, %v2253, 0
        %v2269 = vsel %vm499, %v2262, 0
        %v2272 = vsel %vm499, %v2263, 0
        %v2275 = vsel %vm499, %v2264, 0
        %2277 = vmatprep.subr.bf16.mxu0 0
        %2278 = vmatpush1.bf16.msra.mxu0 0
        %2279 = vmatprep.subr.bf16.mxu0 0
        %2280 = vmatpush1.bf16.msra.mxu0 0
        %2281 = vmatprep.subr.bf16.mxu0 0
        %2282 = vmatpush1.bf16.msra.mxu0 0
        %2283 = vmatprep.subr.bf16.mxu0 0
        %2284 = vmatpush1.bf16.msra.mxu0 0
        %2285 = vmatprep.subr.bf16.mxu0 0
        %2286 = vmatpush1.bf16.msra.mxu0 0
        %2287 = vmatprep.subr.bf16.mxu0 0
        %2288 = vmatpush1.bf16.msra.mxu0 0
        %2289 = vmatprep.subr.bf16.mxu0 0
        %2290 = vmatpush1.bf16.msra.mxu0 0
        %2291 = vmatprep.subr.bf16.mxu0 %v2272
        %2292 = vmatpush1.bf16.msra.mxu0 %v2269
        %2293 = vmatprep.subr.bf16.mxu0 0
        %2294 = vmatpush2.bf16.msra.mxu0 0
        %2295 = vmatprep.subr.bf16.mxu0 0
        %2296 = vmatpush2.bf16.msra.mxu0 0
        %2297 = vmatprep.subr.bf16.mxu0 0
        %2298 = vmatpush2.bf16.msra.mxu0 0
        %2299 = vmatprep.subr.bf16.mxu0 0
        %2300 = vmatpush2.bf16.msra.mxu0 0
        %2301 = vmatprep.subr.bf16.mxu0 0
        %2302 = vmatpush2.bf16.msra.mxu0 0
        %2303 = vmatprep.subr.bf16.mxu0 0
        %2304 = vmatpush2.bf16.msra.mxu0 0
        %2305 = vmatprep.subr.bf16.mxu0 0
        %2306 = vmatpush2.bf16.msra.mxu0 0
        %2307 = vmatprep.subr.bf16.mxu0 0
        %2308 = vmatpush2.bf16.msra.mxu0 0
        %2309 = vmatprep.mubr.bf16.mxu0 0
        %2310 = vmatmul.mubr.bf16.gmra.mxu0 %v2266
        %v2311 = vpop.f32.mrf.mxu0
        %v2312 = vadd.f32 0.0, %v2311
        %v2313 = vpop.f32.mrf.mxu0
        %v2314 = vadd.f32 0.0, %v2313
        %v2315 = vpop.f32.mrf.mxu0
        %v2316 = vadd.f32 0.0, %v2315
        %v2317 = vpop.f32.mrf.mxu0
        %v2318 = vadd.f32 0.0, %v2317
        %2319 = vdwg.mxu0
        %2320 = vmatprep.subr.bf16.mxu0 0
        %2321 = vmatpush1.bf16.msra.mxu0 0
        %2322 = vmatprep.subr.bf16.mxu0 0
        %2323 = vmatpush1.bf16.msra.mxu0 0
        %2324 = vmatprep.subr.bf16.mxu0 0
        %2325 = vmatpush1.bf16.msra.mxu0 0
        %2326 = vmatprep.subr.bf16.mxu0 0
        %2327 = vmatpush1.bf16.msra.mxu0 0
        %2328 = vmatprep.subr.bf16.mxu0 0
        %2329 = vmatpush1.bf16.msra.mxu0 0
        %2330 = vmatprep.subr.bf16.mxu0 0
        %2331 = vmatpush1.bf16.msra.mxu0 0
        %2332 = vmatprep.subr.bf16.mxu0 0
        %2333 = vmatpush1.bf16.msra.mxu0 0
        %2334 = vmatprep.subr.bf16.mxu0 0
        %2335 = vmatpush1.bf16.msra.mxu0 %v2275
        %2336 = vmatprep.subr.bf16.mxu0 0
        %2337 = vmatpush2.bf16.msra.mxu0 0
        %2338 = vmatprep.subr.bf16.mxu0 0
        %2339 = vmatpush2.bf16.msra.mxu0 0
        %2340 = vmatprep.subr.bf16.mxu0 0
        %2341 = vmatpush2.bf16.msra.mxu0 0
        %2342 = vmatprep.subr.bf16.mxu0 0
        %2343 = vmatpush2.bf16.msra.mxu0 0
        %2344 = vmatprep.subr.bf16.mxu0 0
        %2345 = vmatpush2.bf16.msra.mxu0 0
        %2346 = vmatprep.subr.bf16.mxu0 0
        %2347 = vmatpush2.bf16.msra.mxu0 0
        %2348 = vmatprep.subr.bf16.mxu0 0
        %2349 = vmatpush2.bf16.msra.mxu0 0
        %2350 = vmatprep.subr.bf16.mxu0 0
        %2351 = vmatpush2.bf16.msra.mxu0 0
        %2352 = vmatprep.mubr.bf16.mxu0 0
        %2353 = vmatmul.mubr.bf16.gmra.mxu0 %v2266
        %v2354 = vpop.f32.mrf.mxu0
        %v2355 = vadd.f32 0.0, %v2354
        %v2356 = vpop.f32.mrf.mxu0
        %v2357 = vpop.f32.mrf.mxu0
        %v2358 = vadd.f32 0.0, %v2357
        %v2359 = vpop.f32.mrf.mxu0
        %2360 = vdwg.mxu0
        %v2361 = vadd.f32 %v2240, %v2312
        %v2362 = vadd.f32 %v2241, %v2314
        %v2363 = vadd.f32 %v2242, %v2355
        %v2364 = vadd.f32 %v2243, %v2316
        %v2365 = vadd.f32 %v2244, %v2318
        %v2366 = vadd.f32 %v2245, %v2358
        %s2367 = scalar_lea.vmem %s5, 56
        %v2368 = vld [vmem:[%s2367] sm:$0xf]
        %v2369 = vld [vmem:[%s2367 + $0x4] sm:$0xf]
        %v2372 = vunpack.c.l.b16 %v2368
        %v2373 = vunpack.c.l.b16 %v2369
        %v2374 = vpack.c.b16 %v2373, %v2372
        %2375 = vrot.lane.b32.xlu0 %v1539, 72
        %v2376 = vpop.permute.xlu0 %2375
        %2377 = vrot.lane.b32.xlu0 %v1540, 72
        %v2378 = vpop.permute.xlu0 %2377
        %2379 = vrot.lane.b32.xlu0 %v1541, 72
        %v2380 = vpop.permute.xlu0 %2379
        %2381 = vrot.lane.b32.xlu0 %v1542, 72
        %v2382 = vpop.permute.xlu0 %2381
        %v2383 = vsel %vm1255, %v2376, %v2378
        %v2384 = vsel %vm1255, %v2378, %v2380
        %v2385 = vsel %vm1255, %v2380, %v2382
        %v2387 = vsel %vm495, %v2374, 0
        %v2390 = vsel %vm499, %v2383, 0
        %v2393 = vsel %vm499, %v2384, 0
        %v2396 = vsel %vm499, %v2385, 0
        %2398 = vmatprep.subr.bf16.mxu0 0
        %2399 = vmatpush1.bf16.msra.mxu0 0
        %2400 = vmatprep.subr.bf16.mxu0 0
        %2401 = vmatpush1.bf16.msra.mxu0 0
        %2402 = vmatprep.subr.bf16.mxu0 0
        %2403 = vmatpush1.bf16.msra.mxu0 0
        %2404 = vmatprep.subr.bf16.mxu0 0
        %2405 = vmatpush1.bf16.msra.mxu0 0
        %2406 = vmatprep.subr.bf16.mxu0 0
        %2407 = vmatpush1.bf16.msra.mxu0 0
        %2408 = vmatprep.subr.bf16.mxu0 0
        %2409 = vmatpush1.bf16.msra.mxu0 0
        %2410 = vmatprep.subr.bf16.mxu0 0
        %2411 = vmatpush1.bf16.msra.mxu0 0
        %2412 = vmatprep.subr.bf16.mxu0 %v2393
        %2413 = vmatpush1.bf16.msra.mxu0 %v2390
        %2414 = vmatprep.subr.bf16.mxu0 0
        %2415 = vmatpush2.bf16.msra.mxu0 0
        %2416 = vmatprep.subr.bf16.mxu0 0
        %2417 = vmatpush2.bf16.msra.mxu0 0
        %2418 = vmatprep.subr.bf16.mxu0 0
        %2419 = vmatpush2.bf16.msra.mxu0 0
        %2420 = vmatprep.subr.bf16.mxu0 0
        %2421 = vmatpush2.bf16.msra.mxu0 0
        %2422 = vmatprep.subr.bf16.mxu0 0
        %2423 = vmatpush2.bf16.msra.mxu0 0
        %2424 = vmatprep.subr.bf16.mxu0 0
        %2425 = vmatpush2.bf16.msra.mxu0 0
        %2426 = vmatprep.subr.bf16.mxu0 0
        %2427 = vmatpush2.bf16.msra.mxu0 0
        %2428 = vmatprep.subr.bf16.mxu0 0
        %2429 = vmatpush2.bf16.msra.mxu0 0
        %2430 = vmatprep.mubr.bf16.mxu0 0
        %2431 = vmatmul.mubr.bf16.gmra.mxu0 %v2387
        %v2432 = vpop.f32.mrf.mxu0
        %v2433 = vadd.f32 0.0, %v2432
        %v2434 = vpop.f32.mrf.mxu0
        %v2435 = vadd.f32 0.0, %v2434
        %v2436 = vpop.f32.mrf.mxu0
        %v2437 = vadd.f32 0.0, %v2436
        %v2438 = vpop.f32.mrf.mxu0
        %v2439 = vadd.f32 0.0, %v2438
        %2440 = vdwg.mxu0
        %2441 = vmatprep.subr.bf16.mxu0 0
        %2442 = vmatpush1.bf16.msra.mxu0 0
        %2443 = vmatprep.subr.bf16.mxu0 0
        %2444 = vmatpush1.bf16.msra.mxu0 0
        %2445 = vmatprep.subr.bf16.mxu0 0
        %2446 = vmatpush1.bf16.msra.mxu0 0
        %2447 = vmatprep.subr.bf16.mxu0 0
        %2448 = vmatpush1.bf16.msra.mxu0 0
        %2449 = vmatprep.subr.bf16.mxu0 0
        %2450 = vmatpush1.bf16.msra.mxu0 0
        %2451 = vmatprep.subr.bf16.mxu0 0
        %2452 = vmatpush1.bf16.msra.mxu0 0
        %2453 = vmatprep.subr.bf16.mxu0 0
        %2454 = vmatpush1.bf16.msra.mxu0 0
        %2455 = vmatprep.subr.bf16.mxu0 0
        %2456 = vmatpush1.bf16.msra.mxu0 %v2396
        %2457 = vmatprep.subr.bf16.mxu0 0
        %2458 = vmatpush2.bf16.msra.mxu0 0
        %2459 = vmatprep.subr.bf16.mxu0 0
        %2460 = vmatpush2.bf16.msra.mxu0 0
        %2461 = vmatprep.subr.bf16.mxu0 0
        %2462 = vmatpush2.bf16.msra.mxu0 0
        %2463 = vmatprep.subr.bf16.mxu0 0
        %2464 = vmatpush2.bf16.msra.mxu0 0
        %2465 = vmatprep.subr.bf16.mxu0 0
        %2466 = vmatpush2.bf16.msra.mxu0 0
        %2467 = vmatprep.subr.bf16.mxu0 0
        %2468 = vmatpush2.bf16.msra.mxu0 0
        %2469 = vmatprep.subr.bf16.mxu0 0
        %2470 = vmatpush2.bf16.msra.mxu0 0
        %2471 = vmatprep.subr.bf16.mxu0 0
        %2472 = vmatpush2.bf16.msra.mxu0 0
        %2473 = vmatprep.mubr.bf16.mxu0 0
        %2474 = vmatmul.mubr.bf16.gmra.mxu0 %v2387
        %v2475 = vpop.f32.mrf.mxu0
        %v2476 = vadd.f32 0.0, %v2475
        %v2477 = vpop.f32.mrf.mxu0
        %v2478 = vpop.f32.mrf.mxu0
        %v2479 = vadd.f32 0.0, %v2478
        %v2480 = vpop.f32.mrf.mxu0
        %2481 = vdwg.mxu0
        %v2482 = vadd.f32 %v2361, %v2433
        %v2483 = vadd.f32 %v2362, %v2435
        %v2484 = vadd.f32 %v2363, %v2476
        %v2485 = vadd.f32 %v2364, %v2437
        %v2486 = vadd.f32 %v2365, %v2439
        %v2487 = vadd.f32 %v2366, %v2479
        %s2488 = scalar_lea.vmem %s5, 64
        %v2489 = vld [vmem:[%s2488] sm:$0xf]
        %v2490 = vld [vmem:[%s2488 + $0x4] sm:$0xf]
        %v2493 = vunpack.c.l.b16 %v2489
        %v2494 = vunpack.c.l.b16 %v2490
        %v2495 = vpack.c.b16 %v2494, %v2493
        %2496 = vrot.lane.b32.xlu0 %v1539, 71
        %v2497 = vpop.permute.xlu0 %2496
        %2498 = vrot.lane.b32.xlu0 %v1540, 71
        %v2499 = vpop.permute.xlu0 %2498
        %2500 = vrot.lane.b32.xlu0 %v1541, 71
        %v2501 = vpop.permute.xlu0 %2500
        %2502 = vrot.lane.b32.xlu0 %v1542, 71
        %v2503 = vpop.permute.xlu0 %2502
        %v2504 = vsel %vm1365, %v2497, %v2499
        %v2505 = vsel %vm1365, %v2499, %v2501
        %v2506 = vsel %vm1365, %v2501, %v2503
        %v2508 = vsel %vm495, %v2495, 0
        %v2511 = vsel %vm499, %v2504, 0
        %v2514 = vsel %vm499, %v2505, 0
        %v2517 = vsel %vm499, %v2506, 0
        %2519 = vmatprep.subr.bf16.mxu0 0
        %2520 = vmatpush1.bf16.msra.mxu0 0
        %2521 = vmatprep.subr.bf16.mxu0 0
        %2522 = vmatpush1.bf16.msra.mxu0 0
        %2523 = vmatprep.subr.bf16.mxu0 0
        %2524 = vmatpush1.bf16.msra.mxu0 0
        %2525 = vmatprep.subr.bf16.mxu0 0
        %2526 = vmatpush1.bf16.msra.mxu0 0
        %2527 = vmatprep.subr.bf16.mxu0 0
        %2528 = vmatpush1.bf16.msra.mxu0 0
        %2529 = vmatprep.subr.bf16.mxu0 0
        %2530 = vmatpush1.bf16.msra.mxu0 0
        %2531 = vmatprep.subr.bf16.mxu0 0
        %2532 = vmatpush1.bf16.msra.mxu0 0
        %2533 = vmatprep.subr.bf16.mxu0 %v2514
        %2534 = vmatpush1.bf16.msra.mxu0 %v2511
        %2535 = vmatprep.subr.bf16.mxu0 0
        %2536 = vmatpush2.bf16.msra.mxu0 0
        %2537 = vmatprep.subr.bf16.mxu0 0
        %2538 = vmatpush2.bf16.msra.mxu0 0
        %2539 = vmatprep.subr.bf16.mxu0 0
        %2540 = vmatpush2.bf16.msra.mxu0 0
        %2541 = vmatprep.subr.bf16.mxu0 0
        %2542 = vmatpush2.bf16.msra.mxu0 0
        %2543 = vmatprep.subr.bf16.mxu0 0
        %2544 = vmatpush2.bf16.msra.mxu0 0
        %2545 = vmatprep.subr.bf16.mxu0 0
        %2546 = vmatpush2.bf16.msra.mxu0 0
        %2547 = vmatprep.subr.bf16.mxu0 0
        %2548 = vmatpush2.bf16.msra.mxu0 0
        %2549 = vmatprep.subr.bf16.mxu0 0
        %2550 = vmatpush2.bf16.msra.mxu0 0
        %2551 = vmatprep.mubr.bf16.mxu0 0
        %2552 = vmatmul.mubr.bf16.gmra.mxu0 %v2508
        %v2553 = vpop.f32.mrf.mxu0
        %v2554 = vadd.f32 0.0, %v2553
        %v2555 = vpop.f32.mrf.mxu0
        %v2556 = vadd.f32 0.0, %v2555
        %v2557 = vpop.f32.mrf.mxu0
        %v2558 = vadd.f32 0.0, %v2557
        %v2559 = vpop.f32.mrf.mxu0
        %v2560 = vadd.f32 0.0, %v2559
        %2561 = vdwg.mxu0
        %2562 = vmatprep.subr.bf16.mxu0 0
        %2563 = vmatpush1.bf16.msra.mxu0 0
        %2564 = vmatprep.subr.bf16.mxu0 0
        %2565 = vmatpush1.bf16.msra.mxu0 0
        %2566 = vmatprep.subr.bf16.mxu0 0
        %2567 = vmatpush1.bf16.msra.mxu0 0
        %2568 = vmatprep.subr.bf16.mxu0 0
        %2569 = vmatpush1.bf16.msra.mxu0 0
        %2570 = vmatprep.subr.bf16.mxu0 0
        %2571 = vmatpush1.bf16.msra.mxu0 0
        %2572 = vmatprep.subr.bf16.mxu0 0
        %2573 = vmatpush1.bf16.msra.mxu0 0
        %2574 = vmatprep.subr.bf16.mxu0 0
        %2575 = vmatpush1.bf16.msra.mxu0 0
        %2576 = vmatprep.subr.bf16.mxu0 0
        %2577 = vmatpush1.bf16.msra.mxu0 %v2517
        %2578 = vmatprep.subr.bf16.mxu0 0
        %2579 = vmatpush2.bf16.msra.mxu0 0
        %2580 = vmatprep.subr.bf16.mxu0 0
        %2581 = vmatpush2.bf16.msra.mxu0 0
        %2582 = vmatprep.subr.bf16.mxu0 0
        %2583 = vmatpush2.bf16.msra.mxu0 0
        %2584 = vmatprep.subr.bf16.mxu0 0
        %2585 = vmatpush2.bf16.msra.mxu0 0
        %2586 = vmatprep.subr.bf16.mxu0 0
        %2587 = vmatpush2.bf16.msra.mxu0 0
        %2588 = vmatprep.subr.bf16.mxu0 0
        %2589 = vmatpush2.bf16.msra.mxu0 0
        %2590 = vmatprep.subr.bf16.mxu0 0
        %2591 = vmatpush2.bf16.msra.mxu0 0
        %2592 = vmatprep.subr.bf16.mxu0 0
        %2593 = vmatpush2.bf16.msra.mxu0 0
        %2594 = vmatprep.mubr.bf16.mxu0 0
        %2595 = vmatmul.mubr.bf16.gmra.mxu0 %v2508
        %v2596 = vpop.f32.mrf.mxu0
        %v2597 = vadd.f32 0.0, %v2596
        %v2598 = vpop.f32.mrf.mxu0
        %v2599 = vpop.f32.mrf.mxu0
        %v2600 = vadd.f32 0.0, %v2599
        %v2601 = vpop.f32.mrf.mxu0
        %2602 = vdwg.mxu0
        %v2603 = vadd.f32 %v2482, %v2554
        %v2604 = vadd.f32 %v2483, %v2556
        %v2605 = vadd.f32 %v2484, %v2597
        %v2606 = vadd.f32 %v2485, %v2558
        %v2607 = vadd.f32 %v2486, %v2560
        %v2608 = vadd.f32 %v2487, %v2600
        %v2609 = vld [vmem:[%s6] sm:$0xff]
        %v2610 = vld [vmem:[%s6 + $0x8] sm:$0xff]
        %2612 = vset.pattern.permute.xlu0 0
        %2613 = vperm.xlu0 %2612, %v2609
        %v2614 = vpop.permute.xlu0 %2613
        %2617 = vset.pattern.permute.xlu0 0
        %2618 = vperm.xlu0 %2617, %v2610
        %v2619 = vpop.permute.xlu0 %2618
        %v2621 = vadd.f32 %v2603, %v2614
        %v2622 = vadd.f32 %v2604, %v2614
        %v2623 = vadd.f32 %v2605, %v2614
        %v2624 = vadd.f32 %v2606, %v2619
        %v2625 = vadd.f32 %v2607, %v2619
        %v2626 = vadd.f32 %v2608, %v2619
        %v2627 = vadd.f32 %v2621, 1.0
        %v2628 = vadd.f32 %v2622, 1.0
        %v2629 = vadd.f32 %v2623, 1.0
        %v2630 = vmul.f32 %v465, %v2627
        %v2631 = vmul.f32 %v466, %v2628
        %v2632 = vmul.f32 %v467, %v2629
        %v2633 = vadd.f32 %v2630, %v2624
        %v2634 = vadd.f32 %v2631, %v2625
        %v2635 = vadd.f32 %v2632, %v2626
        %vm2636 = vcmp.ge.f32.partialorder %v2633, 0.0
        %vm2637 = vcmp.ge.f32.partialorder %v2634, 0.0
        %vm2638 = vcmp.ge.f32.partialorder %v2635, 0.0
        %v2639 = vmul.f32 %v2633, 0.2
        %v2640 = vmul.f32 %v2634, 0.2
        %v2641 = vmul.f32 %v2635, 0.2
        %v2642 = vsel %vm2636, %v2633, %v2639
        %v2643 = vsel %vm2637, %v2634, %v2640
        %v2644 = vsel %vm2638, %v2635, %v2641
        %v2645 = vmul.f32 %v2642, %v422
        %v2646 = vmul.f32 %v2643, %v426
        %v2647 = vmul.f32 %v2644, %v430
        %v2648 = vpack.c.bf16 %v2645, %v2645
        %v2649 = vpack.c.bf16 %v2646, %v2646
        %v2650 = vpack.c.bf16 %v2647, %v2647
        %v2654 = vunpack.c.l.b16 %v2648
        %v2655 = vunpack.c.l.b16 %v2649
        %v2656 = vunpack.c.l.b16 %v2650
        %v2657 = vpack.c.b16 %v2655, %v2654
        %v2658 = vpack.c.b16 %v2656, %v2656
        %2659 = vrot.lane.b32.xlu0 %v2657, 32
        %v2660 = vpop.permute.xlu0 %2659
        %2661 = vrot.lane.b32.xlu0 %v2658, 32
        %v2662 = vpop.permute.xlu0 %2661
        %v2663 = vrot.slane %v2660, 4
        %v2664 = vrot.slane %v2662, 4
        %v2665 = vsel %vm1507, %v2663, %v2660
        %v2666 = vsel %vm1509, %v2663, %v2664
        %v2667 = vsel %vm1507, %v2666, %v2662
        %2670 = vst.msk [vmem:[#allocation2] sm:$0xff] %vm1516, %v2665
        %2671 = vst.msk [vmem:[#allocation2 + $0x8] sm:$0xff] %vm1519, %v2667
        %v2672 = vld [vmem:[%s7] sm:$0xf]
        %v2673 = vld [vmem:[#allocation2] sm:$0xff]
        %v2674 = vld [vmem:[#allocation2 + $0x8] sm:$0xff]
        %s2675 = scalar_lea.vmem %s7, 4
        %v2676 = vld [vmem:[%s2675] sm:$0xf]
        %v2679 = vunpack.c.l.b16 %v2673
        %v2680 = vunpack.c.h.b16 %v2673
        %v2681 = vunpack.c.l.b16 %v2674
        %v2682 = vunpack.c.h.b16 %v2674
        %v2683 = vpack.c.b16 %v2679, %v2679
        %v2684 = vpack.c.b16 %v2680, %v2680
        %v2685 = vpack.c.b16 %v2681, %v2681
        %v2686 = vpack.c.b16 %v2682, %v2682
        %2687 = vrot.lane.b32.xlu0 %v2683, 120
        %v2688 = vpop.permute.xlu0 %2687
        %2689 = vrot.lane.b32.xlu0 %v2684, 120
        %v2690 = vpop.permute.xlu0 %2689
        %2691 = vrot.lane.b32.xlu0 %v2685, 120
        %v2692 = vpop.permute.xlu0 %2691
        %2693 = vrot.lane.b32.xlu0 %v2686, 120
        %v2694 = vpop.permute.xlu0 %2693
        %v2695 = vsel %vm491, %v2688, %v2690
        %v2696 = vsel %vm491, %v2690, %v2692
        %v2697 = vsel %vm491, %v2692, %v2694
        %v2699 = vsel %vm495, %v2676, 0
        %v2702 = vsel %vm499, %v2695, 0
        %v2705 = vsel %vm499, %v2696, 0
        %v2708 = vsel %vm499, %v2697, 0
        %2710 = vmatprep.subr.bf16.mxu0 0
        %2711 = vmatpush1.bf16.msra.mxu0 0
        %2712 = vmatprep.subr.bf16.mxu0 0
        %2713 = vmatpush1.bf16.msra.mxu0 0
        %2714 = vmatprep.subr.bf16.mxu0 0
        %2715 = vmatpush1.bf16.msra.mxu0 0
        %2716 = vmatprep.subr.bf16.mxu0 0
        %2717 = vmatpush1.bf16.msra.mxu0 0
        %2718 = vmatprep.subr.bf16.mxu0 0
        %2719 = vmatpush1.bf16.msra.mxu0 0
        %2720 = vmatprep.subr.bf16.mxu0 0
        %2721 = vmatpush1.bf16.msra.mxu0 0
        %2722 = vmatprep.subr.bf16.mxu0 0
        %2723 = vmatpush1.bf16.msra.mxu0 0
        %2724 = vmatprep.subr.bf16.mxu0 %v2705
        %2725 = vmatpush1.bf16.msra.mxu0 %v2702
        %2726 = vmatprep.subr.bf16.mxu0 0
        %2727 = vmatpush2.bf16.msra.mxu0 0
        %2728 = vmatprep.subr.bf16.mxu0 0
        %2729 = vmatpush2.bf16.msra.mxu0 0
        %2730 = vmatprep.subr.bf16.mxu0 0
        %2731 = vmatpush2.bf16.msra.mxu0 0
        %2732 = vmatprep.subr.bf16.mxu0 0
        %2733 = vmatpush2.bf16.msra.mxu0 0
        %2734 = vmatprep.subr.bf16.mxu0 0
        %2735 = vmatpush2.bf16.msra.mxu0 0
        %2736 = vmatprep.subr.bf16.mxu0 0
        %2737 = vmatpush2.bf16.msra.mxu0 0
        %2738 = vmatprep.subr.bf16.mxu0 0
        %2739 = vmatpush2.bf16.msra.mxu0 0
        %2740 = vmatprep.subr.bf16.mxu0 0
        %2741 = vmatpush2.bf16.msra.mxu0 0
        %2742 = vmatprep.mubr.bf16.mxu0 0
        %2743 = vmatmul.mubr.bf16.gmra.mxu0 %v2699
        %v2744 = vpop.f32.mrf.mxu0
        %v2745 = vadd.f32 0.0, %v2744
        %v2746 = vpop.f32.mrf.mxu0
        %v2747 = vadd.f32 0.0, %v2746
        %v2748 = vpop.f32.mrf.mxu0
        %v2749 = vpop.f32.mrf.mxu0
        %2750 = vdwg.mxu0
        %2751 = vmatprep.subr.bf16.mxu0 0
        %2752 = vmatpush1.bf16.msra.mxu0 0
        %2753 = vmatprep.subr.bf16.mxu0 0
        %2754 = vmatpush1.bf16.msra.mxu0 0
        %2755 = vmatprep.subr.bf16.mxu0 0
        %2756 = vmatpush1.bf16.msra.mxu0 0
        %2757 = vmatprep.subr.bf16.mxu0 0
        %2758 = vmatpush1.bf16.msra.mxu0 0
        %2759 = vmatprep.subr.bf16.mxu0 0
        %2760 = vmatpush1.bf16.msra.mxu0 0
        %2761 = vmatprep.subr.bf16.mxu0 0
        %2762 = vmatpush1.bf16.msra.mxu0 0
        %2763 = vmatprep.subr.bf16.mxu0 0
        %2764 = vmatpush1.bf16.msra.mxu0 0
        %2765 = vmatprep.subr.bf16.mxu0 0
        %2766 = vmatpush1.bf16.msra.mxu0 %v2708
        %2767 = vmatprep.subr.bf16.mxu0 0
        %2768 = vmatpush2.bf16.msra.mxu0 0
        %2769 = vmatprep.subr.bf16.mxu0 0
        %2770 = vmatpush2.bf16.msra.mxu0 0
        %2771 = vmatprep.subr.bf16.mxu0 0
        %2772 = vmatpush2.bf16.msra.mxu0 0
        %2773 = vmatprep.subr.bf16.mxu0 0
        %2774 = vmatpush2.bf16.msra.mxu0 0
        %2775 = vmatprep.subr.bf16.mxu0 0
        %2776 = vmatpush2.bf16.msra.mxu0 0
        %2777 = vmatprep.subr.bf16.mxu0 0
        %2778 = vmatpush2.bf16.msra.mxu0 0
        %2779 = vmatprep.subr.bf16.mxu0 0
        %2780 = vmatpush2.bf16.msra.mxu0 0
        %2781 = vmatprep.subr.bf16.mxu0 0
        %2782 = vmatpush2.bf16.msra.mxu0 0
        %2783 = vmatprep.mubr.bf16.mxu0 0
        %2784 = vmatmul.mubr.bf16.gmra.mxu0 %v2699
        %v2785 = vpop.f32.mrf.mxu0
        %v2786 = vadd.f32 0.0, %v2785
        %v2787 = vpop.f32.mrf.mxu0
        %v2788 = vpop.f32.mrf.mxu0
        %v2789 = vpop.f32.mrf.mxu0
        %2790 = vdwg.mxu0
        %2791 = vrot.lane.b32.xlu0 %v2683, 121
        %v2792 = vpop.permute.xlu0 %2791
        %2793 = vrot.lane.b32.xlu0 %v2684, 121
        %v2794 = vpop.permute.xlu0 %2793
        %2795 = vrot.lane.b32.xlu0 %v2685, 121
        %v2796 = vpop.permute.xlu0 %2795
        %2797 = vrot.lane.b32.xlu0 %v2686, 121
        %v2798 = vpop.permute.xlu0 %2797
        %v2799 = vsel %vm598, %v2792, %v2794
        %v2800 = vsel %vm598, %v2794, %v2796
        %v2801 = vsel %vm598, %v2796, %v2798
        %v2803 = vsel %vm495, %v2672, 0
        %v2806 = vsel %vm499, %v2799, 0
        %v2809 = vsel %vm499, %v2800, 0
        %v2812 = vsel %vm499, %v2801, 0
        %2814 = vmatprep.subr.bf16.mxu0 0
        %2815 = vmatpush1.bf16.msra.mxu0 0
        %2816 = vmatprep.subr.bf16.mxu0 0
        %2817 = vmatpush1.bf16.msra.mxu0 0
        %2818 = vmatprep.subr.bf16.mxu0 0
        %2819 = vmatpush1.bf16.msra.mxu0 0
        %2820 = vmatprep.subr.bf16.mxu0 0
        %2821 = vmatpush1.bf16.msra.mxu0 0
        %2822 = vmatprep.subr.bf16.mxu0 0
        %2823 = vmatpush1.bf16.msra.mxu0 0
        %2824 = vmatprep.subr.bf16.mxu0 0
        %2825 = vmatpush1.bf16.msra.mxu0 0
        %2826 = vmatprep.subr.bf16.mxu0 0
        %2827 = vmatpush1.bf16.msra.mxu0 0
        %2828 = vmatprep.subr.bf16.mxu0 %v2809
        %2829 = vmatpush1.bf16.msra.mxu0 %v2806
        %2830 = vmatprep.subr.bf16.mxu0 0
        %2831 = vmatpush2.bf16.msra.mxu0 0
        %2832 = vmatprep.subr.bf16.mxu0 0
        %2833 = vmatpush2.bf16.msra.mxu0 0
        %2834 = vmatprep.subr.bf16.mxu0 0
        %2835 = vmatpush2.bf16.msra.mxu0 0
        %2836 = vmatprep.subr.bf16.mxu0 0
        %2837 = vmatpush2.bf16.msra.mxu0 0
        %2838 = vmatprep.subr.bf16.mxu0 0
        %2839 = vmatpush2.bf16.msra.mxu0 0
        %2840 = vmatprep.subr.bf16.mxu0 0
        %2841 = vmatpush2.bf16.msra.mxu0 0
        %2842 = vmatprep.subr.bf16.mxu0 0
        %2843 = vmatpush2.bf16.msra.mxu0 0
        %2844 = vmatprep.subr.bf16.mxu0 0
        %2845 = vmatpush2.bf16.msra.mxu0 0
        %2846 = vmatprep.mubr.bf16.mxu0 0
        %2847 = vmatmul.mubr.bf16.gmra.mxu0 %v2803
        %v2848 = vpop.f32.mrf.mxu0
        %v2849 = vadd.f32 %v2745, %v2848
        %v2850 = vpop.f32.mrf.mxu0
        %v2851 = vadd.f32 %v2747, %v2850
        %v2852 = vpop.f32.mrf.mxu0
        %v2853 = vpop.f32.mrf.mxu0
        %2854 = vdwg.mxu0
        %2855 = vmatprep.subr.bf16.mxu0 0
        %2856 = vmatpush1.bf16.msra.mxu0 0
        %2857 = vmatprep.subr.bf16.mxu0 0
        %2858 = vmatpush1.bf16.msra.mxu0 0
        %2859 = vmatprep.subr.bf16.mxu0 0
        %2860 = vmatpush1.bf16.msra.mxu0 0
        %2861 = vmatprep.subr.bf16.mxu0 0
        %2862 = vmatpush1.bf16.msra.mxu0 0
        %2863 = vmatprep.subr.bf16.mxu0 0
        %2864 = vmatpush1.bf16.msra.mxu0 0
        %2865 = vmatprep.subr.bf16.mxu0 0
        %2866 = vmatpush1.bf16.msra.mxu0 0
        %2867 = vmatprep.subr.bf16.mxu0 0
        %2868 = vmatpush1.bf16.msra.mxu0 0
        %2869 = vmatprep.subr.bf16.mxu0 0
        %2870 = vmatpush1.bf16.msra.mxu0 %v2812
        %2871 = vmatprep.subr.bf16.mxu0 0
        %2872 = vmatpush2.bf16.msra.mxu0 0
        %2873 = vmatprep.subr.bf16.mxu0 0
        %2874 = vmatpush2.bf16.msra.mxu0 0
        %2875 = vmatprep.subr.bf16.mxu0 0
        %2876 = vmatpush2.bf16.msra.mxu0 0
        %2877 = vmatprep.subr.bf16.mxu0 0
        %2878 = vmatpush2.bf16.msra.mxu0 0
        %2879 = vmatprep.subr.bf16.mxu0 0
        %2880 = vmatpush2.bf16.msra.mxu0 0
        %2881 = vmatprep.subr.bf16.mxu0 0
        %2882 = vmatpush2.bf16.msra.mxu0 0
        %2883 = vmatprep.subr.bf16.mxu0 0
        %2884 = vmatpush2.bf16.msra.mxu0 0
        %2885 = vmatprep.subr.bf16.mxu0 0
        %2886 = vmatpush2.bf16.msra.mxu0 0
        %2887 = vmatprep.mubr.bf16.mxu0 0
        %2888 = vmatmul.mubr.bf16.gmra.mxu0 %v2803
        %v2889 = vpop.f32.mrf.mxu0
        %v2890 = vadd.f32 %v2786, %v2889
        %v2891 = vpop.f32.mrf.mxu0
        %v2892 = vpop.f32.mrf.mxu0
        %v2893 = vpop.f32.mrf.mxu0
        %2894 = vdwg.mxu0
        %s2895 = scalar_lea.vmem %s7, 8
        %v2896 = vld [vmem:[%s2895] sm:$0xf]
        %2897 = vrot.lane.b32.xlu0 %v2683, 119
        %v2898 = vpop.permute.xlu0 %2897
        %2899 = vrot.lane.b32.xlu0 %v2684, 119
        %v2900 = vpop.permute.xlu0 %2899
        %2901 = vrot.lane.b32.xlu0 %v2685, 119
        %v2902 = vpop.permute.xlu0 %2901
        %2903 = vrot.lane.b32.xlu0 %v2686, 119
        %v2904 = vpop.permute.xlu0 %2903
        %v2905 = vsel %vm705, %v2898, %v2900
        %v2906 = vsel %vm705, %v2900, %v2902
        %v2907 = vsel %vm705, %v2902, %v2904
        %v2909 = vsel %vm495, %v2896, 0
        %v2912 = vsel %vm499, %v2905, 0
        %v2915 = vsel %vm499, %v2906, 0
        %v2918 = vsel %vm499, %v2907, 0
        %2920 = vmatprep.subr.bf16.mxu0 0
        %2921 = vmatpush1.bf16.msra.mxu0 0
        %2922 = vmatprep.subr.bf16.mxu0 0
        %2923 = vmatpush1.bf16.msra.mxu0 0
        %2924 = vmatprep.subr.bf16.mxu0 0
        %2925 = vmatpush1.bf16.msra.mxu0 0
        %2926 = vmatprep.subr.bf16.mxu0 0
        %2927 = vmatpush1.bf16.msra.mxu0 0
        %2928 = vmatprep.subr.bf16.mxu0 0
        %2929 = vmatpush1.bf16.msra.mxu0 0
        %2930 = vmatprep.subr.bf16.mxu0 0
        %2931 = vmatpush1.bf16.msra.mxu0 0
        %2932 = vmatprep.subr.bf16.mxu0 0
        %2933 = vmatpush1.bf16.msra.mxu0 0
        %2934 = vmatprep.subr.bf16.mxu0 %v2915
        %2935 = vmatpush1.bf16.msra.mxu0 %v2912
        %2936 = vmatprep.subr.bf16.mxu0 0
        %2937 = vmatpush2.bf16.msra.mxu0 0
        %2938 = vmatprep.subr.bf16.mxu0 0
        %2939 = vmatpush2.bf16.msra.mxu0 0
        %2940 = vmatprep.subr.bf16.mxu0 0
        %2941 = vmatpush2.bf16.msra.mxu0 0
        %2942 = vmatprep.subr.bf16.mxu0 0
        %2943 = vmatpush2.bf16.msra.mxu0 0
        %2944 = vmatprep.subr.bf16.mxu0 0
        %2945 = vmatpush2.bf16.msra.mxu0 0
        %2946 = vmatprep.subr.bf16.mxu0 0
        %2947 = vmatpush2.bf16.msra.mxu0 0
        %2948 = vmatprep.subr.bf16.mxu0 0
        %2949 = vmatpush2.bf16.msra.mxu0 0
        %2950 = vmatprep.subr.bf16.mxu0 0
        %2951 = vmatpush2.bf16.msra.mxu0 0
        %2952 = vmatprep.mubr.bf16.mxu0 0
        %2953 = vmatmul.mubr.bf16.gmra.mxu0 %v2909
        %v2954 = vpop.f32.mrf.mxu0
        %v2955 = vadd.f32 0.0, %v2954
        %v2956 = vpop.f32.mrf.mxu0
        %v2957 = vadd.f32 0.0, %v2956
        %v2958 = vpop.f32.mrf.mxu0
        %v2959 = vpop.f32.mrf.mxu0
        %2960 = vdwg.mxu0
        %2961 = vmatprep.subr.bf16.mxu0 0
        %2962 = vmatpush1.bf16.msra.mxu0 0
        %2963 = vmatprep.subr.bf16.mxu0 0
        %2964 = vmatpush1.bf16.msra.mxu0 0
        %2965 = vmatprep.subr.bf16.mxu0 0
        %2966 = vmatpush1.bf16.msra.mxu0 0
        %2967 = vmatprep.subr.bf16.mxu0 0
        %2968 = vmatpush1.bf16.msra.mxu0 0
        %2969 = vmatprep.subr.bf16.mxu0 0
        %2970 = vmatpush1.bf16.msra.mxu0 0
        %2971 = vmatprep.subr.bf16.mxu0 0
        %2972 = vmatpush1.bf16.msra.mxu0 0
        %2973 = vmatprep.subr.bf16.mxu0 0
        %2974 = vmatpush1.bf16.msra.mxu0 0
        %2975 = vmatprep.subr.bf16.mxu0 0
        %2976 = vmatpush1.bf16.msra.mxu0 %v2918
        %2977 = vmatprep.subr.bf16.mxu0 0
        %2978 = vmatpush2.bf16.msra.mxu0 0
        %2979 = vmatprep.subr.bf16.mxu0 0
        %2980 = vmatpush2.bf16.msra.mxu0 0
        %2981 = vmatprep.subr.bf16.mxu0 0
        %2982 = vmatpush2.bf16.msra.mxu0 0
        %2983 = vmatprep.subr.bf16.mxu0 0
        %2984 = vmatpush2.bf16.msra.mxu0 0
        %2985 = vmatprep.subr.bf16.mxu0 0
        %2986 = vmatpush2.bf16.msra.mxu0 0
        %2987 = vmatprep.subr.bf16.mxu0 0
        %2988 = vmatpush2.bf16.msra.mxu0 0
        %2989 = vmatprep.subr.bf16.mxu0 0
        %2990 = vmatpush2.bf16.msra.mxu0 0
        %2991 = vmatprep.subr.bf16.mxu0 0
        %2992 = vmatpush2.bf16.msra.mxu0 0
        %2993 = vmatprep.mubr.bf16.mxu0 0
        %2994 = vmatmul.mubr.bf16.gmra.mxu0 %v2909
        %v2995 = vpop.f32.mrf.mxu0
        %v2996 = vadd.f32 0.0, %v2995
        %v2997 = vpop.f32.mrf.mxu0
        %v2998 = vpop.f32.mrf.mxu0
        %v2999 = vpop.f32.mrf.mxu0
        %3000 = vdwg.mxu0
        %v3001 = vadd.f32 %v2849, %v2955
        %v3002 = vadd.f32 %v2851, %v2957
        %v3003 = vadd.f32 %v2890, %v2996
        %s3004 = scalar_lea.vmem %s7, 12
        %v3005 = vld [vmem:[%s3004] sm:$0xf]
        %3006 = vrot.lane.b32.xlu0 %v2683, 97
        %v3007 = vpop.permute.xlu0 %3006
        %3008 = vrot.lane.b32.xlu0 %v2684, 97
        %v3009 = vpop.permute.xlu0 %3008
        %3010 = vrot.lane.b32.xlu0 %v2685, 97
        %v3011 = vpop.permute.xlu0 %3010
        %3012 = vrot.lane.b32.xlu0 %v2686, 97
        %v3013 = vpop.permute.xlu0 %3012
        %v3014 = vsel %vm815, %v3007, %v3009
        %v3015 = vsel %vm815, %v3009, %v3011
        %v3016 = vsel %vm815, %v3011, %v3013
        %v3018 = vsel %vm495, %v3005, 0
        %v3021 = vsel %vm499, %v3014, 0
        %v3024 = vsel %vm499, %v3015, 0
        %v3027 = vsel %vm499, %v3016, 0
        %3029 = vmatprep.subr.bf16.mxu0 0
        %3030 = vmatpush1.bf16.msra.mxu0 0
        %3031 = vmatprep.subr.bf16.mxu0 0
        %3032 = vmatpush1.bf16.msra.mxu0 0
        %3033 = vmatprep.subr.bf16.mxu0 0
        %3034 = vmatpush1.bf16.msra.mxu0 0
        %3035 = vmatprep.subr.bf16.mxu0 0
        %3036 = vmatpush1.bf16.msra.mxu0 0
        %3037 = vmatprep.subr.bf16.mxu0 0
        %3038 = vmatpush1.bf16.msra.mxu0 0
        %3039 = vmatprep.subr.bf16.mxu0 0
        %3040 = vmatpush1.bf16.msra.mxu0 0
        %3041 = vmatprep.subr.bf16.mxu0 0
        %3042 = vmatpush1.bf16.msra.mxu0 0
        %3043 = vmatprep.subr.bf16.mxu0 %v3024
        %3044 = vmatpush1.bf16.msra.mxu0 %v3021
        %3045 = vmatprep.subr.bf16.mxu0 0
        %3046 = vmatpush2.bf16.msra.mxu0 0
        %3047 = vmatprep.subr.bf16.mxu0 0
        %3048 = vmatpush2.bf16.msra.mxu0 0
        %3049 = vmatprep.subr.bf16.mxu0 0
        %3050 = vmatpush2.bf16.msra.mxu0 0
        %3051 = vmatprep.subr.bf16.mxu0 0
        %3052 = vmatpush2.bf16.msra.mxu0 0
        %3053 = vmatprep.subr.bf16.mxu0 0
        %3054 = vmatpush2.bf16.msra.mxu0 0
        %3055 = vmatprep.subr.bf16.mxu0 0
        %3056 = vmatpush2.bf16.msra.mxu0 0
        %3057 = vmatprep.subr.bf16.mxu0 0
        %3058 = vmatpush2.bf16.msra.mxu0 0
        %3059 = vmatprep.subr.bf16.mxu0 0
        %3060 = vmatpush2.bf16.msra.mxu0 0
        %3061 = vmatprep.mubr.bf16.mxu0 0
        %3062 = vmatmul.mubr.bf16.gmra.mxu0 %v3018
        %v3063 = vpop.f32.mrf.mxu0
        %v3064 = vadd.f32 0.0, %v3063
        %v3065 = vpop.f32.mrf.mxu0
        %v3066 = vadd.f32 0.0, %v3065
        %v3067 = vpop.f32.mrf.mxu0
        %v3068 = vpop.f32.mrf.mxu0
        %3069 = vdwg.mxu0
        %3070 = vmatprep.subr.bf16.mxu0 0
        %3071 = vmatpush1.bf16.msra.mxu0 0
        %3072 = vmatprep.subr.bf16.mxu0 0
        %3073 = vmatpush1.bf16.msra.mxu0 0
        %3074 = vmatprep.subr.bf16.mxu0 0
        %3075 = vmatpush1.bf16.msra.mxu0 0
        %3076 = vmatprep.subr.bf16.mxu0 0
        %3077 = vmatpush1.bf16.msra.mxu0 0
        %3078 = vmatprep.subr.bf16.mxu0 0
        %3079 = vmatpush1.bf16.msra.mxu0 0
        %3080 = vmatprep.subr.bf16.mxu0 0
        %3081 = vmatpush1.bf16.msra.mxu0 0
        %3082 = vmatprep.subr.bf16.mxu0 0
        %3083 = vmatpush1.bf16.msra.mxu0 0
        %3084 = vmatprep.subr.bf16.mxu0 0
        %3085 = vmatpush1.bf16.msra.mxu0 %v3027
        %3086 = vmatprep.subr.bf16.mxu0 0
        %3087 = vmatpush2.bf16.msra.mxu0 0
        %3088 = vmatprep.subr.bf16.mxu0 0
        %3089 = vmatpush2.bf16.msra.mxu0 0
        %3090 = vmatprep.subr.bf16.mxu0 0
        %3091 = vmatpush2.bf16.msra.mxu0 0
        %3092 = vmatprep.subr.bf16.mxu0 0
        %3093 = vmatpush2.bf16.msra.mxu0 0
        %3094 = vmatprep.subr.bf16.mxu0 0
        %3095 = vmatpush2.bf16.msra.mxu0 0
        %3096 = vmatprep.subr.bf16.mxu0 0
        %3097 = vmatpush2.bf16.msra.mxu0 0
        %3098 = vmatprep.subr.bf16.mxu0 0
        %3099 = vmatpush2.bf16.msra.mxu0 0
        %3100 = vmatprep.subr.bf16.mxu0 0
        %3101 = vmatpush2.bf16.msra.mxu0 0
        %3102 = vmatprep.mubr.bf16.mxu0 0
        %3103 = vmatmul.mubr.bf16.gmra.mxu0 %v3018
        %v3104 = vpop.f32.mrf.mxu0
        %v3105 = vadd.f32 0.0, %v3104
        %v3106 = vpop.f32.mrf.mxu0
        %v3107 = vpop.f32.mrf.mxu0
        %v3108 = vpop.f32.mrf.mxu0
        %3109 = vdwg.mxu0
        %v3110 = vadd.f32 %v3001, %v3064
        %v3111 = vadd.f32 %v3002, %v3066
        %v3112 = vadd.f32 %v3003, %v3105
        %s3113 = scalar_lea.vmem %s7, 16
        %v3114 = vld [vmem:[%s3113] sm:$0xf]
        %3115 = vrot.lane.b32.xlu0 %v2683, 96
        %v3116 = vpop.permute.xlu0 %3115
        %3117 = vrot.lane.b32.xlu0 %v2684, 96
        %v3118 = vpop.permute.xlu0 %3117
        %3119 = vrot.lane.b32.xlu0 %v2685, 96
        %v3120 = vpop.permute.xlu0 %3119
        %3121 = vrot.lane.b32.xlu0 %v2686, 96
        %v3122 = vpop.permute.xlu0 %3121
        %v3123 = vsel %vm925, %v3116, %v3118
        %v3124 = vsel %vm925, %v3118, %v3120
        %v3125 = vsel %vm925, %v3120, %v3122
        %v3127 = vsel %vm495, %v3114, 0
        %v3130 = vsel %vm499, %v3123, 0
        %v3133 = vsel %vm499, %v3124, 0
        %v3136 = vsel %vm499, %v3125, 0
        %3138 = vmatprep.subr.bf16.mxu0 0
        %3139 = vmatpush1.bf16.msra.mxu0 0
        %3140 = vmatprep.subr.bf16.mxu0 0
        %3141 = vmatpush1.bf16.msra.mxu0 0
        %3142 = vmatprep.subr.bf16.mxu0 0
        %3143 = vmatpush1.bf16.msra.mxu0 0
        %3144 = vmatprep.subr.bf16.mxu0 0
        %3145 = vmatpush1.bf16.msra.mxu0 0
        %3146 = vmatprep.subr.bf16.mxu0 0
        %3147 = vmatpush1.bf16.msra.mxu0 0
        %3148 = vmatprep.subr.bf16.mxu0 0
        %3149 = vmatpush1.bf16.msra.mxu0 0
        %3150 = vmatprep.subr.bf16.mxu0 0
        %3151 = vmatpush1.bf16.msra.mxu0 0
        %3152 = vmatprep.subr.bf16.mxu0 %v3133
        %3153 = vmatpush1.bf16.msra.mxu0 %v3130
        %3154 = vmatprep.subr.bf16.mxu0 0
        %3155 = vmatpush2.bf16.msra.mxu0 0
        %3156 = vmatprep.subr.bf16.mxu0 0
        %3157 = vmatpush2.bf16.msra.mxu0 0
        %3158 = vmatprep.subr.bf16.mxu0 0
        %3159 = vmatpush2.bf16.msra.mxu0 0
        %3160 = vmatprep.subr.bf16.mxu0 0
        %3161 = vmatpush2.bf16.msra.mxu0 0
        %3162 = vmatprep.subr.bf16.mxu0 0
        %3163 = vmatpush2.bf16.msra.mxu0 0
        %3164 = vmatprep.subr.bf16.mxu0 0
        %3165 = vmatpush2.bf16.msra.mxu0 0
        %3166 = vmatprep.subr.bf16.mxu0 0
        %3167 = vmatpush2.bf16.msra.mxu0 0
        %3168 = vmatprep.subr.bf16.mxu0 0
        %3169 = vmatpush2.bf16.msra.mxu0 0
        %3170 = vmatprep.mubr.bf16.mxu0 0
        %3171 = vmatmul.mubr.bf16.gmra.mxu0 %v3127
        %v3172 = vpop.f32.mrf.mxu0
        %v3173 = vadd.f32 0.0, %v3172
        %v3174 = vpop.f32.mrf.mxu0
        %v3175 = vadd.f32 0.0, %v3174
        %v3176 = vpop.f32.mrf.mxu0
        %v3177 = vpop.f32.mrf.mxu0
        %3178 = vdwg.mxu0
        %3179 = vmatprep.subr.bf16.mxu0 0
        %3180 = vmatpush1.bf16.msra.mxu0 0
        %3181 = vmatprep.subr.bf16.mxu0 0
        %3182 = vmatpush1.bf16.msra.mxu0 0
        %3183 = vmatprep.subr.bf16.mxu0 0
        %3184 = vmatpush1.bf16.msra.mxu0 0
        %3185 = vmatprep.subr.bf16.mxu0 0
        %3186 = vmatpush1.bf16.msra.mxu0 0
        %3187 = vmatprep.subr.bf16.mxu0 0
        %3188 = vmatpush1.bf16.msra.mxu0 0
        %3189 = vmatprep.subr.bf16.mxu0 0
        %3190 = vmatpush1.bf16.msra.mxu0 0
        %3191 = vmatprep.subr.bf16.mxu0 0
        %3192 = vmatpush1.bf16.msra.mxu0 0
        %3193 = vmatprep.subr.bf16.mxu0 0
        %3194 = vmatpush1.bf16.msra.mxu0 %v3136
        %3195 = vmatprep.subr.bf16.mxu0 0
        %3196 = vmatpush2.bf16.msra.mxu0 0
        %3197 = vmatprep.subr.bf16.mxu0 0
        %3198 = vmatpush2.bf16.msra.mxu0 0
        %3199 = vmatprep.subr.bf16.mxu0 0
        %3200 = vmatpush2.bf16.msra.mxu0 0
        %3201 = vmatprep.subr.bf16.mxu0 0
        %3202 = vmatpush2.bf16.msra.mxu0 0
        %3203 = vmatprep.subr.bf16.mxu0 0
        %3204 = vmatpush2.bf16.msra.mxu0 0
        %3205 = vmatprep.subr.bf16.mxu0 0
        %3206 = vmatpush2.bf16.msra.mxu0 0
        %3207 = vmatprep.subr.bf16.mxu0 0
        %3208 = vmatpush2.bf16.msra.mxu0 0
        %3209 = vmatprep.subr.bf16.mxu0 0
        %3210 = vmatpush2.bf16.msra.mxu0 0
        %3211 = vmatprep.mubr.bf16.mxu0 0
        %3212 = vmatmul.mubr.bf16.gmra.mxu0 %v3127
        %v3213 = vpop.f32.mrf.mxu0
        %v3214 = vadd.f32 0.0, %v3213
        %v3215 = vpop.f32.mrf.mxu0
        %v3216 = vpop.f32.mrf.mxu0
        %v3217 = vpop.f32.mrf.mxu0
        %3218 = vdwg.mxu0
        %v3219 = vadd.f32 %v3110, %v3173
        %v3220 = vadd.f32 %v3111, %v3175
        %v3221 = vadd.f32 %v3112, %v3214
        %s3222 = scalar_lea.vmem %s7, 20
        %v3223 = vld [vmem:[%s3222] sm:$0xf]
        %3224 = vrot.lane.b32.xlu0 %v2683, 95
        %v3225 = vpop.permute.xlu0 %3224
        %3226 = vrot.lane.b32.xlu0 %v2684, 95
        %v3227 = vpop.permute.xlu0 %3226
        %3228 = vrot.lane.b32.xlu0 %v2685, 95
        %v3229 = vpop.permute.xlu0 %3228
        %3230 = vrot.lane.b32.xlu0 %v2686, 95
        %v3231 = vpop.permute.xlu0 %3230
        %v3232 = vsel %vm1035, %v3225, %v3227
        %v3233 = vsel %vm1035, %v3227, %v3229
        %v3234 = vsel %vm1035, %v3229, %v3231
        %v3236 = vsel %vm495, %v3223, 0
        %v3239 = vsel %vm499, %v3232, 0
        %v3242 = vsel %vm499, %v3233, 0
        %v3245 = vsel %vm499, %v3234, 0
        %3247 = vmatprep.subr.bf16.mxu0 0
        %3248 = vmatpush1.bf16.msra.mxu0 0
        %3249 = vmatprep.subr.bf16.mxu0 0
        %3250 = vmatpush1.bf16.msra.mxu0 0
        %3251 = vmatprep.subr.bf16.mxu0 0
        %3252 = vmatpush1.bf16.msra.mxu0 0
        %3253 = vmatprep.subr.bf16.mxu0 0
        %3254 = vmatpush1.bf16.msra.mxu0 0
        %3255 = vmatprep.subr.bf16.mxu0 0
        %3256 = vmatpush1.bf16.msra.mxu0 0
        %3257 = vmatprep.subr.bf16.mxu0 0
        %3258 = vmatpush1.bf16.msra.mxu0 0
        %3259 = vmatprep.subr.bf16.mxu0 0
        %3260 = vmatpush1.bf16.msra.mxu0 0
        %3261 = vmatprep.subr.bf16.mxu0 %v3242
        %3262 = vmatpush1.bf16.msra.mxu0 %v3239
        %3263 = vmatprep.subr.bf16.mxu0 0
        %3264 = vmatpush2.bf16.msra.mxu0 0
        %3265 = vmatprep.subr.bf16.mxu0 0
        %3266 = vmatpush2.bf16.msra.mxu0 0
        %3267 = vmatprep.subr.bf16.mxu0 0
        %3268 = vmatpush2.bf16.msra.mxu0 0
        %3269 = vmatprep.subr.bf16.mxu0 0
        %3270 = vmatpush2.bf16.msra.mxu0 0
        %3271 = vmatprep.subr.bf16.mxu0 0
        %3272 = vmatpush2.bf16.msra.mxu0 0
        %3273 = vmatprep.subr.bf16.mxu0 0
        %3274 = vmatpush2.bf16.msra.mxu0 0
        %3275 = vmatprep.subr.bf16.mxu0 0
        %3276 = vmatpush2.bf16.msra.mxu0 0
        %3277 = vmatprep.subr.bf16.mxu0 0
        %3278 = vmatpush2.bf16.msra.mxu0 0
        %3279 = vmatprep.mubr.bf16.mxu0 0
        %3280 = vmatmul.mubr.bf16.gmra.mxu0 %v3236
        %v3281 = vpop.f32.mrf.mxu0
        %v3282 = vadd.f32 0.0, %v3281
        %v3283 = vpop.f32.mrf.mxu0
        %v3284 = vadd.f32 0.0, %v3283
        %v3285 = vpop.f32.mrf.mxu0
        %v3286 = vpop.f32.mrf.mxu0
        %3287 = vdwg.mxu0
        %3288 = vmatprep.subr.bf16.mxu0 0
        %3289 = vmatpush1.bf16.msra.mxu0 0
        %3290 = vmatprep.subr.bf16.mxu0 0
        %3291 = vmatpush1.bf16.msra.mxu0 0
        %3292 = vmatprep.subr.bf16.mxu0 0
        %3293 = vmatpush1.bf16.msra.mxu0 0
        %3294 = vmatprep.subr.bf16.mxu0 0
        %3295 = vmatpush1.bf16.msra.mxu0 0
        %3296 = vmatprep.subr.bf16.mxu0 0
        %3297 = vmatpush1.bf16.msra.mxu0 0
        %3298 = vmatprep.subr.bf16.mxu0 0
        %3299 = vmatpush1.bf16.msra.mxu0 0
        %3300 = vmatprep.subr.bf16.mxu0 0
        %3301 = vmatpush1.bf16.msra.mxu0 0
        %3302 = vmatprep.subr.bf16.mxu0 0
        %3303 = vmatpush1.bf16.msra.mxu0 %v3245
        %3304 = vmatprep.subr.bf16.mxu0 0
        %3305 = vmatpush2.bf16.msra.mxu0 0
        %3306 = vmatprep.subr.bf16.mxu0 0
        %3307 = vmatpush2.bf16.msra.mxu0 0
        %3308 = vmatprep.subr.bf16.mxu0 0
        %3309 = vmatpush2.bf16.msra.mxu0 0
        %3310 = vmatprep.subr.bf16.mxu0 0
        %3311 = vmatpush2.bf16.msra.mxu0 0
        %3312 = vmatprep.subr.bf16.mxu0 0
        %3313 = vmatpush2.bf16.msra.mxu0 0
        %3314 = vmatprep.subr.bf16.mxu0 0
        %3315 = vmatpush2.bf16.msra.mxu0 0
        %3316 = vmatprep.subr.bf16.mxu0 0
        %3317 = vmatpush2.bf16.msra.mxu0 0
        %3318 = vmatprep.subr.bf16.mxu0 0
        %3319 = vmatpush2.bf16.msra.mxu0 0
        %3320 = vmatprep.mubr.bf16.mxu0 0
        %3321 = vmatmul.mubr.bf16.gmra.mxu0 %v3236
        %v3322 = vpop.f32.mrf.mxu0
        %v3323 = vadd.f32 0.0, %v3322
        %v3324 = vpop.f32.mrf.mxu0
        %v3325 = vpop.f32.mrf.mxu0
        %v3326 = vpop.f32.mrf.mxu0
        %3327 = vdwg.mxu0
        %v3328 = vadd.f32 %v3219, %v3282
        %v3329 = vadd.f32 %v3220, %v3284
        %v3330 = vadd.f32 %v3221, %v3323
        %s3331 = scalar_lea.vmem %s7, 24
        %v3332 = vld [vmem:[%s3331] sm:$0xf]
        %3333 = vrot.lane.b32.xlu0 %v2683, 73
        %v3334 = vpop.permute.xlu0 %3333
        %3335 = vrot.lane.b32.xlu0 %v2684, 73
        %v3336 = vpop.permute.xlu0 %3335
        %3337 = vrot.lane.b32.xlu0 %v2685, 73
        %v3338 = vpop.permute.xlu0 %3337
        %3339 = vrot.lane.b32.xlu0 %v2686, 73
        %v3340 = vpop.permute.xlu0 %3339
        %v3341 = vsel %vm1145, %v3334, %v3336
        %v3342 = vsel %vm1145, %v3336, %v3338
        %v3343 = vsel %vm1145, %v3338, %v3340
        %v3345 = vsel %vm495, %v3332, 0
        %v3348 = vsel %vm499, %v3341, 0
        %v3351 = vsel %vm499, %v3342, 0
        %v3354 = vsel %vm499, %v3343, 0
        %3356 = vmatprep.subr.bf16.mxu0 0
        %3357 = vmatpush1.bf16.msra.mxu0 0
        %3358 = vmatprep.subr.bf16.mxu0 0
        %3359 = vmatpush1.bf16.msra.mxu0 0
        %3360 = vmatprep.subr.bf16.mxu0 0
        %3361 = vmatpush1.bf16.msra.mxu0 0
        %3362 = vmatprep.subr.bf16.mxu0 0
        %3363 = vmatpush1.bf16.msra.mxu0 0
        %3364 = vmatprep.subr.bf16.mxu0 0
        %3365 = vmatpush1.bf16.msra.mxu0 0
        %3366 = vmatprep.subr.bf16.mxu0 0
        %3367 = vmatpush1.bf16.msra.mxu0 0
        %3368 = vmatprep.subr.bf16.mxu0 0
        %3369 = vmatpush1.bf16.msra.mxu0 0
        %3370 = vmatprep.subr.bf16.mxu0 %v3351
        %3371 = vmatpush1.bf16.msra.mxu0 %v3348
        %3372 = vmatprep.subr.bf16.mxu0 0
        %3373 = vmatpush2.bf16.msra.mxu0 0
        %3374 = vmatprep.subr.bf16.mxu0 0
        %3375 = vmatpush2.bf16.msra.mxu0 0
        %3376 = vmatprep.subr.bf16.mxu0 0
        %3377 = vmatpush2.bf16.msra.mxu0 0
        %3378 = vmatprep.subr.bf16.mxu0 0
        %3379 = vmatpush2.bf16.msra.mxu0 0
        %3380 = vmatprep.subr.bf16.mxu0 0
        %3381 = vmatpush2.bf16.msra.mxu0 0
        %3382 = vmatprep.subr.bf16.mxu0 0
        %3383 = vmatpush2.bf16.msra.mxu0 0
        %3384 = vmatprep.subr.bf16.mxu0 0
        %3385 = vmatpush2.bf16.msra.mxu0 0
        %3386 = vmatprep.subr.bf16.mxu0 0
        %3387 = vmatpush2.bf16.msra.mxu0 0
        %3388 = vmatprep.mubr.bf16.mxu0 0
        %3389 = vmatmul.mubr.bf16.gmra.mxu0 %v3345
        %v3390 = vpop.f32.mrf.mxu0
        %v3391 = vadd.f32 0.0, %v3390
        %v3392 = vpop.f32.mrf.mxu0
        %v3393 = vadd.f32 0.0, %v3392
        %v3394 = vpop.f32.mrf.mxu0
        %v3395 = vpop.f32.mrf.mxu0
        %3396 = vdwg.mxu0
        %3397 = vmatprep.subr.bf16.mxu0 0
        %3398 = vmatpush1.bf16.msra.mxu0 0
        %3399 = vmatprep.subr.bf16.mxu0 0
        %3400 = vmatpush1.bf16.msra.mxu0 0
        %3401 = vmatprep.subr.bf16.mxu0 0
        %3402 = vmatpush1.bf16.msra.mxu0 0
        %3403 = vmatprep.subr.bf16.mxu0 0
        %3404 = vmatpush1.bf16.msra.mxu0 0
        %3405 = vmatprep.subr.bf16.mxu0 0
        %3406 = vmatpush1.bf16.msra.mxu0 0
        %3407 = vmatprep.subr.bf16.mxu0 0
        %3408 = vmatpush1.bf16.msra.mxu0 0
        %3409 = vmatprep.subr.bf16.mxu0 0
        %3410 = vmatpush1.bf16.msra.mxu0 0
        %3411 = vmatprep.subr.bf16.mxu0 0
        %3412 = vmatpush1.bf16.msra.mxu0 %v3354
        %3413 = vmatprep.subr.bf16.mxu0 0
        %3414 = vmatpush2.bf16.msra.mxu0 0
        %3415 = vmatprep.subr.bf16.mxu0 0
        %3416 = vmatpush2.bf16.msra.mxu0 0
        %3417 = vmatprep.subr.bf16.mxu0 0
        %3418 = vmatpush2.bf16.msra.mxu0 0
        %3419 = vmatprep.subr.bf16.mxu0 0
        %3420 = vmatpush2.bf16.msra.mxu0 0
        %3421 = vmatprep.subr.bf16.mxu0 0
        %3422 = vmatpush2.bf16.msra.mxu0 0
        %3423 = vmatprep.subr.bf16.mxu0 0
        %3424 = vmatpush2.bf16.msra.mxu0 0
        %3425 = vmatprep.subr.bf16.mxu0 0
        %3426 = vmatpush2.bf16.msra.mxu0 0
        %3427 = vmatprep.subr.bf16.mxu0 0
        %3428 = vmatpush2.bf16.msra.mxu0 0
        %3429 = vmatprep.mubr.bf16.mxu0 0
        %3430 = vmatmul.mubr.bf16.gmra.mxu0 %v3345
        %v3431 = vpop.f32.mrf.mxu0
        %v3432 = vadd.f32 0.0, %v3431
        %v3433 = vpop.f32.mrf.mxu0
        %v3434 = vpop.f32.mrf.mxu0
        %v3435 = vpop.f32.mrf.mxu0
        %3436 = vdwg.mxu0
        %v3437 = vadd.f32 %v3328, %v3391
        %v3438 = vadd.f32 %v3329, %v3393
        %v3439 = vadd.f32 %v3330, %v3432
        %s3440 = scalar_lea.vmem %s7, 28
        %v3441 = vld [vmem:[%s3440] sm:$0xf]
        %3442 = vrot.lane.b32.xlu0 %v2683, 72
        %v3443 = vpop.permute.xlu0 %3442
        %3444 = vrot.lane.b32.xlu0 %v2684, 72
        %v3445 = vpop.permute.xlu0 %3444
        %3446 = vrot.lane.b32.xlu0 %v2685, 72
        %v3447 = vpop.permute.xlu0 %3446
        %3448 = vrot.lane.b32.xlu0 %v2686, 72
        %v3449 = vpop.permute.xlu0 %3448
        %v3450 = vsel %vm1255, %v3443, %v3445
        %v3451 = vsel %vm1255, %v3445, %v3447
        %v3452 = vsel %vm1255, %v3447, %v3449
        %v3454 = vsel %vm495, %v3441, 0
        %v3457 = vsel %vm499, %v3450, 0
        %v3460 = vsel %vm499, %v3451, 0
        %v3463 = vsel %vm499, %v3452, 0
        %3465 = vmatprep.subr.bf16.mxu0 0
        %3466 = vmatpush1.bf16.msra.mxu0 0
        %3467 = vmatprep.subr.bf16.mxu0 0
        %3468 = vmatpush1.bf16.msra.mxu0 0
        %3469 = vmatprep.subr.bf16.mxu0 0
        %3470 = vmatpush1.bf16.msra.mxu0 0
        %3471 = vmatprep.subr.bf16.mxu0 0
        %3472 = vmatpush1.bf16.msra.mxu0 0
        %3473 = vmatprep.subr.bf16.mxu0 0
        %3474 = vmatpush1.bf16.msra.mxu0 0
        %3475 = vmatprep.subr.bf16.mxu0 0
        %3476 = vmatpush1.bf16.msra.mxu0 0
        %3477 = vmatprep.subr.bf16.mxu0 0
        %3478 = vmatpush1.bf16.msra.mxu0 0
        %3479 = vmatprep.subr.bf16.mxu0 %v3460
        %3480 = vmatpush1.bf16.msra.mxu0 %v3457
        %3481 = vmatprep.subr.bf16.mxu0 0
        %3482 = vmatpush2.bf16.msra.mxu0 0
        %3483 = vmatprep.subr.bf16.mxu0 0
        %3484 = vmatpush2.bf16.msra.mxu0 0
        %3485 = vmatprep.subr.bf16.mxu0 0
        %3486 = vmatpush2.bf16.msra.mxu0 0
        %3487 = vmatprep.subr.bf16.mxu0 0
        %3488 = vmatpush2.bf16.msra.mxu0 0
        %3489 = vmatprep.subr.bf16.mxu0 0
        %3490 = vmatpush2.bf16.msra.mxu0 0
        %3491 = vmatprep.subr.bf16.mxu0 0
        %3492 = vmatpush2.bf16.msra.mxu0 0
        %3493 = vmatprep.subr.bf16.mxu0 0
        %3494 = vmatpush2.bf16.msra.mxu0 0
        %3495 = vmatprep.subr.bf16.mxu0 0
        %3496 = vmatpush2.bf16.msra.mxu0 0
        %3497 = vmatprep.mubr.bf16.mxu0 0
        %3498 = vmatmul.mubr.bf16.gmra.mxu0 %v3454
        %v3499 = vpop.f32.mrf.mxu0
        %v3500 = vadd.f32 0.0, %v3499
        %v3501 = vpop.f32.mrf.mxu0
        %v3502 = vadd.f32 0.0, %v3501
        %v3503 = vpop.f32.mrf.mxu0
        %v3504 = vpop.f32.mrf.mxu0
        %3505 = vdwg.mxu0
        %3506 = vmatprep.subr.bf16.mxu0 0
        %3507 = vmatpush1.bf16.msra.mxu0 0
        %3508 = vmatprep.subr.bf16.mxu0 0
        %3509 = vmatpush1.bf16.msra.mxu0 0
        %3510 = vmatprep.subr.bf16.mxu0 0
        %3511 = vmatpush1.bf16.msra.mxu0 0
        %3512 = vmatprep.subr.bf16.mxu0 0
        %3513 = vmatpush1.bf16.msra.mxu0 0
        %3514 = vmatprep.subr.bf16.mxu0 0
        %3515 = vmatpush1.bf16.msra.mxu0 0
        %3516 = vmatprep.subr.bf16.mxu0 0
        %3517 = vmatpush1.bf16.msra.mxu0 0
        %3518 = vmatprep.subr.bf16.mxu0 0
        %3519 = vmatpush1.bf16.msra.mxu0 0
        %3520 = vmatprep.subr.bf16.mxu0 0
        %3521 = vmatpush1.bf16.msra.mxu0 %v3463
        %3522 = vmatprep.subr.bf16.mxu0 0
        %3523 = vmatpush2.bf16.msra.mxu0 0
        %3524 = vmatprep.subr.bf16.mxu0 0
        %3525 = vmatpush2.bf16.msra.mxu0 0
        %3526 = vmatprep.subr.bf16.mxu0 0
        %3527 = vmatpush2.bf16.msra.mxu0 0
        %3528 = vmatprep.subr.bf16.mxu0 0
        %3529 = vmatpush2.bf16.msra.mxu0 0
        %3530 = vmatprep.subr.bf16.mxu0 0
        %3531 = vmatpush2.bf16.msra.mxu0 0
        %3532 = vmatprep.subr.bf16.mxu0 0
        %3533 = vmatpush2.bf16.msra.mxu0 0
        %3534 = vmatprep.subr.bf16.mxu0 0
        %3535 = vmatpush2.bf16.msra.mxu0 0
        %3536 = vmatprep.subr.bf16.mxu0 0
        %3537 = vmatpush2.bf16.msra.mxu0 0
        %3538 = vmatprep.mubr.bf16.mxu0 0
        %3539 = vmatmul.mubr.bf16.gmra.mxu0 %v3454
        %v3540 = vpop.f32.mrf.mxu0
        %v3541 = vadd.f32 0.0, %v3540
        %v3542 = vpop.f32.mrf.mxu0
        %v3543 = vpop.f32.mrf.mxu0
        %v3544 = vpop.f32.mrf.mxu0
        %3545 = vdwg.mxu0
        %v3546 = vadd.f32 %v3437, %v3500
        %v3547 = vadd.f32 %v3438, %v3502
        %v3548 = vadd.f32 %v3439, %v3541
        %s3549 = scalar_lea.vmem %s7, 32
        %v3550 = vld [vmem:[%s3549] sm:$0xf]
        %3551 = vrot.lane.b32.xlu0 %v2683, 71
        %v3552 = vpop.permute.xlu0 %3551
        %3553 = vrot.lane.b32.xlu0 %v2684, 71
        %v3554 = vpop.permute.xlu0 %3553
        %3555 = vrot.lane.b32.xlu0 %v2685, 71
        %v3556 = vpop.permute.xlu0 %3555
        %3557 = vrot.lane.b32.xlu0 %v2686, 71
        %v3558 = vpop.permute.xlu0 %3557
        %v3559 = vsel %vm1365, %v3552, %v3554
        %v3560 = vsel %vm1365, %v3554, %v3556
        %v3561 = vsel %vm1365, %v3556, %v3558
        %v3563 = vsel %vm495, %v3550, 0
        %v3566 = vsel %vm499, %v3559, 0
        %v3569 = vsel %vm499, %v3560, 0
        %v3572 = vsel %vm499, %v3561, 0
        %3574 = vmatprep.subr.bf16.mxu0 0
        %3575 = vmatpush1.bf16.msra.mxu0 0
        %3576 = vmatprep.subr.bf16.mxu0 0
        %3577 = vmatpush1.bf16.msra.mxu0 0
        %3578 = vmatprep.subr.bf16.mxu0 0
        %3579 = vmatpush1.bf16.msra.mxu0 0
        %3580 = vmatprep.subr.bf16.mxu0 0
        %3581 = vmatpush1.bf16.msra.mxu0 0
        %3582 = vmatprep.subr.bf16.mxu0 0
        %3583 = vmatpush1.bf16.msra.mxu0 0
        %3584 = vmatprep.subr.bf16.mxu0 0
        %3585 = vmatpush1.bf16.msra.mxu0 0
        %3586 = vmatprep.subr.bf16.mxu0 0
        %3587 = vmatpush1.bf16.msra.mxu0 0
        %3588 = vmatprep.subr.bf16.mxu0 %v3569
        %3589 = vmatpush1.bf16.msra.mxu0 %v3566
        %3590 = vmatprep.subr.bf16.mxu0 0
        %3591 = vmatpush2.bf16.msra.mxu0 0
        %3592 = vmatprep.subr.bf16.mxu0 0
        %3593 = vmatpush2.bf16.msra.mxu0 0
        %3594 = vmatprep.subr.bf16.mxu0 0
        %3595 = vmatpush2.bf16.msra.mxu0 0
        %3596 = vmatprep.subr.bf16.mxu0 0
        %3597 = vmatpush2.bf16.msra.mxu0 0
        %3598 = vmatprep.subr.bf16.mxu0 0
        %3599 = vmatpush2.bf16.msra.mxu0 0
        %3600 = vmatprep.subr.bf16.mxu0 0
        %3601 = vmatpush2.bf16.msra.mxu0 0
        %3602 = vmatprep.subr.bf16.mxu0 0
        %3603 = vmatpush2.bf16.msra.mxu0 0
        %3604 = vmatprep.subr.bf16.mxu0 0
        %3605 = vmatpush2.bf16.msra.mxu0 0
        %3606 = vmatprep.mubr.bf16.mxu0 0
        %3607 = vmatmul.mubr.bf16.gmra.mxu0 %v3563
        %v3608 = vpop.f32.mrf.mxu0
        %v3609 = vadd.f32 0.0, %v3608
        %v3610 = vpop.f32.mrf.mxu0
        %v3611 = vadd.f32 0.0, %v3610
        %v3612 = vpop.f32.mrf.mxu0
        %v3613 = vpop.f32.mrf.mxu0
        %3614 = vdwg.mxu0
        %3615 = vmatprep.subr.bf16.mxu0 0
        %3616 = vmatpush1.bf16.msra.mxu0 0
        %3617 = vmatprep.subr.bf16.mxu0 0
        %3618 = vmatpush1.bf16.msra.mxu0 0
        %3619 = vmatprep.subr.bf16.mxu0 0
        %3620 = vmatpush1.bf16.msra.mxu0 0
        %3621 = vmatprep.subr.bf16.mxu0 0
        %3622 = vmatpush1.bf16.msra.mxu0 0
        %3623 = vmatprep.subr.bf16.mxu0 0
        %3624 = vmatpush1.bf16.msra.mxu0 0
        %3625 = vmatprep.subr.bf16.mxu0 0
        %3626 = vmatpush1.bf16.msra.mxu0 0
        %3627 = vmatprep.subr.bf16.mxu0 0
        %3628 = vmatpush1.bf16.msra.mxu0 0
        %3629 = vmatprep.subr.bf16.mxu0 0
        %3630 = vmatpush1.bf16.msra.mxu0 %v3572
        %3631 = vmatprep.subr.bf16.mxu0 0
        %3632 = vmatpush2.bf16.msra.mxu0 0
        %3633 = vmatprep.subr.bf16.mxu0 0
        %3634 = vmatpush2.bf16.msra.mxu0 0
        %3635 = vmatprep.subr.bf16.mxu0 0
        %3636 = vmatpush2.bf16.msra.mxu0 0
        %3637 = vmatprep.subr.bf16.mxu0 0
        %3638 = vmatpush2.bf16.msra.mxu0 0
        %3639 = vmatprep.subr.bf16.mxu0 0
        %3640 = vmatpush2.bf16.msra.mxu0 0
        %3641 = vmatprep.subr.bf16.mxu0 0
        %3642 = vmatpush2.bf16.msra.mxu0 0
        %3643 = vmatprep.subr.bf16.mxu0 0
        %3644 = vmatpush2.bf16.msra.mxu0 0
        %3645 = vmatprep.subr.bf16.mxu0 0
        %3646 = vmatpush2.bf16.msra.mxu0 0
        %3647 = vmatprep.mubr.bf16.mxu0 0
        %3648 = vmatmul.mubr.bf16.gmra.mxu0 %v3563
        %v3649 = vpop.f32.mrf.mxu0
        %v3650 = vadd.f32 0.0, %v3649
        %v3651 = vpop.f32.mrf.mxu0
        %v3652 = vpop.f32.mrf.mxu0
        %v3653 = vpop.f32.mrf.mxu0
        %3654 = vdwg.mxu0
        %v3655 = vadd.f32 %v3546, %v3609
        %v3656 = vadd.f32 %v3547, %v3611
        %v3657 = vadd.f32 %v3548, %v3650
        %v3658 = vld [vmem:[%s8] sm:$0xff]
        %3660 = vset.pattern.permute.xlu0 0
        %3661 = vperm.xlu0 %3660, %v3658
        %v3662 = vpop.permute.xlu0 %3661
        %v3664 = vadd.f32 %v3655, %v3662
        %v3665 = vadd.f32 %v3656, %v3662
        %v3666 = vadd.f32 %v3657, %v3662
        %3667 = vst [vmem:[%s394] sm:$0xff] %v3664
        %3668 = vst [vmem:[%s394 + $0x8] sm:$0xff] %v3665
        %3669 = vst [vmem:[%s394 + $0x10] sm:$0xff] %v3666
        %s3670 = sand.u32 %s274, 1
        %s3671 = scalar_lea.sflag [#allocation4], %s3670
        %s3672 = sand.u32 %s274, 1
        %s3673 = smul.addr %s3672, 24
        %s3674 = scalar_lea.vmem [#allocation3], %s3673
        // Predicated region
        $region65: #{tpu_custom_call.1} parent=63 // pred_check
          %p3675 = pneg %p284
        $region66: #{tpu_custom_call.1} parent=63 // pred_check_branch
          %3677 = sbr.rel (%p3675) target = $region68
        $region67: #{tpu_custom_call.1} parent=63 // pred_region
          %s3679 = ssub.s32 384, 384
          %3680 = vsyncadd %s3671, %s3679
          %s3681 = smul.addr %s25, 3
          %s3682 = smul.addr %s3681, 128
          %s3683 = scalar_lea.hbm %s11, %s3682
          %s3685 = sshll.u32 %s3674, 4
          %s3686 = int_to_ptr.vmem [resolvable:$true] %s3685
          %3688 = dma.vmem_to_hbm [thread:$0]  %s3686, 384, %s3683, %s3671
        $region68: #{tpu_custom_call.1} parent=63 // pred_fallthru
          _
      $region64: #{tpu_custom_call.1} parent=5 // pred_fallthru
        _
      %p3689 = scmp.le.s32.totalorder 2, %s20
      // Predicated region
      $region69: #{tpu_custom_call.1} parent=5 // pred_check
        %p3690 = pneg %p3689
      $region70: #{tpu_custom_call.1} parent=5 // pred_check_branch
        %3692 = sbr.rel (%p3690) target = $region72
      $region71: #{tpu_custom_call.1} parent=5 // pred_region
        %s3693 = ssub.s32 %s20, 2
        // Predicated region
        $region73: #{tpu_custom_call.1} parent=71 // pred_check
          %p3694 = pneg %p290
        $region74: #{tpu_custom_call.1} parent=71 // pred_check_branch
          %3696 = sbr.rel (%p3694) target = $region76
        $region75: #{tpu_custom_call.1} parent=71 // pred_region
          %s3697 = sand.u32 %s275, 1
          %s3698 = scalar_lea.sflag [#allocation4], %s3697
          %s3699 = sand.u32 %s275, 1
          %s3700 = smul.addr %s3699, 24
          %s3701 = scalar_lea.vmem [#allocation3], %s3700
          %3702 = dma.done %s3698, 384
        $region76: #{tpu_custom_call.1} parent=71 // pred_fallthru
          _
      $region72: #{tpu_custom_call.1} parent=5 // pred_fallthru
        _
    $region6: #{tpu_custom_call.1} parent=1 // loop_footer
      %s24 = sadd.s32 1, %s20
    $region7: #{tpu_custom_call.1} parent=1 // loop_footer_branch
      %19 = sbr.rel target = $region3
    $region8: #{tpu_custom_call.1} parent=1 // loop_exit
      _
    %3703 = vsyncpa [#allocation4], 1
    %s3704 = scalar_lea.sflag [#allocation4], 1
    %3705 = vsyncpa %s3704, 1

</llo_original>
